<compile_context>
chip_gen: v5e
topology: v5e:2x2
jax: 0.10.0
libtpu: 0.0.40
codegen_flags: <defaults>
</compile_context>

<pallas_src>
import functools
from typing import NamedTuple

import jax
import jax.numpy as jnp
from jax import lax
from jax.experimental import pallas as pl
from jax.experimental.pallas import tpu as pltpu

_EPS = 1e-5          # nn.BatchNorm1d default eps
_UP = 256            # nn.Upsample(size=256)
_K5, _S5 = 16, 4     # conv5 kernel / stride


def _conv_len(lin, k, s):
    return (lin - k) // s + 1


class _Plan(NamedTuple):
    """Static geometry of the network for a given (batch, input length)."""
    n_batch: int
    length: int
    l1: int
    l2: int
    l3: int
    l4: int
    l5: int
    group_patterns: tuple   # conv5: tap -> conv4-source-row pattern per group
    group_members: tuple    # conv5 output positions belonging to each group
    group_counts: tuple     # len(members) per group
    terms: tuple            # ((group, source_row), ...) with a nonzero weight


def make_plan(n_batch, length):
    l1 = _conv_len(length, 16, 8)
    l2 = _conv_len(l1, 8, 4)
    l3 = _conv_len(l2, 8, 4)
    l4 = _conv_len(l3, 4, 2)
    assert l4 >= 1, "input too short for the conv stride pyramid"
    l5 = _conv_len(_UP, _K5, _S5)                     # 61 -> flatten 61*64 = 3904

    # Nearest Upsample(size=256): upsampled index i reads conv4 row
    # floor(i * l4 / 256).  Group conv5 output positions by which source rows
    # each of their 16 taps read; positions in a group produce identical
    # conv5 outputs, so their conv / fc weights can be pre-summed.
    patterns = [tuple(((_S5 * j + p) * l4) // _UP for p in range(_K5))
                for j in range(l5)]
    order, members = [], {}
    for j, pat in enumerate(patterns):
        if pat not in members:
            members[pat] = []
            order.append(pat)
        members[pat].append(j)
    group_patterns = tuple(order)
    group_members = tuple(tuple(members[p]) for p in order)
    group_counts = tuple(len(m) for m in group_members)
    terms = []
    for g, pat in enumerate(group_patterns):
        for m in range(l4):
            if any(s == m for s in pat):
                terms.append((g, m))
    return _Plan(n_batch, length, l1, l2, l3, l4, l5,
                 group_patterns, group_members, group_counts, tuple(terms))


# -----------------------------------------------------------------------------
# The fused kernel: everything stays in VMEM.
# -----------------------------------------------------------------------------
def _segtempnet_kernel(xp_ref, w1_ref,
                       g2_ref, w2_ref, g3_ref, w3_ref, g4_ref, w4_ref,
                       w5_ref, wfc_ref, bfc_ref,
                       bn1_ref, bn2_ref, bn3_ref, bn4_ref, bn5_ref,
                       o_ref, *, n_batch, terms, group_counts):
    f32 = jnp.float32
    bf16 = jnp.bfloat16

    def batch_norm(acc, bn_ref, relu):
        # Training-mode BatchNorm1d: batch stats over all (batch, position)
        # rows of the stacked matrix, affine folded into one scale/shift.
        rows = float(acc.shape[0])
        s1 = jnp.sum(acc, axis=0, keepdims=True)
        s2 = jnp.sum(acc * acc, axis=0, keepdims=True)
        mean = s1 * (1.0 / rows)
        var = s2 * (1.0 / rows) - mean * mean         # biased variance (train)
        scale = bn_ref[0:1, :] * lax.rsqrt(var + _EPS)
        shift = bn_ref[1:2, :] - mean * scale
        y = acc * scale + shift
        if relu:
            y = jnp.maximum(y, 0.0)
        return y.astype(bf16)

    def strided_conv(prev, g_ref, w_ref):
        # Conv1d(stride) on channels-last stacked rows.  The strided row
        # gather per tap is a precomputed block-diagonal one-hot matmul
        # (exact on bf16 values), followed by the tap weight matmul; the
        # accumulation over taps stays in f32.
        k, _, cout = w_ref.shape
        lout = g_ref.shape[1]
        acc = jnp.zeros((lout, cout), f32)
        for p in range(k):
            rows = jnp.dot(g_ref[p], prev,
                           preferred_element_type=f32).astype(bf16)   # exact
            acc = acc + jnp.dot(rows, w_ref[p], preferred_element_type=f32)
        return acc

    # ---- conv1 (1->32, k=16, s=8): patches pre-blocked host-side, 1 matmul.
    y1 = batch_norm(jnp.dot(xp_ref[...], w1_ref[...],
                            preferred_element_type=f32), bn1_ref, relu=True)
    # ---- conv2..conv4 (+BN+ReLU), batch stacked along rows.
    y2 = batch_norm(strided_conv(y1, g2_ref, w2_ref), bn2_ref, relu=True)
    y3 = batch_norm(strided_conv(y2, g3_ref, w3_ref), bn3_ref, relu=True)
    # conv4 output rows are ordered (source_row, batch) so conv5 can take
    # contiguous static slices per conv4 row.
    y4 = batch_norm(strided_conv(y3, g4_ref, w4_ref), bn4_ref, relu=True)

    # ---- Upsample(256) + conv5: one tiny matmul per (group, source-row) term,
    #      f32 accumulation, never materializing the (256, 256) upsampled map.
    n_groups = len(group_counts)
    z = [None] * n_groups
    for t, (g, m) in enumerate(terms):
        u_m = y4[m * n_batch:(m + 1) * n_batch, :]           # (N, 256) bf16
        part = jnp.dot(u_m, w5_ref[t], preferred_element_type=f32)
        z[g] = part if z[g] is None else z[g] + part         # (N, 64) f32

    # ---- BN5 (training batch stats over all N * 61 positions, no ReLU).
    c5 = z[0].shape[1]
    total = float(n_batch * sum(group_counts))
    s1 = jnp.zeros((1, c5), f32)
    s2 = jnp.zeros((1, c5), f32)
    for g in range(n_groups):
        cnt = float(group_counts[g])
        s1 = s1 + cnt * jnp.sum(z[g], axis=0, keepdims=True)
        s2 = s2 + cnt * jnp.sum(z[g] * z[g], axis=0, keepdims=True)
    mean = s1 * (1.0 / total)
    var = s2 * (1.0 / total) - mean * mean
    scale5 = bn5_ref[0:1, :] * lax.rsqrt(var + _EPS)
    shift5 = bn5_ref[1:2, :] - mean * scale5

    # ---- Flatten + Linear(3904,512) + Linear(512,feat): the two Linears are
    #      collapsed at prep time and the flatten order / position replication
    #      are folded into per-group (64, feat) weights -> 5 tiny matmuls.
    out = jnp.zeros((n_batch, o_ref.shape[1]), f32)
    for g in range(n_groups):
        yg = (z[g] * scale5 + shift5).astype(bf16)
        out = out + jnp.dot(yg, wfc_ref[g], preferred_element_type=f32)
    o_ref[...] = out + bfc_ref[...]


# -----------------------------------------------------------------------------
# Parameter construction (deterministic, synthetic -- mirrors __init__ shapes).
# -----------------------------------------------------------------------------
def init_params(key, feat_dim=128):
    conv_cfg = [  # (Cout, Cin, K)
        (32, 1, 16), (64, 32, 8), (128, 64, 8), (256, 128, 4), (64, 256, 16)]
    params = {}
    keys = jax.random.split(key, 16)
    ki = 0
    for i, (co, ci, k) in enumerate(conv_cfg, start=1):
        fan_in = ci * k
        params[f"conv{i}_w"] = (jax.random.normal(keys[ki], (co, ci, k),
                                                  jnp.float32)
                                / jnp.sqrt(fan_in)); ki += 1
        params[f"conv{i}_b"] = (jax.random.normal(keys[ki], (co,), jnp.float32)
                                * 0.01); ki += 1
        params[f"bn{i}_g"] = jnp.ones((co,), jnp.float32)
        params[f"bn{i}_b"] = jnp.zeros((co,), jnp.float32)
    for i, (din, dout) in enumerate([(3904, 512), (512, feat_dim)], start=1):
        params[f"fc{i}_w"] = (jax.random.normal(keys[ki], (dout, din),
                                                jnp.float32)
                              / jnp.sqrt(din)); ki += 1
        params[f"fc{i}_b"] = (jax.random.normal(keys[ki], (dout,), jnp.float32)
                              * 0.01); ki += 1
    return params


def _gather_mats(n, lin, lout, stride, k, out_batch_major):
    """Block-diagonal one-hot row-selection matrices (k, n*lout, n*lin)."""
    r = jnp.arange(n * lout)
    c = jnp.arange(n * lin)
    if out_batch_major:
        rb, rj = r // lout, r % lout        # row = batch * lout + position
    else:
        rb, rj = r % n, r // n              # row = position * n + batch
    cb, ci = c // lin, c % lin
    mats = [(rb[:, None] == cb[None, :])
            & (ci[None, :] == stride * rj[:, None] + p) for p in range(k)]
    return jnp.stack(mats).astype(jnp.bfloat16)


def prepare_params(params, plan):
    """One-time repack of PyTorch-layout params into kernel-friendly layout.

    Conv biases are dropped (training-mode BN mean subtraction cancels them
    exactly); fc1/fc2 are collapsed (no nonlinearity between them in the
    module); Upsample+conv5+Flatten are folded into per-group weights."""
    bf, f32 = jnp.bfloat16, jnp.float32
    n = plan.n_batch
    prep = {}

    # conv1: (32, 1, 16) -> (16, 32) tap table for the pre-blocked patches.
    prep["w1"] = jnp.transpose(params["conv1_w"][:, 0, :], (1, 0)).astype(bf)
    # conv2..conv4: (k, Cin, Cout) tap tables + one-hot gather matrices.
    prep["w2"] = jnp.transpose(params["conv2_w"], (2, 1, 0)).astype(bf)
    prep["w3"] = jnp.transpose(params["conv3_w"], (2, 1, 0)).astype(bf)
    prep["w4"] = jnp.transpose(params["conv4_w"], (2, 1, 0)).astype(bf)
    prep["g2"] = _gather_mats(n, plan.l1, plan.l2, 4, 8, out_batch_major=True)
    prep["g3"] = _gather_mats(n, plan.l2, plan.l3, 4, 8, out_batch_major=True)
    prep["g4"] = _gather_mats(n, plan.l3, plan.l4, 2, 4, out_batch_major=False)

    # BatchNorm affine params, packed (2, C): row 0 = gamma, row 1 = beta.
    for i in range(1, 6):
        prep[f"bn{i}"] = jnp.stack(
            [params[f"bn{i}_g"], params[f"bn{i}_b"]]).astype(f32)

    # Upsample(256)+conv5 folded: one (256, 64) weight per (group, source-row).
    w5t = jnp.transpose(params["conv5_w"], (2, 1, 0)).astype(f32)  # (16,256,64)
    w5g = []
    for g, m in plan.terms:
        pat = plan.group_patterns[g]
        taps = jnp.array([p for p in range(_K5) if pat[p] == m])
        w5g.append(jnp.sum(w5t[taps], axis=0))
    prep["w5g"] = jnp.stack(w5g).astype(bf)                 # (n_terms, 256, 64)

    # fc1 ∘ fc2 collapsed in f32, then Flatten (channel-major c*61 + j) and the
    # conv5 position replication folded into per-group (64, feat) weights.
    wc = params["fc2_w"].astype(f32) @ params["fc1_w"].astype(f32)  # (feat,3904)
    bc = params["fc2_w"].astype(f32) @ params["fc1_b"].astype(f32) \
        + params["fc2_b"].astype(f32)
    feat = wc.shape[0]
    c5 = params["conv5_w"].shape[0]                         # 64
    assert c5 * plan.l5 == params["fc1_w"].shape[1]
    wc3 = wc.reshape(feat, c5, plan.l5)                     # [f, channel, pos]
    wfcg = [jnp.transpose(jnp.sum(wc3[:, :, jnp.array(mem)], axis=-1), (1, 0))
            for mem in plan.group_members]
    prep["wfcg"] = jnp.stack(wfcg).astype(bf)               # (n_groups, 64, feat)
    prep["bfc"] = bc.reshape(1, feat).astype(f32)
    return prep


# -----------------------------------------------------------------------------
# Full forward pass: ONE pallas_call.
# -----------------------------------------------------------------------------
def segtempnet_forward(prep, x, *, plan):
    """x: (N, 1, L) float32 -> (N, feat_dim) float32."""
    n, cin, length = x.shape
    assert cin == 1 and n == plan.n_batch and length == plan.length
    l1, l2, l3, l4 = plan.l1, plan.l2, plan.l3, plan.l4

    # Only host-side layout glue left: free reshapes of the raw input into the
    # conv1 (N*l1, 16) patch matrix (stride 8, kernel 16), cast to bf16.
    xa = x[:, 0, 0:8 * l1].reshape(n, l1, 8)
    xb = x[:, 0, 8:8 + 8 * l1].reshape(n, l1, 8)
    xp = jnp.concatenate([xa, xb], axis=-1).reshape(n * l1, 16).astype(
        jnp.bfloat16)

    inputs = (xp, prep["w1"],
              prep["g2"], prep["w2"], prep["g3"], prep["w3"],
              prep["g4"], prep["w4"],
              prep["w5g"], prep["wfcg"], prep["bfc"],
              prep["bn1"], prep["bn2"], prep["bn3"], prep["bn4"], prep["bn5"])
    feat = prep["wfcg"].shape[2]

    macs = n * l1 * 16 * 32
    for lin, lout, ci, co, k in ((l1, l2, 32, 64, 8),
                                 (l2, l3, 64, 128, 8),
                                 (l3, l4, 128, 256, 4)):
        macs += k * (n * lout * n * lin * ci + n * lout * ci * co)
    macs += len(plan.terms) * n * 256 * 64
    macs += len(plan.group_counts) * n * 64 * feat
    bytes_in = sum(int(a.size) * a.dtype.itemsize for a in inputs)

    vmem = pl.BlockSpec(memory_space=pltpu.MemorySpace.VMEM)
    out = pl.pallas_call(
        functools.partial(_segtempnet_kernel, n_batch=n,
                          terms=plan.terms,
                          group_counts=plan.group_counts),
        out_shape=jax.ShapeDtypeStruct((n, feat), jnp.float32),
        in_specs=[vmem] * len(inputs),
        out_specs=vmem,
        cost_estimate=pl.CostEstimate(flops=2 * macs, transcendentals=544,
                                      bytes_accessed=bytes_in + n * feat * 4),
    )(*inputs)
    return out


if __name__ == "__main__":
    key = jax.random.PRNGKey(0)
    k_param, k_x = jax.random.split(key)
    params = init_params(k_param, feat_dim=128)

    # batch=2, single channel, length 1024 (Upsample(256) pins flatten to 3904).
    N, L = 2, 1024
    plan = make_plan(N, L)
    prep = prepare_params(params, plan)
    x = jax.random.normal(k_x, (N, 1, L), dtype=jnp.float32)

    fwd = jax.jit(functools.partial(segtempnet_forward, plan=plan))
    out = jax.block_until_ready(fwd(prep, x))

    assert out.shape == (N, 128), out.shape
    assert bool(jnp.all(jnp.isfinite(out)))
    print("KERNEL_OK")
</pallas_src>

<mosaic_0001>
module attributes {stable_mosaic.version = 11 : i64} {
  func.func @_segtempnet_kernel(%arg0: memref<254x16xbf16, #tpu.memory_space<vmem>>, %arg1: memref<16x32xbf16, #tpu.memory_space<vmem>>, %arg2: memref<8x60x254xbf16, #tpu.memory_space<vmem>>, %arg3: memref<8x32x64xbf16, #tpu.memory_space<vmem>>, %arg4: memref<8x12x60xbf16, #tpu.memory_space<vmem>>, %arg5: memref<8x64x128xbf16, #tpu.memory_space<vmem>>, %arg6: memref<4x4x12xbf16, #tpu.memory_space<vmem>>, %arg7: memref<4x128x256xbf16, #tpu.memory_space<vmem>>, %arg8: memref<8x256x64xbf16, #tpu.memory_space<vmem>>, %arg9: memref<5x64x128xbf16, #tpu.memory_space<vmem>>, %arg10: memref<1x128xf32, #tpu.memory_space<vmem>>, %arg11: memref<2x32xf32, #tpu.memory_space<vmem>>, %arg12: memref<2x64xf32, #tpu.memory_space<vmem>>, %arg13: memref<2x128xf32, #tpu.memory_space<vmem>>, %arg14: memref<2x256xf32, #tpu.memory_space<vmem>>, %arg15: memref<2x64xf32, #tpu.memory_space<vmem>>, %arg16: memref<2x128xf32, #tpu.memory_space<vmem>>) attributes {dimension_semantics = [], scalar_prefetch = 0 : i64, scratch_operands = 0 : i64, tpu.core_type = #tpu.core_type<tc>} {
    %c0 = arith.constant 0 : index
    %c0_0 = arith.constant 0 : index
    %0 = vector.load %arg0[%c0, %c0_0] : memref<254x16xbf16, #tpu.memory_space<vmem>>, vector<254x16xbf16>
    %c0_1 = arith.constant 0 : index
    %c0_2 = arith.constant 0 : index
    %1 = vector.load %arg1[%c0_1, %c0_2] : memref<16x32xbf16, #tpu.memory_space<vmem>>, vector<16x32xbf16>
    %cst = arith.constant dense<0.000000e+00> : vector<254x32xf32>
    %2 = tpu.matmul %0, %1, %cst {dimension_numbers = #tpu.dot_dimension_numbers<[1], [0], [0], [1], [0, 0, 1, 1], [], []>} : vector<254x16xbf16>, vector<16x32xbf16>, vector<254x32xf32> -> vector<254x32xf32>
    %cst_3 = arith.constant dense<0.000000e+00> : vector<32xf32>
    %3 = vector.multi_reduction <add>, %2, %cst_3 [0] : vector<254x32xf32> to vector<32xf32>
    %4 = vector.shape_cast %3 : vector<32xf32> to vector<1x32xf32>
    %5 = arith.mulf %2, %2 : vector<254x32xf32>
    %cst_4 = arith.constant dense<0.000000e+00> : vector<32xf32>
    %6 = vector.multi_reduction <add>, %5, %cst_4 [0] : vector<254x32xf32> to vector<32xf32>
    %7 = vector.shape_cast %6 : vector<32xf32> to vector<1x32xf32>
    %cst_5 = arith.constant 0.00393700786 : f32
    %8 = vector.broadcast %cst_5 : f32 to vector<1x32xf32>
    %9 = arith.mulf %4, %8 : vector<1x32xf32>
    %cst_6 = arith.constant 0.00393700786 : f32
    %10 = vector.broadcast %cst_6 : f32 to vector<1x32xf32>
    %11 = arith.mulf %7, %10 : vector<1x32xf32>
    %12 = arith.mulf %9, %9 : vector<1x32xf32>
    %13 = arith.subf %11, %12 : vector<1x32xf32>
    %c0_7 = arith.constant 0 : index
    %c0_8 = arith.constant 0 : index
    %14 = vector.load %arg11[%c0_7, %c0_8] : memref<2x32xf32, #tpu.memory_space<vmem>>, vector<1x32xf32>
    %cst_9 = arith.constant 9.99999974E-6 : f32
    %15 = vector.broadcast %cst_9 : f32 to vector<1x32xf32>
    %16 = arith.addf %13, %15 : vector<1x32xf32>
    %17 = math.rsqrt %16 : vector<1x32xf32>
    %18 = arith.mulf %14, %17 : vector<1x32xf32>
    %c1 = arith.constant 1 : index
    %c0_10 = arith.constant 0 : index
    %19 = vector.load %arg11[%c1, %c0_10] : memref<2x32xf32, #tpu.memory_space<vmem>>, vector<1x32xf32>
    %20 = arith.mulf %9, %18 : vector<1x32xf32>
    %21 = arith.subf %19, %20 : vector<1x32xf32>
    %22 = vector.broadcast %18 : vector<1x32xf32> to vector<254x32xf32>
    %23 = arith.mulf %2, %22 : vector<254x32xf32>
    %24 = vector.broadcast %21 : vector<1x32xf32> to vector<254x32xf32>
    %25 = arith.addf %23, %24 : vector<254x32xf32>
    %cst_11 = arith.constant 0.000000e+00 : f32
    %26 = vector.broadcast %cst_11 : f32 to vector<254x32xf32>
    %27 = arith.maximumf %25, %26 : vector<254x32xf32>
    %28 = arith.truncf %27 : vector<254x32xf32> to vector<254x32xbf16>
    %cst_12 = arith.constant 0.000000e+00 : f32
    %29 = vector.broadcast %cst_12 : f32 to vector<60x64xf32>
    %c0_13 = arith.constant 0 : index
    %c0_14 = arith.constant 0 : index
    %c0_15 = arith.constant 0 : index
    %30 = vector.load %arg2[%c0_13, %c0_14, %c0_15] : memref<8x60x254xbf16, #tpu.memory_space<vmem>>, vector<1x60x254xbf16>
    %31 = vector.shape_cast %30 : vector<1x60x254xbf16> to vector<60x254xbf16>
    %cst_16 = arith.constant dense<0.000000e+00> : vector<60x32xf32>
    %32 = tpu.matmul %31, %28, %cst_16 {dimension_numbers = #tpu.dot_dimension_numbers<[1], [0], [0], [1], [0, 0, 1, 1], [], []>} : vector<60x254xbf16>, vector<254x32xbf16>, vector<60x32xf32> -> vector<60x32xf32>
    %33 = arith.truncf %32 : vector<60x32xf32> to vector<60x32xbf16>
    %c0_17 = arith.constant 0 : index
    %c0_18 = arith.constant 0 : index
    %c0_19 = arith.constant 0 : index
    %34 = vector.load %arg3[%c0_17, %c0_18, %c0_19] : memref<8x32x64xbf16, #tpu.memory_space<vmem>>, vector<1x32x64xbf16>
    %35 = vector.shape_cast %34 : vector<1x32x64xbf16> to vector<32x64xbf16>
    %cst_20 = arith.constant dense<0.000000e+00> : vector<60x64xf32>
    %36 = tpu.matmul %33, %35, %cst_20 {dimension_numbers = #tpu.dot_dimension_numbers<[1], [0], [0], [1], [0, 0, 1, 1], [], []>} : vector<60x32xbf16>, vector<32x64xbf16>, vector<60x64xf32> -> vector<60x64xf32>
    %37 = arith.addf %29, %36 : vector<60x64xf32>
    %c1_21 = arith.constant 1 : index
    %c0_22 = arith.constant 0 : index
    %c0_23 = arith.constant 0 : index
    %38 = vector.load %arg2[%c1_21, %c0_22, %c0_23] : memref<8x60x254xbf16, #tpu.memory_space<vmem>>, vector<1x60x254xbf16>
    %39 = vector.shape_cast %38 : vector<1x60x254xbf16> to vector<60x254xbf16>
    %cst_24 = arith.constant dense<0.000000e+00> : vector<60x32xf32>
    %40 = tpu.matmul %39, %28, %cst_24 {dimension_numbers = #tpu.dot_dimension_numbers<[1], [0], [0], [1], [0, 0, 1, 1], [], []>} : vector<60x254xbf16>, vector<254x32xbf16>, vector<60x32xf32> -> vector<60x32xf32>
    %41 = arith.truncf %40 : vector<60x32xf32> to vector<60x32xbf16>
    %c1_25 = arith.constant 1 : index
    %c0_26 = arith.constant 0 : index
    %c0_27 = arith.constant 0 : index
    %42 = vector.load %arg3[%c1_25, %c0_26, %c0_27] : memref<8x32x64xbf16, #tpu.memory_space<vmem>>, vector<1x32x64xbf16>
    %43 = vector.shape_cast %42 : vector<1x32x64xbf16> to vector<32x64xbf16>
    %cst_28 = arith.constant dense<0.000000e+00> : vector<60x64xf32>
    %44 = tpu.matmul %41, %43, %cst_28 {dimension_numbers = #tpu.dot_dimension_numbers<[1], [0], [0], [1], [0, 0, 1, 1], [], []>} : vector<60x32xbf16>, vector<32x64xbf16>, vector<60x64xf32> -> vector<60x64xf32>
    %45 = arith.addf %37, %44 : vector<60x64xf32>
    %c2 = arith.constant 2 : index
    %c0_29 = arith.constant 0 : index
    %c0_30 = arith.constant 0 : index
    %46 = vector.load %arg2[%c2, %c0_29, %c0_30] : memref<8x60x254xbf16, #tpu.memory_space<vmem>>, vector<1x60x254xbf16>
    %47 = vector.shape_cast %46 : vector<1x60x254xbf16> to vector<60x254xbf16>
    %cst_31 = arith.constant dense<0.000000e+00> : vector<60x32xf32>
    %48 = tpu.matmul %47, %28, %cst_31 {dimension_numbers = #tpu.dot_dimension_numbers<[1], [0], [0], [1], [0, 0, 1, 1], [], []>} : vector<60x254xbf16>, vector<254x32xbf16>, vector<60x32xf32> -> vector<60x32xf32>
    %49 = arith.truncf %48 : vector<60x32xf32> to vector<60x32xbf16>
    %c2_32 = arith.constant 2 : index
    %c0_33 = arith.constant 0 : index
    %c0_34 = arith.constant 0 : index
    %50 = vector.load %arg3[%c2_32, %c0_33, %c0_34] : memref<8x32x64xbf16, #tpu.memory_space<vmem>>, vector<1x32x64xbf16>
    %51 = vector.shape_cast %50 : vector<1x32x64xbf16> to vector<32x64xbf16>
    %cst_35 = arith.constant dense<0.000000e+00> : vector<60x64xf32>
    %52 = tpu.matmul %49, %51, %cst_35 {dimension_numbers = #tpu.dot_dimension_numbers<[1], [0], [0], [1], [0, 0, 1, 1], [], []>} : vector<60x32xbf16>, vector<32x64xbf16>, vector<60x64xf32> -> vector<60x64xf32>
    %53 = arith.addf %45, %52 : vector<60x64xf32>
    %c3 = arith.constant 3 : index
    %c0_36 = arith.constant 0 : index
    %c0_37 = arith.constant 0 : index
    %54 = vector.load %arg2[%c3, %c0_36, %c0_37] : memref<8x60x254xbf16, #tpu.memory_space<vmem>>, vector<1x60x254xbf16>
    %55 = vector.shape_cast %54 : vector<1x60x254xbf16> to vector<60x254xbf16>
    %cst_38 = arith.constant dense<0.000000e+00> : vector<60x32xf32>
    %56 = tpu.matmul %55, %28, %cst_38 {dimension_numbers = #tpu.dot_dimension_numbers<[1], [0], [0], [1], [0, 0, 1, 1], [], []>} : vector<60x254xbf16>, vector<254x32xbf16>, vector<60x32xf32> -> vector<60x32xf32>
    %57 = arith.truncf %56 : vector<60x32xf32> to vector<60x32xbf16>
    %c3_39 = arith.constant 3 : index
    %c0_40 = arith.constant 0 : index
    %c0_41 = arith.constant 0 : index
    %58 = vector.load %arg3[%c3_39, %c0_40, %c0_41] : memref<8x32x64xbf16, #tpu.memory_space<vmem>>, vector<1x32x64xbf16>
    %59 = vector.shape_cast %58 : vector<1x32x64xbf16> to vector<32x64xbf16>
    %cst_42 = arith.constant dense<0.000000e+00> : vector<60x64xf32>
    %60 = tpu.matmul %57, %59, %cst_42 {dimension_numbers = #tpu.dot_dimension_numbers<[1], [0], [0], [1], [0, 0, 1, 1], [], []>} : vector<60x32xbf16>, vector<32x64xbf16>, vector<60x64xf32> -> vector<60x64xf32>
    %61 = arith.addf %53, %60 : vector<60x64xf32>
    %c4 = arith.constant 4 : index
    %c0_43 = arith.constant 0 : index
    %c0_44 = arith.constant 0 : index
    %62 = vector.load %arg2[%c4, %c0_43, %c0_44] : memref<8x60x254xbf16, #tpu.memory_space<vmem>>, vector<1x60x254xbf16>
    %63 = vector.shape_cast %62 : vector<1x60x254xbf16> to vector<60x254xbf16>
    %cst_45 = arith.constant dense<0.000000e+00> : vector<60x32xf32>
    %64 = tpu.matmul %63, %28, %cst_45 {dimension_numbers = #tpu.dot_dimension_numbers<[1], [0], [0], [1], [0, 0, 1, 1], [], []>} : vector<60x254xbf16>, vector<254x32xbf16>, vector<60x32xf32> -> vector<60x32xf32>
    %65 = arith.truncf %64 : vector<60x32xf32> to vector<60x32xbf16>
    %c4_46 = arith.constant 4 : index
    %c0_47 = arith.constant 0 : index
    %c0_48 = arith.constant 0 : index
    %66 = vector.load %arg3[%c4_46, %c0_47, %c0_48] : memref<8x32x64xbf16, #tpu.memory_space<vmem>>, vector<1x32x64xbf16>
    %67 = vector.shape_cast %66 : vector<1x32x64xbf16> to vector<32x64xbf16>
    %cst_49 = arith.constant dense<0.000000e+00> : vector<60x64xf32>
    %68 = tpu.matmul %65, %67, %cst_49 {dimension_numbers = #tpu.dot_dimension_numbers<[1], [0], [0], [1], [0, 0, 1, 1], [], []>} : vector<60x32xbf16>, vector<32x64xbf16>, vector<60x64xf32> -> vector<60x64xf32>
    %69 = arith.addf %61, %68 : vector<60x64xf32>
    %c5 = arith.constant 5 : index
    %c0_50 = arith.constant 0 : index
    %c0_51 = arith.constant 0 : index
    %70 = vector.load %arg2[%c5, %c0_50, %c0_51] : memref<8x60x254xbf16, #tpu.memory_space<vmem>>, vector<1x60x254xbf16>
    %71 = vector.shape_cast %70 : vector<1x60x254xbf16> to vector<60x254xbf16>
    %cst_52 = arith.constant dense<0.000000e+00> : vector<60x32xf32>
    %72 = tpu.matmul %71, %28, %cst_52 {dimension_numbers = #tpu.dot_dimension_numbers<[1], [0], [0], [1], [0, 0, 1, 1], [], []>} : vector<60x254xbf16>, vector<254x32xbf16>, vector<60x32xf32> -> vector<60x32xf32>
    %73 = arith.truncf %72 : vector<60x32xf32> to vector<60x32xbf16>
    %c5_53 = arith.constant 5 : index
    %c0_54 = arith.constant 0 : index
    %c0_55 = arith.constant 0 : index
    %74 = vector.load %arg3[%c5_53, %c0_54, %c0_55] : memref<8x32x64xbf16, #tpu.memory_space<vmem>>, vector<1x32x64xbf16>
    %75 = vector.shape_cast %74 : vector<1x32x64xbf16> to vector<32x64xbf16>
    %cst_56 = arith.constant dense<0.000000e+00> : vector<60x64xf32>
    %76 = tpu.matmul %73, %75, %cst_56 {dimension_numbers = #tpu.dot_dimension_numbers<[1], [0], [0], [1], [0, 0, 1, 1], [], []>} : vector<60x32xbf16>, vector<32x64xbf16>, vector<60x64xf32> -> vector<60x64xf32>
    %77 = arith.addf %69, %76 : vector<60x64xf32>
    %c6 = arith.constant 6 : index
    %c0_57 = arith.constant 0 : index
    %c0_58 = arith.constant 0 : index
    %78 = vector.load %arg2[%c6, %c0_57, %c0_58] : memref<8x60x254xbf16, #tpu.memory_space<vmem>>, vector<1x60x254xbf16>
    %79 = vector.shape_cast %78 : vector<1x60x254xbf16> to vector<60x254xbf16>
    %cst_59 = arith.constant dense<0.000000e+00> : vector<60x32xf32>
    %80 = tpu.matmul %79, %28, %cst_59 {dimension_numbers = #tpu.dot_dimension_numbers<[1], [0], [0], [1], [0, 0, 1, 1], [], []>} : vector<60x254xbf16>, vector<254x32xbf16>, vector<60x32xf32> -> vector<60x32xf32>
    %81 = arith.truncf %80 : vector<60x32xf32> to vector<60x32xbf16>
    %c6_60 = arith.constant 6 : index
    %c0_61 = arith.constant 0 : index
    %c0_62 = arith.constant 0 : index
    %82 = vector.load %arg3[%c6_60, %c0_61, %c0_62] : memref<8x32x64xbf16, #tpu.memory_space<vmem>>, vector<1x32x64xbf16>
    %83 = vector.shape_cast %82 : vector<1x32x64xbf16> to vector<32x64xbf16>
    %cst_63 = arith.constant dense<0.000000e+00> : vector<60x64xf32>
    %84 = tpu.matmul %81, %83, %cst_63 {dimension_numbers = #tpu.dot_dimension_numbers<[1], [0], [0], [1], [0, 0, 1, 1], [], []>} : vector<60x32xbf16>, vector<32x64xbf16>, vector<60x64xf32> -> vector<60x64xf32>
    %85 = arith.addf %77, %84 : vector<60x64xf32>
    %c7 = arith.constant 7 : index
    %c0_64 = arith.constant 0 : index
    %c0_65 = arith.constant 0 : index
    %86 = vector.load %arg2[%c7, %c0_64, %c0_65] : memref<8x60x254xbf16, #tpu.memory_space<vmem>>, vector<1x60x254xbf16>
    %87 = vector.shape_cast %86 : vector<1x60x254xbf16> to vector<60x254xbf16>
    %cst_66 = arith.constant dense<0.000000e+00> : vector<60x32xf32>
    %88 = tpu.matmul %87, %28, %cst_66 {dimension_numbers = #tpu.dot_dimension_numbers<[1], [0], [0], [1], [0, 0, 1, 1], [], []>} : vector<60x254xbf16>, vector<254x32xbf16>, vector<60x32xf32> -> vector<60x32xf32>
    %89 = arith.truncf %88 : vector<60x32xf32> to vector<60x32xbf16>
    %c7_67 = arith.constant 7 : index
    %c0_68 = arith.constant 0 : index
    %c0_69 = arith.constant 0 : index
    %90 = vector.load %arg3[%c7_67, %c0_68, %c0_69] : memref<8x32x64xbf16, #tpu.memory_space<vmem>>, vector<1x32x64xbf16>
    %91 = vector.shape_cast %90 : vector<1x32x64xbf16> to vector<32x64xbf16>
    %cst_70 = arith.constant dense<0.000000e+00> : vector<60x64xf32>
    %92 = tpu.matmul %89, %91, %cst_70 {dimension_numbers = #tpu.dot_dimension_numbers<[1], [0], [0], [1], [0, 0, 1, 1], [], []>} : vector<60x32xbf16>, vector<32x64xbf16>, vector<60x64xf32> -> vector<60x64xf32>
    %93 = arith.addf %85, %92 : vector<60x64xf32>
    %cst_71 = arith.constant dense<0.000000e+00> : vector<64xf32>
    %94 = vector.multi_reduction <add>, %93, %cst_71 [0] : vector<60x64xf32> to vector<64xf32>
    %95 = vector.shape_cast %94 : vector<64xf32> to vector<1x64xf32>
    %96 = arith.mulf %93, %93 : vector<60x64xf32>
    %cst_72 = arith.constant dense<0.000000e+00> : vector<64xf32>
    %97 = vector.multi_reduction <add>, %96, %cst_72 [0] : vector<60x64xf32> to vector<64xf32>
    %98 = vector.shape_cast %97 : vector<64xf32> to vector<1x64xf32>
    %cst_73 = arith.constant 0.0166666675 : f32
    %99 = vector.broadcast %cst_73 : f32 to vector<1x64xf32>
    %100 = arith.mulf %95, %99 : vector<1x64xf32>
    %cst_74 = arith.constant 0.0166666675 : f32
    %101 = vector.broadcast %cst_74 : f32 to vector<1x64xf32>
    %102 = arith.mulf %98, %101 : vector<1x64xf32>
    %103 = arith.mulf %100, %100 : vector<1x64xf32>
    %104 = arith.subf %102, %103 : vector<1x64xf32>
    %c0_75 = arith.constant 0 : index
    %c0_76 = arith.constant 0 : index
    %105 = vector.load %arg12[%c0_75, %c0_76] : memref<2x64xf32, #tpu.memory_space<vmem>>, vector<1x64xf32>
    %cst_77 = arith.constant 9.99999974E-6 : f32
    %106 = vector.broadcast %cst_77 : f32 to vector<1x64xf32>
    %107 = arith.addf %104, %106 : vector<1x64xf32>
    %108 = math.rsqrt %107 : vector<1x64xf32>
    %109 = arith.mulf %105, %108 : vector<1x64xf32>
    %c1_78 = arith.constant 1 : index
    %c0_79 = arith.constant 0 : index
    %110 = vector.load %arg12[%c1_78, %c0_79] : memref<2x64xf32, #tpu.memory_space<vmem>>, vector<1x64xf32>
    %111 = arith.mulf %100, %109 : vector<1x64xf32>
    %112 = arith.subf %110, %111 : vector<1x64xf32>
    %113 = vector.broadcast %109 : vector<1x64xf32> to vector<60x64xf32>
    %114 = arith.mulf %93, %113 : vector<60x64xf32>
    %115 = vector.broadcast %112 : vector<1x64xf32> to vector<60x64xf32>
    %116 = arith.addf %114, %115 : vector<60x64xf32>
    %cst_80 = arith.constant 0.000000e+00 : f32
    %117 = vector.broadcast %cst_80 : f32 to vector<60x64xf32>
    %118 = arith.maximumf %116, %117 : vector<60x64xf32>
    %119 = arith.truncf %118 : vector<60x64xf32> to vector<60x64xbf16>
    %cst_81 = arith.constant 0.000000e+00 : f32
    %120 = vector.broadcast %cst_81 : f32 to vector<12x128xf32>
    %c0_82 = arith.constant 0 : index
    %c0_83 = arith.constant 0 : index
    %c0_84 = arith.constant 0 : index
    %121 = vector.load %arg4[%c0_82, %c0_83, %c0_84] : memref<8x12x60xbf16, #tpu.memory_space<vmem>>, vector<1x12x60xbf16>
    %122 = vector.shape_cast %121 : vector<1x12x60xbf16> to vector<12x60xbf16>
    %cst_85 = arith.constant dense<0.000000e+00> : vector<12x64xf32>
    %123 = tpu.matmul %122, %119, %cst_85 {dimension_numbers = #tpu.dot_dimension_numbers<[1], [0], [0], [1], [0, 0, 1, 1], [], []>} : vector<12x60xbf16>, vector<60x64xbf16>, vector<12x64xf32> -> vector<12x64xf32>
    %124 = arith.truncf %123 : vector<12x64xf32> to vector<12x64xbf16>
    %c0_86 = arith.constant 0 : index
    %c0_87 = arith.constant 0 : index
    %c0_88 = arith.constant 0 : index
    %125 = vector.load %arg5[%c0_86, %c0_87, %c0_88] : memref<8x64x128xbf16, #tpu.memory_space<vmem>>, vector<1x64x128xbf16>
    %126 = vector.shape_cast %125 : vector<1x64x128xbf16> to vector<64x128xbf16>
    %cst_89 = arith.constant dense<0.000000e+00> : vector<12x128xf32>
    %127 = tpu.matmul %124, %126, %cst_89 {dimension_numbers = #tpu.dot_dimension_numbers<[1], [0], [0], [1], [0, 0, 1, 1], [], []>} : vector<12x64xbf16>, vector<64x128xbf16>, vector<12x128xf32> -> vector<12x128xf32>
    %128 = arith.addf %120, %127 : vector<12x128xf32>
    %c1_90 = arith.constant 1 : index
    %c0_91 = arith.constant 0 : index
    %c0_92 = arith.constant 0 : index
    %129 = vector.load %arg4[%c1_90, %c0_91, %c0_92] : memref<8x12x60xbf16, #tpu.memory_space<vmem>>, vector<1x12x60xbf16>
    %130 = vector.shape_cast %129 : vector<1x12x60xbf16> to vector<12x60xbf16>
    %cst_93 = arith.constant dense<0.000000e+00> : vector<12x64xf32>
    %131 = tpu.matmul %130, %119, %cst_93 {dimension_numbers = #tpu.dot_dimension_numbers<[1], [0], [0], [1], [0, 0, 1, 1], [], []>} : vector<12x60xbf16>, vector<60x64xbf16>, vector<12x64xf32> -> vector<12x64xf32>
    %132 = arith.truncf %131 : vector<12x64xf32> to vector<12x64xbf16>
    %c1_94 = arith.constant 1 : index
    %c0_95 = arith.constant 0 : index
    %c0_96 = arith.constant 0 : index
    %133 = vector.load %arg5[%c1_94, %c0_95, %c0_96] : memref<8x64x128xbf16, #tpu.memory_space<vmem>>, vector<1x64x128xbf16>
    %134 = vector.shape_cast %133 : vector<1x64x128xbf16> to vector<64x128xbf16>
    %cst_97 = arith.constant dense<0.000000e+00> : vector<12x128xf32>
    %135 = tpu.matmul %132, %134, %cst_97 {dimension_numbers = #tpu.dot_dimension_numbers<[1], [0], [0], [1], [0, 0, 1, 1], [], []>} : vector<12x64xbf16>, vector<64x128xbf16>, vector<12x128xf32> -> vector<12x128xf32>
    %136 = arith.addf %128, %135 : vector<12x128xf32>
    %c2_98 = arith.constant 2 : index
    %c0_99 = arith.constant 0 : index
    %c0_100 = arith.constant 0 : index
    %137 = vector.load %arg4[%c2_98, %c0_99, %c0_100] : memref<8x12x60xbf16, #tpu.memory_space<vmem>>, vector<1x12x60xbf16>
    %138 = vector.shape_cast %137 : vector<1x12x60xbf16> to vector<12x60xbf16>
    %cst_101 = arith.constant dense<0.000000e+00> : vector<12x64xf32>
    %139 = tpu.matmul %138, %119, %cst_101 {dimension_numbers = #tpu.dot_dimension_numbers<[1], [0], [0], [1], [0, 0, 1, 1], [], []>} : vector<12x60xbf16>, vector<60x64xbf16>, vector<12x64xf32> -> vector<12x64xf32>
    %140 = arith.truncf %139 : vector<12x64xf32> to vector<12x64xbf16>
    %c2_102 = arith.constant 2 : index
    %c0_103 = arith.constant 0 : index
    %c0_104 = arith.constant 0 : index
    %141 = vector.load %arg5[%c2_102, %c0_103, %c0_104] : memref<8x64x128xbf16, #tpu.memory_space<vmem>>, vector<1x64x128xbf16>
    %142 = vector.shape_cast %141 : vector<1x64x128xbf16> to vector<64x128xbf16>
    %cst_105 = arith.constant dense<0.000000e+00> : vector<12x128xf32>
    %143 = tpu.matmul %140, %142, %cst_105 {dimension_numbers = #tpu.dot_dimension_numbers<[1], [0], [0], [1], [0, 0, 1, 1], [], []>} : vector<12x64xbf16>, vector<64x128xbf16>, vector<12x128xf32> -> vector<12x128xf32>
    %144 = arith.addf %136, %143 : vector<12x128xf32>
    %c3_106 = arith.constant 3 : index
    %c0_107 = arith.constant 0 : index
    %c0_108 = arith.constant 0 : index
    %145 = vector.load %arg4[%c3_106, %c0_107, %c0_108] : memref<8x12x60xbf16, #tpu.memory_space<vmem>>, vector<1x12x60xbf16>
    %146 = vector.shape_cast %145 : vector<1x12x60xbf16> to vector<12x60xbf16>
    %cst_109 = arith.constant dense<0.000000e+00> : vector<12x64xf32>
    %147 = tpu.matmul %146, %119, %cst_109 {dimension_numbers = #tpu.dot_dimension_numbers<[1], [0], [0], [1], [0, 0, 1, 1], [], []>} : vector<12x60xbf16>, vector<60x64xbf16>, vector<12x64xf32> -> vector<12x64xf32>
    %148 = arith.truncf %147 : vector<12x64xf32> to vector<12x64xbf16>
    %c3_110 = arith.constant 3 : index
    %c0_111 = arith.constant 0 : index
    %c0_112 = arith.constant 0 : index
    %149 = vector.load %arg5[%c3_110, %c0_111, %c0_112] : memref<8x64x128xbf16, #tpu.memory_space<vmem>>, vector<1x64x128xbf16>
    %150 = vector.shape_cast %149 : vector<1x64x128xbf16> to vector<64x128xbf16>
    %cst_113 = arith.constant dense<0.000000e+00> : vector<12x128xf32>
    %151 = tpu.matmul %148, %150, %cst_113 {dimension_numbers = #tpu.dot_dimension_numbers<[1], [0], [0], [1], [0, 0, 1, 1], [], []>} : vector<12x64xbf16>, vector<64x128xbf16>, vector<12x128xf32> -> vector<12x128xf32>
    %152 = arith.addf %144, %151 : vector<12x128xf32>
    %c4_114 = arith.constant 4 : index
    %c0_115 = arith.constant 0 : index
    %c0_116 = arith.constant 0 : index
    %153 = vector.load %arg4[%c4_114, %c0_115, %c0_116] : memref<8x12x60xbf16, #tpu.memory_space<vmem>>, vector<1x12x60xbf16>
    %154 = vector.shape_cast %153 : vector<1x12x60xbf16> to vector<12x60xbf16>
    %cst_117 = arith.constant dense<0.000000e+00> : vector<12x64xf32>
    %155 = tpu.matmul %154, %119, %cst_117 {dimension_numbers = #tpu.dot_dimension_numbers<[1], [0], [0], [1], [0, 0, 1, 1], [], []>} : vector<12x60xbf16>, vector<60x64xbf16>, vector<12x64xf32> -> vector<12x64xf32>
    %156 = arith.truncf %155 : vector<12x64xf32> to vector<12x64xbf16>
    %c4_118 = arith.constant 4 : index
    %c0_119 = arith.constant 0 : index
    %c0_120 = arith.constant 0 : index
    %157 = vector.load %arg5[%c4_118, %c0_119, %c0_120] : memref<8x64x128xbf16, #tpu.memory_space<vmem>>, vector<1x64x128xbf16>
    %158 = vector.shape_cast %157 : vector<1x64x128xbf16> to vector<64x128xbf16>
    %cst_121 = arith.constant dense<0.000000e+00> : vector<12x128xf32>
    %159 = tpu.matmul %156, %158, %cst_121 {dimension_numbers = #tpu.dot_dimension_numbers<[1], [0], [0], [1], [0, 0, 1, 1], [], []>} : vector<12x64xbf16>, vector<64x128xbf16>, vector<12x128xf32> -> vector<12x128xf32>
    %160 = arith.addf %152, %159 : vector<12x128xf32>
    %c5_122 = arith.constant 5 : index
    %c0_123 = arith.constant 0 : index
    %c0_124 = arith.constant 0 : index
    %161 = vector.load %arg4[%c5_122, %c0_123, %c0_124] : memref<8x12x60xbf16, #tpu.memory_space<vmem>>, vector<1x12x60xbf16>
    %162 = vector.shape_cast %161 : vector<1x12x60xbf16> to vector<12x60xbf16>
    %cst_125 = arith.constant dense<0.000000e+00> : vector<12x64xf32>
    %163 = tpu.matmul %162, %119, %cst_125 {dimension_numbers = #tpu.dot_dimension_numbers<[1], [0], [0], [1], [0, 0, 1, 1], [], []>} : vector<12x60xbf16>, vector<60x64xbf16>, vector<12x64xf32> -> vector<12x64xf32>
    %164 = arith.truncf %163 : vector<12x64xf32> to vector<12x64xbf16>
    %c5_126 = arith.constant 5 : index
    %c0_127 = arith.constant 0 : index
    %c0_128 = arith.constant 0 : index
    %165 = vector.load %arg5[%c5_126, %c0_127, %c0_128] : memref<8x64x128xbf16, #tpu.memory_space<vmem>>, vector<1x64x128xbf16>
    %166 = vector.shape_cast %165 : vector<1x64x128xbf16> to vector<64x128xbf16>
    %cst_129 = arith.constant dense<0.000000e+00> : vector<12x128xf32>
    %167 = tpu.matmul %164, %166, %cst_129 {dimension_numbers = #tpu.dot_dimension_numbers<[1], [0], [0], [1], [0, 0, 1, 1], [], []>} : vector<12x64xbf16>, vector<64x128xbf16>, vector<12x128xf32> -> vector<12x128xf32>
    %168 = arith.addf %160, %167 : vector<12x128xf32>
    %c6_130 = arith.constant 6 : index
    %c0_131 = arith.constant 0 : index
    %c0_132 = arith.constant 0 : index
    %169 = vector.load %arg4[%c6_130, %c0_131, %c0_132] : memref<8x12x60xbf16, #tpu.memory_space<vmem>>, vector<1x12x60xbf16>
    %170 = vector.shape_cast %169 : vector<1x12x60xbf16> to vector<12x60xbf16>
    %cst_133 = arith.constant dense<0.000000e+00> : vector<12x64xf32>
    %171 = tpu.matmul %170, %119, %cst_133 {dimension_numbers = #tpu.dot_dimension_numbers<[1], [0], [0], [1], [0, 0, 1, 1], [], []>} : vector<12x60xbf16>, vector<60x64xbf16>, vector<12x64xf32> -> vector<12x64xf32>
    %172 = arith.truncf %171 : vector<12x64xf32> to vector<12x64xbf16>
    %c6_134 = arith.constant 6 : index
    %c0_135 = arith.constant 0 : index
    %c0_136 = arith.constant 0 : index
    %173 = vector.load %arg5[%c6_134, %c0_135, %c0_136] : memref<8x64x128xbf16, #tpu.memory_space<vmem>>, vector<1x64x128xbf16>
    %174 = vector.shape_cast %173 : vector<1x64x128xbf16> to vector<64x128xbf16>
    %cst_137 = arith.constant dense<0.000000e+00> : vector<12x128xf32>
    %175 = tpu.matmul %172, %174, %cst_137 {dimension_numbers = #tpu.dot_dimension_numbers<[1], [0], [0], [1], [0, 0, 1, 1], [], []>} : vector<12x64xbf16>, vector<64x128xbf16>, vector<12x128xf32> -> vector<12x128xf32>
    %176 = arith.addf %168, %175 : vector<12x128xf32>
    %c7_138 = arith.constant 7 : index
    %c0_139 = arith.constant 0 : index
    %c0_140 = arith.constant 0 : index
    %177 = vector.load %arg4[%c7_138, %c0_139, %c0_140] : memref<8x12x60xbf16, #tpu.memory_space<vmem>>, vector<1x12x60xbf16>
    %178 = vector.shape_cast %177 : vector<1x12x60xbf16> to vector<12x60xbf16>
    %cst_141 = arith.constant dense<0.000000e+00> : vector<12x64xf32>
    %179 = tpu.matmul %178, %119, %cst_141 {dimension_numbers = #tpu.dot_dimension_numbers<[1], [0], [0], [1], [0, 0, 1, 1], [], []>} : vector<12x60xbf16>, vector<60x64xbf16>, vector<12x64xf32> -> vector<12x64xf32>
    %180 = arith.truncf %179 : vector<12x64xf32> to vector<12x64xbf16>
    %c7_142 = arith.constant 7 : index
    %c0_143 = arith.constant 0 : index
    %c0_144 = arith.constant 0 : index
    %181 = vector.load %arg5[%c7_142, %c0_143, %c0_144] : memref<8x64x128xbf16, #tpu.memory_space<vmem>>, vector<1x64x128xbf16>
    %182 = vector.shape_cast %181 : vector<1x64x128xbf16> to vector<64x128xbf16>
    %cst_145 = arith.constant dense<0.000000e+00> : vector<12x128xf32>
    %183 = tpu.matmul %180, %182, %cst_145 {dimension_numbers = #tpu.dot_dimension_numbers<[1], [0], [0], [1], [0, 0, 1, 1], [], []>} : vector<12x64xbf16>, vector<64x128xbf16>, vector<12x128xf32> -> vector<12x128xf32>
    %184 = arith.addf %176, %183 : vector<12x128xf32>
    %cst_146 = arith.constant dense<0.000000e+00> : vector<128xf32>
    %185 = vector.multi_reduction <add>, %184, %cst_146 [0] : vector<12x128xf32> to vector<128xf32>
    %186 = vector.shape_cast %185 : vector<128xf32> to vector<1x128xf32>
    %187 = arith.mulf %184, %184 : vector<12x128xf32>
    %cst_147 = arith.constant dense<0.000000e+00> : vector<128xf32>
    %188 = vector.multi_reduction <add>, %187, %cst_147 [0] : vector<12x128xf32> to vector<128xf32>
    %189 = vector.shape_cast %188 : vector<128xf32> to vector<1x128xf32>
    %cst_148 = arith.constant 0.0833333358 : f32
    %190 = vector.broadcast %cst_148 : f32 to vector<1x128xf32>
    %191 = arith.mulf %186, %190 : vector<1x128xf32>
    %cst_149 = arith.constant 0.0833333358 : f32
    %192 = vector.broadcast %cst_149 : f32 to vector<1x128xf32>
    %193 = arith.mulf %189, %192 : vector<1x128xf32>
    %194 = arith.mulf %191, %191 : vector<1x128xf32>
    %195 = arith.subf %193, %194 : vector<1x128xf32>
    %c0_150 = arith.constant 0 : index
    %c0_151 = arith.constant 0 : index
    %196 = vector.load %arg13[%c0_150, %c0_151] : memref<2x128xf32, #tpu.memory_space<vmem>>, vector<1x128xf32>
    %cst_152 = arith.constant 9.99999974E-6 : f32
    %197 = vector.broadcast %cst_152 : f32 to vector<1x128xf32>
    %198 = arith.addf %195, %197 : vector<1x128xf32>
    %199 = math.rsqrt %198 : vector<1x128xf32>
    %200 = arith.mulf %196, %199 : vector<1x128xf32>
    %c1_153 = arith.constant 1 : index
    %c0_154 = arith.constant 0 : index
    %201 = vector.load %arg13[%c1_153, %c0_154] : memref<2x128xf32, #tpu.memory_space<vmem>>, vector<1x128xf32>
    %202 = arith.mulf %191, %200 : vector<1x128xf32>
    %203 = arith.subf %201, %202 : vector<1x128xf32>
    %204 = vector.broadcast %200 : vector<1x128xf32> to vector<12x128xf32>
    %205 = arith.mulf %184, %204 : vector<12x128xf32>
    %206 = vector.broadcast %203 : vector<1x128xf32> to vector<12x128xf32>
    %207 = arith.addf %205, %206 : vector<12x128xf32>
    %cst_155 = arith.constant 0.000000e+00 : f32
    %208 = vector.broadcast %cst_155 : f32 to vector<12x128xf32>
    %209 = arith.maximumf %207, %208 : vector<12x128xf32>
    %210 = arith.truncf %209 : vector<12x128xf32> to vector<12x128xbf16>
    %cst_156 = arith.constant 0.000000e+00 : f32
    %211 = vector.broadcast %cst_156 : f32 to vector<4x256xf32>
    %c0_157 = arith.constant 0 : index
    %c0_158 = arith.constant 0 : index
    %c0_159 = arith.constant 0 : index
    %212 = vector.load %arg6[%c0_157, %c0_158, %c0_159] : memref<4x4x12xbf16, #tpu.memory_space<vmem>>, vector<1x4x12xbf16>
    %213 = vector.shape_cast %212 : vector<1x4x12xbf16> to vector<4x12xbf16>
    %cst_160 = arith.constant dense<0.000000e+00> : vector<4x128xf32>
    %214 = tpu.matmul %213, %210, %cst_160 {dimension_numbers = #tpu.dot_dimension_numbers<[1], [0], [0], [1], [0, 0, 1, 1], [], []>} : vector<4x12xbf16>, vector<12x128xbf16>, vector<4x128xf32> -> vector<4x128xf32>
    %215 = arith.truncf %214 : vector<4x128xf32> to vector<4x128xbf16>
    %c0_161 = arith.constant 0 : index
    %c0_162 = arith.constant 0 : index
    %c0_163 = arith.constant 0 : index
    %216 = vector.load %arg7[%c0_161, %c0_162, %c0_163] : memref<4x128x256xbf16, #tpu.memory_space<vmem>>, vector<1x128x256xbf16>
    %217 = vector.shape_cast %216 : vector<1x128x256xbf16> to vector<128x256xbf16>
    %cst_164 = arith.constant dense<0.000000e+00> : vector<4x256xf32>
    %218 = tpu.matmul %215, %217, %cst_164 {dimension_numbers = #tpu.dot_dimension_numbers<[1], [0], [0], [1], [0, 0, 1, 1], [], []>} : vector<4x128xbf16>, vector<128x256xbf16>, vector<4x256xf32> -> vector<4x256xf32>
    %219 = arith.addf %211, %218 : vector<4x256xf32>
    %c1_165 = arith.constant 1 : index
    %c0_166 = arith.constant 0 : index
    %c0_167 = arith.constant 0 : index
    %220 = vector.load %arg6[%c1_165, %c0_166, %c0_167] : memref<4x4x12xbf16, #tpu.memory_space<vmem>>, vector<1x4x12xbf16>
    %221 = vector.shape_cast %220 : vector<1x4x12xbf16> to vector<4x12xbf16>
    %cst_168 = arith.constant dense<0.000000e+00> : vector<4x128xf32>
    %222 = tpu.matmul %221, %210, %cst_168 {dimension_numbers = #tpu.dot_dimension_numbers<[1], [0], [0], [1], [0, 0, 1, 1], [], []>} : vector<4x12xbf16>, vector<12x128xbf16>, vector<4x128xf32> -> vector<4x128xf32>
    %223 = arith.truncf %222 : vector<4x128xf32> to vector<4x128xbf16>
    %c1_169 = arith.constant 1 : index
    %c0_170 = arith.constant 0 : index
    %c0_171 = arith.constant 0 : index
    %224 = vector.load %arg7[%c1_169, %c0_170, %c0_171] : memref<4x128x256xbf16, #tpu.memory_space<vmem>>, vector<1x128x256xbf16>
    %225 = vector.shape_cast %224 : vector<1x128x256xbf16> to vector<128x256xbf16>
    %cst_172 = arith.constant dense<0.000000e+00> : vector<4x256xf32>
    %226 = tpu.matmul %223, %225, %cst_172 {dimension_numbers = #tpu.dot_dimension_numbers<[1], [0], [0], [1], [0, 0, 1, 1], [], []>} : vector<4x128xbf16>, vector<128x256xbf16>, vector<4x256xf32> -> vector<4x256xf32>
    %227 = arith.addf %219, %226 : vector<4x256xf32>
    %c2_173 = arith.constant 2 : index
    %c0_174 = arith.constant 0 : index
    %c0_175 = arith.constant 0 : index
    %228 = vector.load %arg6[%c2_173, %c0_174, %c0_175] : memref<4x4x12xbf16, #tpu.memory_space<vmem>>, vector<1x4x12xbf16>
    %229 = vector.shape_cast %228 : vector<1x4x12xbf16> to vector<4x12xbf16>
    %cst_176 = arith.constant dense<0.000000e+00> : vector<4x128xf32>
    %230 = tpu.matmul %229, %210, %cst_176 {dimension_numbers = #tpu.dot_dimension_numbers<[1], [0], [0], [1], [0, 0, 1, 1], [], []>} : vector<4x12xbf16>, vector<12x128xbf16>, vector<4x128xf32> -> vector<4x128xf32>
    %231 = arith.truncf %230 : vector<4x128xf32> to vector<4x128xbf16>
    %c2_177 = arith.constant 2 : index
    %c0_178 = arith.constant 0 : index
    %c0_179 = arith.constant 0 : index
    %232 = vector.load %arg7[%c2_177, %c0_178, %c0_179] : memref<4x128x256xbf16, #tpu.memory_space<vmem>>, vector<1x128x256xbf16>
    %233 = vector.shape_cast %232 : vector<1x128x256xbf16> to vector<128x256xbf16>
    %cst_180 = arith.constant dense<0.000000e+00> : vector<4x256xf32>
    %234 = tpu.matmul %231, %233, %cst_180 {dimension_numbers = #tpu.dot_dimension_numbers<[1], [0], [0], [1], [0, 0, 1, 1], [], []>} : vector<4x128xbf16>, vector<128x256xbf16>, vector<4x256xf32> -> vector<4x256xf32>
    %235 = arith.addf %227, %234 : vector<4x256xf32>
    %c3_181 = arith.constant 3 : index
    %c0_182 = arith.constant 0 : index
    %c0_183 = arith.constant 0 : index
    %236 = vector.load %arg6[%c3_181, %c0_182, %c0_183] : memref<4x4x12xbf16, #tpu.memory_space<vmem>>, vector<1x4x12xbf16>
    %237 = vector.shape_cast %236 : vector<1x4x12xbf16> to vector<4x12xbf16>
    %cst_184 = arith.constant dense<0.000000e+00> : vector<4x128xf32>
    %238 = tpu.matmul %237, %210, %cst_184 {dimension_numbers = #tpu.dot_dimension_numbers<[1], [0], [0], [1], [0, 0, 1, 1], [], []>} : vector<4x12xbf16>, vector<12x128xbf16>, vector<4x128xf32> -> vector<4x128xf32>
    %239 = arith.truncf %238 : vector<4x128xf32> to vector<4x128xbf16>
    %c3_185 = arith.constant 3 : index
    %c0_186 = arith.constant 0 : index
    %c0_187 = arith.constant 0 : index
    %240 = vector.load %arg7[%c3_185, %c0_186, %c0_187] : memref<4x128x256xbf16, #tpu.memory_space<vmem>>, vector<1x128x256xbf16>
    %241 = vector.shape_cast %240 : vector<1x128x256xbf16> to vector<128x256xbf16>
    %cst_188 = arith.constant dense<0.000000e+00> : vector<4x256xf32>
    %242 = tpu.matmul %239, %241, %cst_188 {dimension_numbers = #tpu.dot_dimension_numbers<[1], [0], [0], [1], [0, 0, 1, 1], [], []>} : vector<4x128xbf16>, vector<128x256xbf16>, vector<4x256xf32> -> vector<4x256xf32>
    %243 = arith.addf %235, %242 : vector<4x256xf32>
    %cst_189 = arith.constant dense<0.000000e+00> : vector<256xf32>
    %244 = vector.multi_reduction <add>, %243, %cst_189 [0] : vector<4x256xf32> to vector<256xf32>
    %245 = vector.shape_cast %244 : vector<256xf32> to vector<1x256xf32>
    %246 = arith.mulf %243, %243 : vector<4x256xf32>
    %cst_190 = arith.constant dense<0.000000e+00> : vector<256xf32>
    %247 = vector.multi_reduction <add>, %246, %cst_190 [0] : vector<4x256xf32> to vector<256xf32>
    %248 = vector.shape_cast %247 : vector<256xf32> to vector<1x256xf32>
    %cst_191 = arith.constant 2.500000e-01 : f32
    %249 = vector.broadcast %cst_191 : f32 to vector<1x256xf32>
    %250 = arith.mulf %245, %249 : vector<1x256xf32>
    %cst_192 = arith.constant 2.500000e-01 : f32
    %251 = vector.broadcast %cst_192 : f32 to vector<1x256xf32>
    %252 = arith.mulf %248, %251 : vector<1x256xf32>
    %253 = arith.mulf %250, %250 : vector<1x256xf32>
    %254 = arith.subf %252, %253 : vector<1x256xf32>
    %c0_193 = arith.constant 0 : index
    %c0_194 = arith.constant 0 : index
    %255 = vector.load %arg14[%c0_193, %c0_194] : memref<2x256xf32, #tpu.memory_space<vmem>>, vector<1x256xf32>
    %cst_195 = arith.constant 9.99999974E-6 : f32
    %256 = vector.broadcast %cst_195 : f32 to vector<1x256xf32>
    %257 = arith.addf %254, %256 : vector<1x256xf32>
    %258 = math.rsqrt %257 : vector<1x256xf32>
    %259 = arith.mulf %255, %258 : vector<1x256xf32>
    %c1_196 = arith.constant 1 : index
    %c0_197 = arith.constant 0 : index
    %260 = vector.load %arg14[%c1_196, %c0_197] : memref<2x256xf32, #tpu.memory_space<vmem>>, vector<1x256xf32>
    %261 = arith.mulf %250, %259 : vector<1x256xf32>
    %262 = arith.subf %260, %261 : vector<1x256xf32>
    %263 = vector.broadcast %259 : vector<1x256xf32> to vector<4x256xf32>
    %264 = arith.mulf %243, %263 : vector<4x256xf32>
    %265 = vector.broadcast %262 : vector<1x256xf32> to vector<4x256xf32>
    %266 = arith.addf %264, %265 : vector<4x256xf32>
    %cst_198 = arith.constant 0.000000e+00 : f32
    %267 = vector.broadcast %cst_198 : f32 to vector<4x256xf32>
    %268 = arith.maximumf %266, %267 : vector<4x256xf32>
    %269 = arith.truncf %268 : vector<4x256xf32> to vector<4x256xbf16>
    %270 = vector.extract_strided_slice %269 {offsets = [0, 0], sizes = [2, 256], strides = [1, 1]} : vector<4x256xbf16> to vector<2x256xbf16>
    %c0_199 = arith.constant 0 : index
    %c0_200 = arith.constant 0 : index
    %c0_201 = arith.constant 0 : index
    %271 = vector.load %arg8[%c0_199, %c0_200, %c0_201] : memref<8x256x64xbf16, #tpu.memory_space<vmem>>, vector<1x256x64xbf16>
    %272 = vector.shape_cast %271 : vector<1x256x64xbf16> to vector<256x64xbf16>
    %cst_202 = arith.constant dense<0.000000e+00> : vector<2x64xf32>
    %273 = tpu.matmul %270, %272, %cst_202 {dimension_numbers = #tpu.dot_dimension_numbers<[1], [0], [0], [1], [0, 0, 1, 1], [], []>} : vector<2x256xbf16>, vector<256x64xbf16>, vector<2x64xf32> -> vector<2x64xf32>
    %274 = vector.extract_strided_slice %269 {offsets = [0, 0], sizes = [2, 256], strides = [1, 1]} : vector<4x256xbf16> to vector<2x256xbf16>
    %c1_203 = arith.constant 1 : index
    %c0_204 = arith.constant 0 : index
    %c0_205 = arith.constant 0 : index
    %275 = vector.load %arg8[%c1_203, %c0_204, %c0_205] : memref<8x256x64xbf16, #tpu.memory_space<vmem>>, vector<1x256x64xbf16>
    %276 = vector.shape_cast %275 : vector<1x256x64xbf16> to vector<256x64xbf16>
    %cst_206 = arith.constant dense<0.000000e+00> : vector<2x64xf32>
    %277 = tpu.matmul %274, %276, %cst_206 {dimension_numbers = #tpu.dot_dimension_numbers<[1], [0], [0], [1], [0, 0, 1, 1], [], []>} : vector<2x256xbf16>, vector<256x64xbf16>, vector<2x64xf32> -> vector<2x64xf32>
    %278 = vector.extract_strided_slice %269 {offsets = [2, 0], sizes = [2, 256], strides = [1, 1]} : vector<4x256xbf16> to vector<2x256xbf16>
    %c2_207 = arith.constant 2 : index
    %c0_208 = arith.constant 0 : index
    %c0_209 = arith.constant 0 : index
    %279 = vector.load %arg8[%c2_207, %c0_208, %c0_209] : memref<8x256x64xbf16, #tpu.memory_space<vmem>>, vector<1x256x64xbf16>
    %280 = vector.shape_cast %279 : vector<1x256x64xbf16> to vector<256x64xbf16>
    %cst_210 = arith.constant dense<0.000000e+00> : vector<2x64xf32>
    %281 = tpu.matmul %278, %280, %cst_210 {dimension_numbers = #tpu.dot_dimension_numbers<[1], [0], [0], [1], [0, 0, 1, 1], [], []>} : vector<2x256xbf16>, vector<256x64xbf16>, vector<2x64xf32> -> vector<2x64xf32>
    %282 = arith.addf %277, %281 : vector<2x64xf32>
    %283 = vector.extract_strided_slice %269 {offsets = [0, 0], sizes = [2, 256], strides = [1, 1]} : vector<4x256xbf16> to vector<2x256xbf16>
    %c3_211 = arith.constant 3 : index
    %c0_212 = arith.constant 0 : index
    %c0_213 = arith.constant 0 : index
    %284 = vector.load %arg8[%c3_211, %c0_212, %c0_213] : memref<8x256x64xbf16, #tpu.memory_space<vmem>>, vector<1x256x64xbf16>
    %285 = vector.shape_cast %284 : vector<1x256x64xbf16> to vector<256x64xbf16>
    %cst_214 = arith.constant dense<0.000000e+00> : vector<2x64xf32>
    %286 = tpu.matmul %283, %285, %cst_214 {dimension_numbers = #tpu.dot_dimension_numbers<[1], [0], [0], [1], [0, 0, 1, 1], [], []>} : vector<2x256xbf16>, vector<256x64xbf16>, vector<2x64xf32> -> vector<2x64xf32>
    %287 = vector.extract_strided_slice %269 {offsets = [2, 0], sizes = [2, 256], strides = [1, 1]} : vector<4x256xbf16> to vector<2x256xbf16>
    %c4_215 = arith.constant 4 : index
    %c0_216 = arith.constant 0 : index
    %c0_217 = arith.constant 0 : index
    %288 = vector.load %arg8[%c4_215, %c0_216, %c0_217] : memref<8x256x64xbf16, #tpu.memory_space<vmem>>, vector<1x256x64xbf16>
    %289 = vector.shape_cast %288 : vector<1x256x64xbf16> to vector<256x64xbf16>
    %cst_218 = arith.constant dense<0.000000e+00> : vector<2x64xf32>
    %290 = tpu.matmul %287, %289, %cst_218 {dimension_numbers = #tpu.dot_dimension_numbers<[1], [0], [0], [1], [0, 0, 1, 1], [], []>} : vector<2x256xbf16>, vector<256x64xbf16>, vector<2x64xf32> -> vector<2x64xf32>
    %291 = arith.addf %286, %290 : vector<2x64xf32>
    %292 = vector.extract_strided_slice %269 {offsets = [0, 0], sizes = [2, 256], strides = [1, 1]} : vector<4x256xbf16> to vector<2x256xbf16>
    %c5_219 = arith.constant 5 : index
    %c0_220 = arith.constant 0 : index
    %c0_221 = arith.constant 0 : index
    %293 = vector.load %arg8[%c5_219, %c0_220, %c0_221] : memref<8x256x64xbf16, #tpu.memory_space<vmem>>, vector<1x256x64xbf16>
    %294 = vector.shape_cast %293 : vector<1x256x64xbf16> to vector<256x64xbf16>
    %cst_222 = arith.constant dense<0.000000e+00> : vector<2x64xf32>
    %295 = tpu.matmul %292, %294, %cst_222 {dimension_numbers = #tpu.dot_dimension_numbers<[1], [0], [0], [1], [0, 0, 1, 1], [], []>} : vector<2x256xbf16>, vector<256x64xbf16>, vector<2x64xf32> -> vector<2x64xf32>
    %296 = vector.extract_strided_slice %269 {offsets = [2, 0], sizes = [2, 256], strides = [1, 1]} : vector<4x256xbf16> to vector<2x256xbf16>
    %c6_223 = arith.constant 6 : index
    %c0_224 = arith.constant 0 : index
    %c0_225 = arith.constant 0 : index
    %297 = vector.load %arg8[%c6_223, %c0_224, %c0_225] : memref<8x256x64xbf16, #tpu.memory_space<vmem>>, vector<1x256x64xbf16>
    %298 = vector.shape_cast %297 : vector<1x256x64xbf16> to vector<256x64xbf16>
    %cst_226 = arith.constant dense<0.000000e+00> : vector<2x64xf32>
    %299 = tpu.matmul %296, %298, %cst_226 {dimension_numbers = #tpu.dot_dimension_numbers<[1], [0], [0], [1], [0, 0, 1, 1], [], []>} : vector<2x256xbf16>, vector<256x64xbf16>, vector<2x64xf32> -> vector<2x64xf32>
    %300 = arith.addf %295, %299 : vector<2x64xf32>
    %301 = vector.extract_strided_slice %269 {offsets = [2, 0], sizes = [2, 256], strides = [1, 1]} : vector<4x256xbf16> to vector<2x256xbf16>
    %c7_227 = arith.constant 7 : index
    %c0_228 = arith.constant 0 : index
    %c0_229 = arith.constant 0 : index
    %302 = vector.load %arg8[%c7_227, %c0_228, %c0_229] : memref<8x256x64xbf16, #tpu.memory_space<vmem>>, vector<1x256x64xbf16>
    %303 = vector.shape_cast %302 : vector<1x256x64xbf16> to vector<256x64xbf16>
    %cst_230 = arith.constant dense<0.000000e+00> : vector<2x64xf32>
    %304 = tpu.matmul %301, %303, %cst_230 {dimension_numbers = #tpu.dot_dimension_numbers<[1], [0], [0], [1], [0, 0, 1, 1], [], []>} : vector<2x256xbf16>, vector<256x64xbf16>, vector<2x64xf32> -> vector<2x64xf32>
    %cst_231 = arith.constant 0.000000e+00 : f32
    %305 = vector.broadcast %cst_231 : f32 to vector<1x64xf32>
    %cst_232 = arith.constant 0.000000e+00 : f32
    %306 = vector.broadcast %cst_232 : f32 to vector<1x64xf32>
    %cst_233 = arith.constant dense<0.000000e+00> : vector<64xf32>
    %307 = vector.multi_reduction <add>, %273, %cst_233 [0] : vector<2x64xf32> to vector<64xf32>
    %308 = vector.shape_cast %307 : vector<64xf32> to vector<1x64xf32>
    %cst_234 = arith.constant 2.900000e+01 : f32
    %309 = vector.broadcast %cst_234 : f32 to vector<1x64xf32>
    %310 = arith.mulf %309, %308 : vector<1x64xf32>
    %311 = arith.addf %305, %310 : vector<1x64xf32>
    %312 = arith.mulf %273, %273 : vector<2x64xf32>
    %cst_235 = arith.constant dense<0.000000e+00> : vector<64xf32>
    %313 = vector.multi_reduction <add>, %312, %cst_235 [0] : vector<2x64xf32> to vector<64xf32>
    %314 = vector.shape_cast %313 : vector<64xf32> to vector<1x64xf32>
    %cst_236 = arith.constant 2.900000e+01 : f32
    %315 = vector.broadcast %cst_236 : f32 to vector<1x64xf32>
    %316 = arith.mulf %315, %314 : vector<1x64xf32>
    %317 = arith.addf %306, %316 : vector<1x64xf32>
    %cst_237 = arith.constant dense<0.000000e+00> : vector<64xf32>
    %318 = vector.multi_reduction <add>, %282, %cst_237 [0] : vector<2x64xf32> to vector<64xf32>
    %319 = vector.shape_cast %318 : vector<64xf32> to vector<1x64xf32>
    %cst_238 = arith.constant 1.000000e+00 : f32
    %320 = vector.broadcast %cst_238 : f32 to vector<1x64xf32>
    %321 = arith.mulf %320, %319 : vector<1x64xf32>
    %322 = arith.addf %311, %321 : vector<1x64xf32>
    %323 = arith.mulf %282, %282 : vector<2x64xf32>
    %cst_239 = arith.constant dense<0.000000e+00> : vector<64xf32>
    %324 = vector.multi_reduction <add>, %323, %cst_239 [0] : vector<2x64xf32> to vector<64xf32>
    %325 = vector.shape_cast %324 : vector<64xf32> to vector<1x64xf32>
    %cst_240 = arith.constant 1.000000e+00 : f32
    %326 = vector.broadcast %cst_240 : f32 to vector<1x64xf32>
    %327 = arith.mulf %326, %325 : vector<1x64xf32>
    %328 = arith.addf %317, %327 : vector<1x64xf32>
    %cst_241 = arith.constant dense<0.000000e+00> : vector<64xf32>
    %329 = vector.multi_reduction <add>, %291, %cst_241 [0] : vector<2x64xf32> to vector<64xf32>
    %330 = vector.shape_cast %329 : vector<64xf32> to vector<1x64xf32>
    %cst_242 = arith.constant 1.000000e+00 : f32
    %331 = vector.broadcast %cst_242 : f32 to vector<1x64xf32>
    %332 = arith.mulf %331, %330 : vector<1x64xf32>
    %333 = arith.addf %322, %332 : vector<1x64xf32>
    %334 = arith.mulf %291, %291 : vector<2x64xf32>
    %cst_243 = arith.constant dense<0.000000e+00> : vector<64xf32>
    %335 = vector.multi_reduction <add>, %334, %cst_243 [0] : vector<2x64xf32> to vector<64xf32>
    %336 = vector.shape_cast %335 : vector<64xf32> to vector<1x64xf32>
    %cst_244 = arith.constant 1.000000e+00 : f32
    %337 = vector.broadcast %cst_244 : f32 to vector<1x64xf32>
    %338 = arith.mulf %337, %336 : vector<1x64xf32>
    %339 = arith.addf %328, %338 : vector<1x64xf32>
    %cst_245 = arith.constant dense<0.000000e+00> : vector<64xf32>
    %340 = vector.multi_reduction <add>, %300, %cst_245 [0] : vector<2x64xf32> to vector<64xf32>
    %341 = vector.shape_cast %340 : vector<64xf32> to vector<1x64xf32>
    %cst_246 = arith.constant 1.000000e+00 : f32
    %342 = vector.broadcast %cst_246 : f32 to vector<1x64xf32>
    %343 = arith.mulf %342, %341 : vector<1x64xf32>
    %344 = arith.addf %333, %343 : vector<1x64xf32>
    %345 = arith.mulf %300, %300 : vector<2x64xf32>
    %cst_247 = arith.constant dense<0.000000e+00> : vector<64xf32>
    %346 = vector.multi_reduction <add>, %345, %cst_247 [0] : vector<2x64xf32> to vector<64xf32>
    %347 = vector.shape_cast %346 : vector<64xf32> to vector<1x64xf32>
    %cst_248 = arith.constant 1.000000e+00 : f32
    %348 = vector.broadcast %cst_248 : f32 to vector<1x64xf32>
    %349 = arith.mulf %348, %347 : vector<1x64xf32>
    %350 = arith.addf %339, %349 : vector<1x64xf32>
    %cst_249 = arith.constant dense<0.000000e+00> : vector<64xf32>
    %351 = vector.multi_reduction <add>, %304, %cst_249 [0] : vector<2x64xf32> to vector<64xf32>
    %352 = vector.shape_cast %351 : vector<64xf32> to vector<1x64xf32>
    %cst_250 = arith.constant 2.900000e+01 : f32
    %353 = vector.broadcast %cst_250 : f32 to vector<1x64xf32>
    %354 = arith.mulf %353, %352 : vector<1x64xf32>
    %355 = arith.addf %344, %354 : vector<1x64xf32>
    %356 = arith.mulf %304, %304 : vector<2x64xf32>
    %cst_251 = arith.constant dense<0.000000e+00> : vector<64xf32>
    %357 = vector.multi_reduction <add>, %356, %cst_251 [0] : vector<2x64xf32> to vector<64xf32>
    %358 = vector.shape_cast %357 : vector<64xf32> to vector<1x64xf32>
    %cst_252 = arith.constant 2.900000e+01 : f32
    %359 = vector.broadcast %cst_252 : f32 to vector<1x64xf32>
    %360 = arith.mulf %359, %358 : vector<1x64xf32>
    %361 = arith.addf %350, %360 : vector<1x64xf32>
    %cst_253 = arith.constant 0.00819672085 : f32
    %362 = vector.broadcast %cst_253 : f32 to vector<1x64xf32>
    %363 = arith.mulf %355, %362 : vector<1x64xf32>
    %cst_254 = arith.constant 0.00819672085 : f32
    %364 = vector.broadcast %cst_254 : f32 to vector<1x64xf32>
    %365 = arith.mulf %361, %364 : vector<1x64xf32>
    %366 = arith.mulf %363, %363 : vector<1x64xf32>
    %367 = arith.subf %365, %366 : vector<1x64xf32>
    %c0_255 = arith.constant 0 : index
    %c0_256 = arith.constant 0 : index
    %368 = vector.load %arg15[%c0_255, %c0_256] : memref<2x64xf32, #tpu.memory_space<vmem>>, vector<1x64xf32>
    %cst_257 = arith.constant 9.99999974E-6 : f32
    %369 = vector.broadcast %cst_257 : f32 to vector<1x64xf32>
    %370 = arith.addf %367, %369 : vector<1x64xf32>
    %371 = math.rsqrt %370 : vector<1x64xf32>
    %372 = arith.mulf %368, %371 : vector<1x64xf32>
    %c1_258 = arith.constant 1 : index
    %c0_259 = arith.constant 0 : index
    %373 = vector.load %arg15[%c1_258, %c0_259] : memref<2x64xf32, #tpu.memory_space<vmem>>, vector<1x64xf32>
    %374 = arith.mulf %363, %372 : vector<1x64xf32>
    %375 = arith.subf %373, %374 : vector<1x64xf32>
    %cst_260 = arith.constant 0.000000e+00 : f32
    %376 = vector.broadcast %cst_260 : f32 to vector<2x128xf32>
    %377 = vector.broadcast %372 : vector<1x64xf32> to vector<2x64xf32>
    %378 = arith.mulf %273, %377 : vector<2x64xf32>
    %379 = vector.broadcast %375 : vector<1x64xf32> to vector<2x64xf32>
    %380 = arith.addf %378, %379 : vector<2x64xf32>
    %381 = arith.truncf %380 : vector<2x64xf32> to vector<2x64xbf16>
    %c0_261 = arith.constant 0 : index
    %c0_262 = arith.constant 0 : index
    %c0_263 = arith.constant 0 : index
    %382 = vector.load %arg9[%c0_261, %c0_262, %c0_263] : memref<5x64x128xbf16, #tpu.memory_space<vmem>>, vector<1x64x128xbf16>
    %383 = vector.shape_cast %382 : vector<1x64x128xbf16> to vector<64x128xbf16>
    %cst_264 = arith.constant dense<0.000000e+00> : vector<2x128xf32>
    %384 = tpu.matmul %381, %383, %cst_264 {dimension_numbers = #tpu.dot_dimension_numbers<[1], [0], [0], [1], [0, 0, 1, 1], [], []>} : vector<2x64xbf16>, vector<64x128xbf16>, vector<2x128xf32> -> vector<2x128xf32>
    %385 = arith.addf %376, %384 : vector<2x128xf32>
    %386 = vector.broadcast %372 : vector<1x64xf32> to vector<2x64xf32>
    %387 = arith.mulf %282, %386 : vector<2x64xf32>
    %388 = vector.broadcast %375 : vector<1x64xf32> to vector<2x64xf32>
    %389 = arith.addf %387, %388 : vector<2x64xf32>
    %390 = arith.truncf %389 : vector<2x64xf32> to vector<2x64xbf16>
    %c1_265 = arith.constant 1 : index
    %c0_266 = arith.constant 0 : index
    %c0_267 = arith.constant 0 : index
    %391 = vector.load %arg9[%c1_265, %c0_266, %c0_267] : memref<5x64x128xbf16, #tpu.memory_space<vmem>>, vector<1x64x128xbf16>
    %392 = vector.shape_cast %391 : vector<1x64x128xbf16> to vector<64x128xbf16>
    %cst_268 = arith.constant dense<0.000000e+00> : vector<2x128xf32>
    %393 = tpu.matmul %390, %392, %cst_268 {dimension_numbers = #tpu.dot_dimension_numbers<[1], [0], [0], [1], [0, 0, 1, 1], [], []>} : vector<2x64xbf16>, vector<64x128xbf16>, vector<2x128xf32> -> vector<2x128xf32>
    %394 = arith.addf %385, %393 : vector<2x128xf32>
    %395 = vector.broadcast %372 : vector<1x64xf32> to vector<2x64xf32>
    %396 = arith.mulf %291, %395 : vector<2x64xf32>
    %397 = vector.broadcast %375 : vector<1x64xf32> to vector<2x64xf32>
    %398 = arith.addf %396, %397 : vector<2x64xf32>
    %399 = arith.truncf %398 : vector<2x64xf32> to vector<2x64xbf16>
    %c2_269 = arith.constant 2 : index
    %c0_270 = arith.constant 0 : index
    %c0_271 = arith.constant 0 : index
    %400 = vector.load %arg9[%c2_269, %c0_270, %c0_271] : memref<5x64x128xbf16, #tpu.memory_space<vmem>>, vector<1x64x128xbf16>
    %401 = vector.shape_cast %400 : vector<1x64x128xbf16> to vector<64x128xbf16>
    %cst_272 = arith.constant dense<0.000000e+00> : vector<2x128xf32>
    %402 = tpu.matmul %399, %401, %cst_272 {dimension_numbers = #tpu.dot_dimension_numbers<[1], [0], [0], [1], [0, 0, 1, 1], [], []>} : vector<2x64xbf16>, vector<64x128xbf16>, vector<2x128xf32> -> vector<2x128xf32>
    %403 = arith.addf %394, %402 : vector<2x128xf32>
    %404 = vector.broadcast %372 : vector<1x64xf32> to vector<2x64xf32>
    %405 = arith.mulf %300, %404 : vector<2x64xf32>
    %406 = vector.broadcast %375 : vector<1x64xf32> to vector<2x64xf32>
    %407 = arith.addf %405, %406 : vector<2x64xf32>
    %408 = arith.truncf %407 : vector<2x64xf32> to vector<2x64xbf16>
    %c3_273 = arith.constant 3 : index
    %c0_274 = arith.constant 0 : index
    %c0_275 = arith.constant 0 : index
    %409 = vector.load %arg9[%c3_273, %c0_274, %c0_275] : memref<5x64x128xbf16, #tpu.memory_space<vmem>>, vector<1x64x128xbf16>
    %410 = vector.shape_cast %409 : vector<1x64x128xbf16> to vector<64x128xbf16>
    %cst_276 = arith.constant dense<0.000000e+00> : vector<2x128xf32>
    %411 = tpu.matmul %408, %410, %cst_276 {dimension_numbers = #tpu.dot_dimension_numbers<[1], [0], [0], [1], [0, 0, 1, 1], [], []>} : vector<2x64xbf16>, vector<64x128xbf16>, vector<2x128xf32> -> vector<2x128xf32>
    %412 = arith.addf %403, %411 : vector<2x128xf32>
    %413 = vector.broadcast %372 : vector<1x64xf32> to vector<2x64xf32>
    %414 = arith.mulf %304, %413 : vector<2x64xf32>
    %415 = vector.broadcast %375 : vector<1x64xf32> to vector<2x64xf32>
    %416 = arith.addf %414, %415 : vector<2x64xf32>
    %417 = arith.truncf %416 : vector<2x64xf32> to vector<2x64xbf16>
    %c4_277 = arith.constant 4 : index
    %c0_278 = arith.constant 0 : index
    %c0_279 = arith.constant 0 : index
    %418 = vector.load %arg9[%c4_277, %c0_278, %c0_279] : memref<5x64x128xbf16, #tpu.memory_space<vmem>>, vector<1x64x128xbf16>
    %419 = vector.shape_cast %418 : vector<1x64x128xbf16> to vector<64x128xbf16>
    %cst_280 = arith.constant dense<0.000000e+00> : vector<2x128xf32>
    %420 = tpu.matmul %417, %419, %cst_280 {dimension_numbers = #tpu.dot_dimension_numbers<[1], [0], [0], [1], [0, 0, 1, 1], [], []>} : vector<2x64xbf16>, vector<64x128xbf16>, vector<2x128xf32> -> vector<2x128xf32>
    %421 = arith.addf %412, %420 : vector<2x128xf32>
    %c0_281 = arith.constant 0 : index
    %c0_282 = arith.constant 0 : index
    %422 = vector.load %arg10[%c0_281, %c0_282] : memref<1x128xf32, #tpu.memory_space<vmem>>, vector<1x128xf32>
    %423 = vector.broadcast %422 : vector<1x128xf32> to vector<2x128xf32>
    %424 = arith.addf %421, %423 : vector<2x128xf32>
    %c0_283 = arith.constant 0 : index
    %c0_284 = arith.constant 0 : index
    %425 = vector.load %arg16[%c0_283, %c0_284] : memref<2x128xf32, #tpu.memory_space<vmem>>, vector<2x128xf32>
    tpu.vector_store %arg16[%c0_283, %c0_284], %424 {strides = array<i32>} : memref<2x128xf32, #tpu.memory_space<vmem>>, vector<2x128xf32>,
    return
  }
}

</mosaic_0001>

<llo_original>
// kernel: segtempnet_forward.1
$region0: #{segtempnet_forward.1}
  #allocation0 [shape = 'u32[]', space=smem, size = 0x4, offset = 0x4, fixed_abs, tag = 'smem constant byte address 0x4 - core index']
  #allocation1 [shape = 'u32[72,128]{1,0:T(1,128)}', space=vmem, size = 0x9000, scoped, tag = 'internal scratch']
  %s0 = inlined_call_operand.vmem [shape: bf16[254,16], index: 0, kind: input, shape index: {}]
  %s1 = inlined_call_operand.vmem [shape: bf16[16,32], index: 1, kind: input, shape index: {}]
  %s2 = inlined_call_operand.vmem [shape: bf16[8,60,254], index: 2, kind: input, shape index: {}]
  %s3 = inlined_call_operand.vmem [shape: bf16[8,32,64], index: 3, kind: input, shape index: {}]
  %s4 = inlined_call_operand.vmem [shape: bf16[8,12,60], index: 4, kind: input, shape index: {}]
  %s5 = inlined_call_operand.vmem [shape: bf16[8,64,128], index: 5, kind: input, shape index: {}]
  %s6 = inlined_call_operand.vmem [shape: bf16[4,4,12], index: 6, kind: input, shape index: {}]
  %s7 = inlined_call_operand.vmem [shape: bf16[4,128,256], index: 7, kind: input, shape index: {}]
  %s8 = inlined_call_operand.vmem [shape: bf16[8,256,64], index: 8, kind: input, shape index: {}]
  %s9 = inlined_call_operand.vmem [shape: bf16[5,64,128], index: 9, kind: input, shape index: {}]
  %s10 = inlined_call_operand.vmem [shape: f32[1,128], index: 10, kind: input, shape index: {}]
  %s11 = inlined_call_operand.vmem [shape: f32[2,32], index: 11, kind: input, shape index: {}]
  %s12 = inlined_call_operand.vmem [shape: f32[2,64], index: 12, kind: input, shape index: {}]
  %s13 = inlined_call_operand.vmem [shape: f32[2,128], index: 13, kind: input, shape index: {}]
  %s14 = inlined_call_operand.vmem [shape: f32[2,256], index: 14, kind: input, shape index: {}]
  %s15 = inlined_call_operand.vmem [shape: f32[2,64], index: 15, kind: input, shape index: {}]
  %s16 = inlined_call_operand.hbm [shape: f32[2,128], index: 16, kind: output, shape index: {}]
  %s17 = sld [smem:[#allocation0]]
  $region74: #{segtempnet_forward.1} parent=0
    _
  %s19 = ssub.s32 1, %s17
  %s20 = scalar_select 0, %s19, %s17
  $region1: #{segtempnet_forward.1} parent=0
    #allocation2 [shape = 'u8[1024]{0}', space=vmem, size = 0x400, scoped, tag = 'output window, operand 0, single buffered']
    #allocation3 [shape = 's32[1]{0}', space=sflag, size = 0x4, scoped, tag = 'scoped memory for segtempnet_forward.1']
    %21 = vsyncpa [#allocation3], 0
    // Predicated region
    $region2: #{segtempnet_forward.1} parent=1 // pred_check
      _
    $region3: #{segtempnet_forward.1} parent=1 // pred_check_branch
      %23 = sbr.rel (0) target = $region5
    $region4: #{segtempnet_forward.1} parent=1 // pred_region
      _
    $region5: #{segtempnet_forward.1} parent=1 // pred_fallthru
      _
    // Predicated region
    $region6: #{segtempnet_forward.1} parent=1 // pred_check
      _
    $region7: #{segtempnet_forward.1} parent=1 // pred_check_branch
      %25 = sbr.rel (0) target = $region9
    $region8: #{segtempnet_forward.1} parent=1 // pred_region
      _
    $region9: #{segtempnet_forward.1} parent=1 // pred_fallthru
      _
    // Predicated region
    $region10: #{segtempnet_forward.1} parent=1 // pred_check
      _
    $region11: #{segtempnet_forward.1} parent=1 // pred_check_branch
      %27 = sbr.rel (0) target = $region13
    $region12: #{segtempnet_forward.1} parent=1 // pred_region
      _
    $region13: #{segtempnet_forward.1} parent=1 // pred_fallthru
      _
    // Predicated region
    $region14: #{segtempnet_forward.1} parent=1 // pred_check
      _
    $region15: #{segtempnet_forward.1} parent=1 // pred_check_branch
      %29 = sbr.rel (0) target = $region17
    $region16: #{segtempnet_forward.1} parent=1 // pred_region
      _
    $region17: #{segtempnet_forward.1} parent=1 // pred_fallthru
      _
    // Predicated region
    $region18: #{segtempnet_forward.1} parent=1 // pred_check
      _
    $region19: #{segtempnet_forward.1} parent=1 // pred_check_branch
      %31 = sbr.rel (0) target = $region21
    $region20: #{segtempnet_forward.1} parent=1 // pred_region
      _
    $region21: #{segtempnet_forward.1} parent=1 // pred_fallthru
      _
    // Predicated region
    $region22: #{segtempnet_forward.1} parent=1 // pred_check
      _
    $region23: #{segtempnet_forward.1} parent=1 // pred_check_branch
      %33 = sbr.rel (0) target = $region25
    $region24: #{segtempnet_forward.1} parent=1 // pred_region
      _
    $region25: #{segtempnet_forward.1} parent=1 // pred_fallthru
      _
    // Predicated region
    $region26: #{segtempnet_forward.1} parent=1 // pred_check
      _
    $region27: #{segtempnet_forward.1} parent=1 // pred_check_branch
      %35 = sbr.rel (0) target = $region29
    $region28: #{segtempnet_forward.1} parent=1 // pred_region
      _
    $region29: #{segtempnet_forward.1} parent=1 // pred_fallthru
      _
    // Predicated region
    $region30: #{segtempnet_forward.1} parent=1 // pred_check
      _
    $region31: #{segtempnet_forward.1} parent=1 // pred_check_branch
      %37 = sbr.rel (0) target = $region33
    $region32: #{segtempnet_forward.1} parent=1 // pred_region
      _
    $region33: #{segtempnet_forward.1} parent=1 // pred_fallthru
      _
    // Predicated region
    $region34: #{segtempnet_forward.1} parent=1 // pred_check
      _
    $region35: #{segtempnet_forward.1} parent=1 // pred_check_branch
      %39 = sbr.rel (0) target = $region37
    $region36: #{segtempnet_forward.1} parent=1 // pred_region
      _
    $region37: #{segtempnet_forward.1} parent=1 // pred_fallthru
      _
    // Predicated region
    $region38: #{segtempnet_forward.1} parent=1 // pred_check
      _
    $region39: #{segtempnet_forward.1} parent=1 // pred_check_branch
      %41 = sbr.rel (0) target = $region41
    $region40: #{segtempnet_forward.1} parent=1 // pred_region
      _
    $region41: #{segtempnet_forward.1} parent=1 // pred_fallthru
      _
    // Predicated region
    $region42: #{segtempnet_forward.1} parent=1 // pred_check
      _
    $region43: #{segtempnet_forward.1} parent=1 // pred_check_branch
      %43 = sbr.rel (0) target = $region45
    $region44: #{segtempnet_forward.1} parent=1 // pred_region
      _
    $region45: #{segtempnet_forward.1} parent=1 // pred_fallthru
      _
    // Predicated region
    $region46: #{segtempnet_forward.1} parent=1 // pred_check
      _
    $region47: #{segtempnet_forward.1} parent=1 // pred_check_branch
      %45 = sbr.rel (0) target = $region49
    $region48: #{segtempnet_forward.1} parent=1 // pred_region
      _
    $region49: #{segtempnet_forward.1} parent=1 // pred_fallthru
      _
    // Predicated region
    $region50: #{segtempnet_forward.1} parent=1 // pred_check
      _
    $region51: #{segtempnet_forward.1} parent=1 // pred_check_branch
      %47 = sbr.rel (0) target = $region53
    $region52: #{segtempnet_forward.1} parent=1 // pred_region
      _
    $region53: #{segtempnet_forward.1} parent=1 // pred_fallthru
      _
    // Predicated region
    $region54: #{segtempnet_forward.1} parent=1 // pred_check
      _
    $region55: #{segtempnet_forward.1} parent=1 // pred_check_branch
      %49 = sbr.rel (0) target = $region57
    $region56: #{segtempnet_forward.1} parent=1 // pred_region
      _
    $region57: #{segtempnet_forward.1} parent=1 // pred_fallthru
      _
    // Predicated region
    $region58: #{segtempnet_forward.1} parent=1 // pred_check
      _
    $region59: #{segtempnet_forward.1} parent=1 // pred_check_branch
      %51 = sbr.rel (0) target = $region61
    $region60: #{segtempnet_forward.1} parent=1 // pred_region
      _
    $region61: #{segtempnet_forward.1} parent=1 // pred_fallthru
      _
    // Predicated region
    $region62: #{segtempnet_forward.1} parent=1 // pred_check
      _
    $region63: #{segtempnet_forward.1} parent=1 // pred_check_branch
      %53 = sbr.rel (0) target = $region65
    $region64: #{segtempnet_forward.1} parent=1 // pred_region
      _
    $region65: #{segtempnet_forward.1} parent=1 // pred_fallthru
      _
    %v55 = vld [vmem:[%s0] sm:$0xf]
    %v56 = vld [vmem:[%s0 + $0x4] sm:$0xf]
    %v57 = vld [vmem:[%s0 + $0x8] sm:$0xf]
    %v58 = vld [vmem:[%s0 + $0xc] sm:$0xf]
    %v59 = vld [vmem:[%s0 + $0x10] sm:$0xf]
    %v60 = vld [vmem:[%s0 + $0x14] sm:$0xf]
    %v61 = vld [vmem:[%s0 + $0x18] sm:$0xf]
    %v62 = vld [vmem:[%s0 + $0x1c] sm:$0xf]
    %v63 = vld [vmem:[%s0 + $0x20] sm:$0xf]
    %v64 = vld [vmem:[%s0 + $0x24] sm:$0xf]
    %v65 = vld [vmem:[%s0 + $0x28] sm:$0xf]
    %v66 = vld [vmem:[%s0 + $0x2c] sm:$0xf]
    %v67 = vld [vmem:[%s0 + $0x30] sm:$0xf]
    %v68 = vld [vmem:[%s0 + $0x34] sm:$0xf]
    %v69 = vld [vmem:[%s0 + $0x38] sm:$0xf]
    %v70 = vld [vmem:[%s0 + $0x3c] sm:$0xf]
    %v71 = vld [vmem:[%s0 + $0x40] sm:$0xf]
    %v72 = vld [vmem:[%s0 + $0x44] sm:$0xf]
    %v73 = vld [vmem:[%s0 + $0x48] sm:$0xf]
    %v74 = vld [vmem:[%s0 + $0x4c] sm:$0xf]
    %v75 = vld [vmem:[%s0 + $0x50] sm:$0xf]
    %v76 = vld [vmem:[%s0 + $0x54] sm:$0xf]
    %v77 = vld [vmem:[%s0 + $0x58] sm:$0xf]
    %v78 = vld [vmem:[%s0 + $0x5c] sm:$0xf]
    %v79 = vld [vmem:[%s0 + $0x60] sm:$0xf]
    %v80 = vld [vmem:[%s0 + $0x64] sm:$0xf]
    %v81 = vld [vmem:[%s0 + $0x68] sm:$0xf]
    %v82 = vld [vmem:[%s0 + $0x6c] sm:$0xf]
    %v83 = vld [vmem:[%s0 + $0x70] sm:$0xf]
    %v84 = vld [vmem:[%s0 + $0x74] sm:$0xf]
    %v85 = vld [vmem:[%s0 + $0x78] sm:$0xf]
    %v86 = vld [vmem:[%s0 + $0x7c] sm:$0x7]
    %v87 = vld [vmem:[%s1] sm:$0xf]
    %v88 = vld [vmem:[%s1 + $0x4] sm:$0xf]
    %v121 = vunpack.c.l.b16 %v55
    %v122 = vunpack.c.l.b16 %v56
    %v123 = vunpack.c.l.b16 %v57
    %v124 = vunpack.c.l.b16 %v58
    %v125 = vunpack.c.l.b16 %v59
    %v126 = vunpack.c.l.b16 %v60
    %v127 = vunpack.c.l.b16 %v61
    %v128 = vunpack.c.l.b16 %v62
    %v129 = vunpack.c.l.b16 %v63
    %v130 = vunpack.c.l.b16 %v64
    %v131 = vunpack.c.l.b16 %v65
    %v132 = vunpack.c.l.b16 %v66
    %v133 = vunpack.c.l.b16 %v67
    %v134 = vunpack.c.l.b16 %v68
    %v135 = vunpack.c.l.b16 %v69
    %v136 = vunpack.c.l.b16 %v70
    %v137 = vunpack.c.l.b16 %v71
    %v138 = vunpack.c.l.b16 %v72
    %v139 = vunpack.c.l.b16 %v73
    %v140 = vunpack.c.l.b16 %v74
    %v141 = vunpack.c.l.b16 %v75
    %v142 = vunpack.c.l.b16 %v76
    %v143 = vunpack.c.l.b16 %v77
    %v144 = vunpack.c.l.b16 %v78
    %v145 = vunpack.c.l.b16 %v79
    %v146 = vunpack.c.l.b16 %v80
    %v147 = vunpack.c.l.b16 %v81
    %v148 = vunpack.c.l.b16 %v82
    %v149 = vunpack.c.l.b16 %v83
    %v150 = vunpack.c.l.b16 %v84
    %v151 = vunpack.c.l.b16 %v85
    %v152 = vunpack.c.l.b16 %v86
    %v153 = vpack.c.b16 %v122, %v121
    %v154 = vpack.c.b16 %v124, %v123
    %v155 = vpack.c.b16 %v126, %v125
    %v156 = vpack.c.b16 %v128, %v127
    %v157 = vpack.c.b16 %v130, %v129
    %v158 = vpack.c.b16 %v132, %v131
    %v159 = vpack.c.b16 %v134, %v133
    %v160 = vpack.c.b16 %v136, %v135
    %v161 = vpack.c.b16 %v138, %v137
    %v162 = vpack.c.b16 %v140, %v139
    %v163 = vpack.c.b16 %v142, %v141
    %v164 = vpack.c.b16 %v144, %v143
    %v165 = vpack.c.b16 %v146, %v145
    %v166 = vpack.c.b16 %v148, %v147
    %v167 = vpack.c.b16 %v150, %v149
    %v168 = vpack.c.b16 %v152, %v151
    %v171 = vunpack.c.l.b16 %v87
    %v172 = vunpack.c.l.b16 %v88
    %v173 = vpack.c.b16 %v172, %v171
    %vm175 = vcmask 130048
    %v177 = vsel %vm175, %v153, 0
    %v180 = vsel %vm175, %v154, 0
    %v183 = vsel %vm175, %v155, 0
    %v186 = vsel %vm175, %v156, 0
    %v189 = vsel %vm175, %v157, 0
    %v192 = vsel %vm175, %v158, 0
    %v195 = vsel %vm175, %v159, 0
    %v198 = vsel %vm175, %v160, 0
    %v201 = vsel %vm175, %v161, 0
    %v204 = vsel %vm175, %v162, 0
    %v207 = vsel %vm175, %v163, 0
    %v210 = vsel %vm175, %v164, 0
    %v213 = vsel %vm175, %v165, 0
    %v216 = vsel %vm175, %v166, 0
    %v219 = vsel %vm175, %v167, 0
    %v222 = vsel %vm175, %v168, 0
    %224 = vmatpush.bf16.msra.mxu0 0
    %225 = vmatpush.bf16.msra.mxu0 0
    %226 = vmatpush.bf16.msra.mxu0 0
    %227 = vmatpush.bf16.msra.mxu0 0
    %228 = vmatpush.bf16.msra.mxu0 0
    %229 = vmatpush.bf16.msra.mxu0 0
    %230 = vmatpush.bf16.msra.mxu0 0
    %231 = vmatpush.bf16.msra.mxu0 %v173
    %232 = vmatmul.bf16.gmra.mxu0 %v177
    %v233 = vpop.f32.mrf.mxu0
    %v234 = vadd.f32 0.0, %v233
    %v235 = vpop.f32.mrf.mxu0
    %v236 = vadd.f32 0.0, %v235
    %237 = vmatmul.bf16.gmra.mxu0 %v180
    %v238 = vpop.f32.mrf.mxu0
    %v239 = vadd.f32 0.0, %v238
    %v240 = vpop.f32.mrf.mxu0
    %v241 = vadd.f32 0.0, %v240
    %242 = vmatmul.bf16.gmra.mxu0 %v183
    %v243 = vpop.f32.mrf.mxu0
    %v244 = vadd.f32 0.0, %v243
    %v245 = vpop.f32.mrf.mxu0
    %v246 = vadd.f32 0.0, %v245
    %247 = vmatmul.bf16.gmra.mxu0 %v186
    %v248 = vpop.f32.mrf.mxu0
    %v249 = vadd.f32 0.0, %v248
    %v250 = vpop.f32.mrf.mxu0
    %v251 = vadd.f32 0.0, %v250
    %252 = vmatmul.bf16.gmra.mxu0 %v189
    %v253 = vpop.f32.mrf.mxu0
    %v254 = vadd.f32 0.0, %v253
    %v255 = vpop.f32.mrf.mxu0
    %v256 = vadd.f32 0.0, %v255
    %257 = vmatmul.bf16.gmra.mxu0 %v192
    %v258 = vpop.f32.mrf.mxu0
    %v259 = vadd.f32 0.0, %v258
    %v260 = vpop.f32.mrf.mxu0
    %v261 = vadd.f32 0.0, %v260
    %262 = vmatmul.bf16.gmra.mxu0 %v195
    %v263 = vpop.f32.mrf.mxu0
    %v264 = vadd.f32 0.0, %v263
    %v265 = vpop.f32.mrf.mxu0
    %v266 = vadd.f32 0.0, %v265
    %267 = vmatmul.bf16.gmra.mxu0 %v198
    %v268 = vpop.f32.mrf.mxu0
    %v269 = vadd.f32 0.0, %v268
    %v270 = vpop.f32.mrf.mxu0
    %v271 = vadd.f32 0.0, %v270
    %272 = vmatmul.bf16.gmra.mxu0 %v201
    %v273 = vpop.f32.mrf.mxu0
    %v274 = vadd.f32 0.0, %v273
    %v275 = vpop.f32.mrf.mxu0
    %v276 = vadd.f32 0.0, %v275
    %277 = vmatmul.bf16.gmra.mxu0 %v204
    %v278 = vpop.f32.mrf.mxu0
    %v279 = vadd.f32 0.0, %v278
    %v280 = vpop.f32.mrf.mxu0
    %v281 = vadd.f32 0.0, %v280
    %282 = vmatmul.bf16.gmra.mxu0 %v207
    %v283 = vpop.f32.mrf.mxu0
    %v284 = vadd.f32 0.0, %v283
    %v285 = vpop.f32.mrf.mxu0
    %v286 = vadd.f32 0.0, %v285
    %287 = vmatmul.bf16.gmra.mxu0 %v210
    %v288 = vpop.f32.mrf.mxu0
    %v289 = vadd.f32 0.0, %v288
    %v290 = vpop.f32.mrf.mxu0
    %v291 = vadd.f32 0.0, %v290
    %292 = vmatmul.bf16.gmra.mxu0 %v213
    %v293 = vpop.f32.mrf.mxu0
    %v294 = vadd.f32 0.0, %v293
    %v295 = vpop.f32.mrf.mxu0
    %v296 = vadd.f32 0.0, %v295
    %297 = vmatmul.bf16.gmra.mxu0 %v216
    %v298 = vpop.f32.mrf.mxu0
    %v299 = vadd.f32 0.0, %v298
    %v300 = vpop.f32.mrf.mxu0
    %v301 = vadd.f32 0.0, %v300
    %302 = vmatmul.bf16.gmra.mxu0 %v219
    %v303 = vpop.f32.mrf.mxu0
    %v304 = vadd.f32 0.0, %v303
    %v305 = vpop.f32.mrf.mxu0
    %v306 = vadd.f32 0.0, %v305
    %307 = vmatmul.bf16.gmra.mxu0 %v222
    %v308 = vpop.f32.mrf.mxu0
    %v309 = vadd.f32 0.0, %v308
    %v310 = vpop.f32.mrf.mxu0
    %v311 = vadd.f32 0.0, %v310
    %312 = vdwg.mxu0
    %vm313 = vcmask 261120
    %v314 = vsel %vm313, %v234, 0.0
    %v315 = vsel %vm313, %v236, 0.0
    %v316 = vadd.f32 %v314, %v315
    %v317 = vsel %vm313, %v239, 0.0
    %v318 = vadd.f32 %v316, %v317
    %v319 = vsel %vm313, %v241, 0.0
    %v320 = vadd.f32 %v318, %v319
    %v321 = vsel %vm313, %v244, 0.0
    %v322 = vadd.f32 %v320, %v321
    %v323 = vsel %vm313, %v246, 0.0
    %v324 = vadd.f32 %v322, %v323
    %v325 = vsel %vm313, %v249, 0.0
    %v326 = vadd.f32 %v324, %v325
    %v327 = vsel %vm313, %v251, 0.0
    %v328 = vadd.f32 %v326, %v327
    %v329 = vsel %vm313, %v254, 0.0
    %v330 = vadd.f32 %v328, %v329
    %v331 = vsel %vm313, %v256, 0.0
    %v332 = vadd.f32 %v330, %v331
    %v333 = vsel %vm313, %v259, 0.0
    %v334 = vadd.f32 %v332, %v333
    %v335 = vsel %vm313, %v261, 0.0
    %v336 = vadd.f32 %v334, %v335
    %v337 = vsel %vm313, %v264, 0.0
    %v338 = vadd.f32 %v336, %v337
    %v339 = vsel %vm313, %v266, 0.0
    %v340 = vadd.f32 %v338, %v339
    %v341 = vsel %vm313, %v269, 0.0
    %v342 = vadd.f32 %v340, %v341
    %v343 = vsel %vm313, %v271, 0.0
    %v344 = vadd.f32 %v342, %v343
    %v345 = vsel %vm313, %v274, 0.0
    %v346 = vadd.f32 %v344, %v345
    %v347 = vsel %vm313, %v276, 0.0
    %v348 = vadd.f32 %v346, %v347
    %v349 = vsel %vm313, %v279, 0.0
    %v350 = vadd.f32 %v348, %v349
    %v351 = vsel %vm313, %v281, 0.0
    %v352 = vadd.f32 %v350, %v351
    %v353 = vsel %vm313, %v284, 0.0
    %v354 = vadd.f32 %v352, %v353
    %v355 = vsel %vm313, %v286, 0.0
    %v356 = vadd.f32 %v354, %v355
    %v357 = vsel %vm313, %v289, 0.0
    %v358 = vadd.f32 %v356, %v357
    %v359 = vsel %vm313, %v291, 0.0
    %v360 = vadd.f32 %v358, %v359
    %v361 = vsel %vm313, %v294, 0.0
    %v362 = vadd.f32 %v360, %v361
    %v363 = vsel %vm313, %v296, 0.0
    %v364 = vadd.f32 %v362, %v363
    %v365 = vsel %vm313, %v299, 0.0
    %v366 = vadd.f32 %v364, %v365
    %v367 = vsel %vm313, %v301, 0.0
    %v368 = vadd.f32 %v366, %v367
    %v369 = vsel %vm313, %v304, 0.0
    %v370 = vadd.f32 %v368, %v369
    %v371 = vsel %vm313, %v306, 0.0
    %v372 = vadd.f32 %v370, %v371
    %v373 = vsel %vm313, %v309, 0.0
    %v374 = vadd.f32 %v372, %v373
    %vm375 = vcmask 259072
    %v376 = vsel %vm375, %v311, 0.0
    %v377 = vadd.f32 %v374, %v376
    %v378 = vrot.slane %v377, 4
    %v379 = vadd.f32 %v377, %v378
    %v380 = vrot.slane %v379, 2
    %v381 = vadd.f32 %v379, %v380
    %v382 = vrot.slane %v381, 1
    %v383 = vadd.f32 %v381, %v382
    %v384 = vmul.f32 %v234, %v234
    %v385 = vmul.f32 %v236, %v236
    %v386 = vmul.f32 %v239, %v239
    %v387 = vmul.f32 %v241, %v241
    %v388 = vmul.f32 %v244, %v244
    %v389 = vmul.f32 %v246, %v246
    %v390 = vmul.f32 %v249, %v249
    %v391 = vmul.f32 %v251, %v251
    %v392 = vmul.f32 %v254, %v254
    %v393 = vmul.f32 %v256, %v256
    %v394 = vmul.f32 %v259, %v259
    %v395 = vmul.f32 %v261, %v261
    %v396 = vmul.f32 %v264, %v264
    %v397 = vmul.f32 %v266, %v266
    %v398 = vmul.f32 %v269, %v269
    %v399 = vmul.f32 %v271, %v271
    %v400 = vmul.f32 %v274, %v274
    %v401 = vmul.f32 %v276, %v276
    %v402 = vmul.f32 %v279, %v279
    %v403 = vmul.f32 %v281, %v281
    %v404 = vmul.f32 %v284, %v284
    %v405 = vmul.f32 %v286, %v286
    %v406 = vmul.f32 %v289, %v289
    %v407 = vmul.f32 %v291, %v291
    %v408 = vmul.f32 %v294, %v294
    %v409 = vmul.f32 %v296, %v296
    %v410 = vmul.f32 %v299, %v299
    %v411 = vmul.f32 %v301, %v301
    %v412 = vmul.f32 %v304, %v304
    %v413 = vmul.f32 %v306, %v306
    %v414 = vmul.f32 %v309, %v309
    %v415 = vmul.f32 %v311, %v311
    %v416 = vsel %vm313, %v384, 0.0
    %v417 = vsel %vm313, %v385, 0.0
    %v418 = vadd.f32 %v416, %v417
    %v419 = vsel %vm313, %v386, 0.0
    %v420 = vadd.f32 %v418, %v419
    %v421 = vsel %vm313, %v387, 0.0
    %v422 = vadd.f32 %v420, %v421
    %v423 = vsel %vm313, %v388, 0.0
    %v424 = vadd.f32 %v422, %v423
    %v425 = vsel %vm313, %v389, 0.0
    %v426 = vadd.f32 %v424, %v425
    %v427 = vsel %vm313, %v390, 0.0
    %v428 = vadd.f32 %v426, %v427
    %v429 = vsel %vm313, %v391, 0.0
    %v430 = vadd.f32 %v428, %v429
    %v431 = vsel %vm313, %v392, 0.0
    %v432 = vadd.f32 %v430, %v431
    %v433 = vsel %vm313, %v393, 0.0
    %v434 = vadd.f32 %v432, %v433
    %v435 = vsel %vm313, %v394, 0.0
    %v436 = vadd.f32 %v434, %v435
    %v437 = vsel %vm313, %v395, 0.0
    %v438 = vadd.f32 %v436, %v437
    %v439 = vsel %vm313, %v396, 0.0
    %v440 = vadd.f32 %v438, %v439
    %v441 = vsel %vm313, %v397, 0.0
    %v442 = vadd.f32 %v440, %v441
    %v443 = vsel %vm313, %v398, 0.0
    %v444 = vadd.f32 %v442, %v443
    %v445 = vsel %vm313, %v399, 0.0
    %v446 = vadd.f32 %v444, %v445
    %v447 = vsel %vm313, %v400, 0.0
    %v448 = vadd.f32 %v446, %v447
    %v449 = vsel %vm313, %v401, 0.0
    %v450 = vadd.f32 %v448, %v449
    %v451 = vsel %vm313, %v402, 0.0
    %v452 = vadd.f32 %v450, %v451
    %v453 = vsel %vm313, %v403, 0.0
    %v454 = vadd.f32 %v452, %v453
    %v455 = vsel %vm313, %v404, 0.0
    %v456 = vadd.f32 %v454, %v455
    %v457 = vsel %vm313, %v405, 0.0
    %v458 = vadd.f32 %v456, %v457
    %v459 = vsel %vm313, %v406, 0.0
    %v460 = vadd.f32 %v458, %v459
    %v461 = vsel %vm313, %v407, 0.0
    %v462 = vadd.f32 %v460, %v461
    %v463 = vsel %vm313, %v408, 0.0
    %v464 = vadd.f32 %v462, %v463
    %v465 = vsel %vm313, %v409, 0.0
    %v466 = vadd.f32 %v464, %v465
    %v467 = vsel %vm313, %v410, 0.0
    %v468 = vadd.f32 %v466, %v467
    %v469 = vsel %vm313, %v411, 0.0
    %v470 = vadd.f32 %v468, %v469
    %v471 = vsel %vm313, %v412, 0.0
    %v472 = vadd.f32 %v470, %v471
    %v473 = vsel %vm313, %v413, 0.0
    %v474 = vadd.f32 %v472, %v473
    %v475 = vsel %vm313, %v414, 0.0
    %v476 = vadd.f32 %v474, %v475
    %v477 = vsel %vm375, %v415, 0.0
    %v478 = vadd.f32 %v476, %v477
    %v479 = vrot.slane %v478, 4
    %v480 = vadd.f32 %v478, %v479
    %v481 = vrot.slane %v480, 2
    %v482 = vadd.f32 %v480, %v481
    %v483 = vrot.slane %v482, 1
    %v484 = vadd.f32 %v482, %v483
    %v485 = vmul.f32 %v383, 0.003937008
    %v486 = vmul.f32 %v484, 0.003937008
    %v487 = vmul.f32 %v485, %v485
    %v488 = vsub.f32 %v486, %v487
    %v489 = vld [vmem:[%s11] sm:$0x1]
    %v490 = vadd.f32 %v488, 1e-05
    %v491 = vrsqrt.pop %v490
    %v492 = vmul.f32 %v491, %v490
    %v493 = vmul.f32 %v492, %v491
    %v494 = vmul.f32 0.5, %v493
    %v495 = vsub.f32 1.5, %v494
    %v496 = vmul.f32 %v491, %v495
    %vm497 = vweird.f32 %v490
    %vm498 = vweird.f32 %v491
    %vm499 = vmor %vm497, %vm498
    %v500 = vsel %vm499, %v491, %v496
    %v501 = vmul.f32 %v489, %v500
    %v502 = vld [vmem:[%s11 + $0x1] sm:$0x1]
    %v503 = vmul.f32 %v485, %v501
    %v504 = vsub.f32 %v502, %v503
    %v505 = vperm.slane %v501, 0
    %v506 = vmul.f32 %v234, %v505
    %v507 = vmul.f32 %v236, %v505
    %v508 = vmul.f32 %v239, %v505
    %v509 = vmul.f32 %v241, %v505
    %v510 = vmul.f32 %v244, %v505
    %v511 = vmul.f32 %v246, %v505
    %v512 = vmul.f32 %v249, %v505
    %v513 = vmul.f32 %v251, %v505
    %v514 = vmul.f32 %v254, %v505
    %v515 = vmul.f32 %v256, %v505
    %v516 = vmul.f32 %v259, %v505
    %v517 = vmul.f32 %v261, %v505
    %v518 = vmul.f32 %v264, %v505
    %v519 = vmul.f32 %v266, %v505
    %v520 = vmul.f32 %v269, %v505
    %v521 = vmul.f32 %v271, %v505
    %v522 = vmul.f32 %v274, %v505
    %v523 = vmul.f32 %v276, %v505
    %v524 = vmul.f32 %v279, %v505
    %v525 = vmul.f32 %v281, %v505
    %v526 = vmul.f32 %v284, %v505
    %v527 = vmul.f32 %v286, %v505
    %v528 = vmul.f32 %v289, %v505
    %v529 = vmul.f32 %v291, %v505
    %v530 = vmul.f32 %v294, %v505
    %v531 = vmul.f32 %v296, %v505
    %v532 = vmul.f32 %v299, %v505
    %v533 = vmul.f32 %v301, %v505
    %v534 = vmul.f32 %v304, %v505
    %v535 = vmul.f32 %v306, %v505
    %v536 = vmul.f32 %v309, %v505
    %v537 = vmul.f32 %v311, %v505
    %v538 = vperm.slane %v504, 0
    %v539 = vadd.f32 %v506, %v538
    %v540 = vadd.f32 %v507, %v538
    %v541 = vadd.f32 %v508, %v538
    %v542 = vadd.f32 %v509, %v538
    %v543 = vadd.f32 %v510, %v538
    %v544 = vadd.f32 %v511, %v538
    %v545 = vadd.f32 %v512, %v538
    %v546 = vadd.f32 %v513, %v538
    %v547 = vadd.f32 %v514, %v538
    %v548 = vadd.f32 %v515, %v538
    %v549 = vadd.f32 %v516, %v538
    %v550 = vadd.f32 %v517, %v538
    %v551 = vadd.f32 %v518, %v538
    %v552 = vadd.f32 %v519, %v538
    %v553 = vadd.f32 %v520, %v538
    %v554 = vadd.f32 %v521, %v538
    %v555 = vadd.f32 %v522, %v538
    %v556 = vadd.f32 %v523, %v538
    %v557 = vadd.f32 %v524, %v538
    %v558 = vadd.f32 %v525, %v538
    %v559 = vadd.f32 %v526, %v538
    %v560 = vadd.f32 %v527, %v538
    %v561 = vadd.f32 %v528, %v538
    %v562 = vadd.f32 %v529, %v538
    %v563 = vadd.f32 %v530, %v538
    %v564 = vadd.f32 %v531, %v538
    %v565 = vadd.f32 %v532, %v538
    %v566 = vadd.f32 %v533, %v538
    %v567 = vadd.f32 %v534, %v538
    %v568 = vadd.f32 %v535, %v538
    %v569 = vadd.f32 %v536, %v538
    %v570 = vadd.f32 %v537, %v538
    %v571 = vmax.f32 %v539, 0.0
    %v572 = vmax.f32 %v540, 0.0
    %v573 = vmax.f32 %v541, 0.0
    %v574 = vmax.f32 %v542, 0.0
    %v575 = vmax.f32 %v543, 0.0
    %v576 = vmax.f32 %v544, 0.0
    %v577 = vmax.f32 %v545, 0.0
    %v578 = vmax.f32 %v546, 0.0
    %v579 = vmax.f32 %v547, 0.0
    %v580 = vmax.f32 %v548, 0.0
    %v581 = vmax.f32 %v549, 0.0
    %v582 = vmax.f32 %v550, 0.0
    %v583 = vmax.f32 %v551, 0.0
    %v584 = vmax.f32 %v552, 0.0
    %v585 = vmax.f32 %v553, 0.0
    %v586 = vmax.f32 %v554, 0.0
    %v587 = vmax.f32 %v555, 0.0
    %v588 = vmax.f32 %v556, 0.0
    %v589 = vmax.f32 %v557, 0.0
    %v590 = vmax.f32 %v558, 0.0
    %v591 = vmax.f32 %v559, 0.0
    %v592 = vmax.f32 %v560, 0.0
    %v593 = vmax.f32 %v561, 0.0
    %v594 = vmax.f32 %v562, 0.0
    %v595 = vmax.f32 %v563, 0.0
    %v596 = vmax.f32 %v564, 0.0
    %v597 = vmax.f32 %v565, 0.0
    %v598 = vmax.f32 %v566, 0.0
    %v599 = vmax.f32 %v567, 0.0
    %v600 = vmax.f32 %v568, 0.0
    %v601 = vmax.f32 %v569, 0.0
    %v602 = vmax.f32 %v570, 0.0
    %v603 = vpack.c.bf16 %v572, %v571
    %v604 = vpack.c.bf16 %v574, %v573
    %v605 = vpack.c.bf16 %v576, %v575
    %v606 = vpack.c.bf16 %v578, %v577
    %v607 = vpack.c.bf16 %v580, %v579
    %v608 = vpack.c.bf16 %v582, %v581
    %v609 = vpack.c.bf16 %v584, %v583
    %v610 = vpack.c.bf16 %v586, %v585
    %v611 = vpack.c.bf16 %v588, %v587
    %v612 = vpack.c.bf16 %v590, %v589
    %v613 = vpack.c.bf16 %v592, %v591
    %v614 = vpack.c.bf16 %v594, %v593
    %v615 = vpack.c.bf16 %v596, %v595
    %v616 = vpack.c.bf16 %v598, %v597
    %v617 = vpack.c.bf16 %v600, %v599
    %v618 = vpack.c.bf16 %v602, %v601
    %v619 = vld [vmem:[%s2] sm:$0xff]
    %v620 = vld [vmem:[%s2 + $0x8] sm:$0xff]
    %v621 = vld [vmem:[%s2 + $0x10] sm:$0xff]
    %v622 = vld [vmem:[%s2 + $0x18] sm:$0xff]
    %v623 = vld [vmem:[%s2 + $0x20] sm:$0xff]
    %v624 = vld [vmem:[%s2 + $0x28] sm:$0xff]
    %v625 = vld [vmem:[%s2 + $0x30] sm:$0xff]
    %v626 = vld [vmem:[%s2 + $0x38] sm:$0x33]
    %v635 = vunpack.c.l.b16 %v619
    %v636 = vunpack.c.h.b16 %v619
    %v637 = vunpack.c.l.b16 %v620
    %v638 = vunpack.c.h.b16 %v620
    %v639 = vunpack.c.l.b16 %v621
    %v640 = vunpack.c.h.b16 %v621
    %v641 = vunpack.c.l.b16 %v622
    %v642 = vunpack.c.h.b16 %v622
    %v643 = vunpack.c.l.b16 %v623
    %v644 = vunpack.c.h.b16 %v623
    %v645 = vunpack.c.l.b16 %v624
    %v646 = vunpack.c.h.b16 %v624
    %v647 = vunpack.c.l.b16 %v625
    %v648 = vunpack.c.h.b16 %v625
    %v649 = vunpack.c.l.b16 %v626
    %v650 = vunpack.c.h.b16 %v626
    %v651 = vpack.c.b16 %v637, %v635
    %v652 = vpack.c.b16 %v638, %v636
    %v653 = vpack.c.b16 %v641, %v639
    %v654 = vpack.c.b16 %v642, %v640
    %v655 = vpack.c.b16 %v645, %v643
    %v656 = vpack.c.b16 %v646, %v644
    %v657 = vpack.c.b16 %v649, %v647
    %v658 = vpack.c.b16 %v650, %v648
    %vm663 = vcmask 1031168
    %v665 = vsel %vm663, %v652, 0
    %v668 = vsel %vm663, %v654, 0
    %v671 = vsel %vm663, %v656, 0
    %v674 = vsel %vm663, %v658, 0
    %vm676 = vcmask 1046528
    %v678 = vsel %vm676, %v618, 0
    %680 = vmatpush.bf16.msra.mxu0 %v610
    %681 = vmatpush.bf16.msra.mxu0 %v609
    %682 = vmatpush.bf16.msra.mxu0 %v608
    %683 = vmatpush.bf16.msra.mxu0 %v607
    %684 = vmatpush.bf16.msra.mxu0 %v606
    %685 = vmatpush.bf16.msra.mxu0 %v605
    %686 = vmatpush.bf16.msra.mxu0 %v604
    %687 = vmatpush.bf16.msra.mxu0 %v603
    %688 = vmatmul.bf16.gmra.mxu0 %v651
    %v689 = vpop.f32.mrf.mxu0
    %v690 = vadd.f32 0.0, %v689
    %v691 = vpop.f32.mrf.mxu0
    %v692 = vadd.f32 0.0, %v691
    %693 = vmatmul.bf16.gmra.mxu0 %v653
    %v694 = vpop.f32.mrf.mxu0
    %v695 = vadd.f32 0.0, %v694
    %v696 = vpop.f32.mrf.mxu0
    %v697 = vadd.f32 0.0, %v696
    %698 = vmatmul.bf16.gmra.mxu0 %v655
    %v699 = vpop.f32.mrf.mxu0
    %v700 = vadd.f32 0.0, %v699
    %v701 = vpop.f32.mrf.mxu0
    %v702 = vadd.f32 0.0, %v701
    %703 = vmatmul.bf16.gmra.mxu0 %v657
    %v704 = vpop.f32.mrf.mxu0
    %v705 = vadd.f32 0.0, %v704
    %v706 = vpop.f32.mrf.mxu0
    %v707 = vadd.f32 0.0, %v706
    %708 = vdwg.mxu0
    %709 = vmatpush.bf16.msra.mxu0 %v678
    %710 = vmatpush.bf16.msra.mxu0 %v617
    %711 = vmatpush.bf16.msra.mxu0 %v616
    %712 = vmatpush.bf16.msra.mxu0 %v615
    %713 = vmatpush.bf16.msra.mxu0 %v614
    %714 = vmatpush.bf16.msra.mxu0 %v613
    %715 = vmatpush.bf16.msra.mxu0 %v612
    %716 = vmatpush.bf16.msra.mxu0 %v611
    %717 = vmatmul.bf16.gmra.mxu0 %v665
    %v718 = vpop.f32.mrf.mxu0
    %v719 = vadd.f32 %v690, %v718
    %v720 = vpop.f32.mrf.mxu0
    %v721 = vadd.f32 %v692, %v720
    %722 = vmatmul.bf16.gmra.mxu0 %v668
    %v723 = vpop.f32.mrf.mxu0
    %v724 = vadd.f32 %v695, %v723
    %v725 = vpop.f32.mrf.mxu0
    %v726 = vadd.f32 %v697, %v725
    %727 = vmatmul.bf16.gmra.mxu0 %v671
    %v728 = vpop.f32.mrf.mxu0
    %v729 = vadd.f32 %v700, %v728
    %v730 = vpop.f32.mrf.mxu0
    %v731 = vadd.f32 %v702, %v730
    %732 = vmatmul.bf16.gmra.mxu0 %v674
    %v733 = vpop.f32.mrf.mxu0
    %v734 = vadd.f32 %v705, %v733
    %v735 = vpop.f32.mrf.mxu0
    %v736 = vadd.f32 %v707, %v735
    %737 = vdwg.mxu0
    %v738 = vpack.c.bf16 %v721, %v719
    %v739 = vpack.c.bf16 %v726, %v724
    %v740 = vpack.c.bf16 %v731, %v729
    %v741 = vpack.c.bf16 %v736, %v734
    %v742 = vld [vmem:[%s3] sm:$0xf]
    %v743 = vld [vmem:[%s3 + $0x4] sm:$0xf]
    %v744 = vld [vmem:[%s3 + $0x8] sm:$0xf]
    %v745 = vld [vmem:[%s3 + $0xc] sm:$0xf]
    %s746 = scalar_lea.vmem %s2, 64
    %v747 = vld [vmem:[%s746] sm:$0xff]
    %v748 = vld [vmem:[%s746 + $0x8] sm:$0xff]
    %v749 = vld [vmem:[%s746 + $0x10] sm:$0xff]
    %v750 = vld [vmem:[%s746 + $0x18] sm:$0xff]
    %v751 = vld [vmem:[%s746 + $0x20] sm:$0xff]
    %v752 = vld [vmem:[%s746 + $0x28] sm:$0xff]
    %v753 = vld [vmem:[%s746 + $0x30] sm:$0xff]
    %v754 = vld [vmem:[%s746 + $0x38] sm:$0x33]
    %v763 = vunpack.c.l.b16 %v747
    %v764 = vunpack.c.h.b16 %v747
    %v765 = vunpack.c.l.b16 %v748
    %v766 = vunpack.c.h.b16 %v748
    %v767 = vunpack.c.l.b16 %v749
    %v768 = vunpack.c.h.b16 %v749
    %v769 = vunpack.c.l.b16 %v750
    %v770 = vunpack.c.h.b16 %v750
    %v771 = vunpack.c.l.b16 %v751
    %v772 = vunpack.c.h.b16 %v751
    %v773 = vunpack.c.l.b16 %v752
    %v774 = vunpack.c.h.b16 %v752
    %v775 = vunpack.c.l.b16 %v753
    %v776 = vunpack.c.h.b16 %v753
    %v777 = vunpack.c.l.b16 %v754
    %v778 = vunpack.c.h.b16 %v754
    %v779 = vpack.c.b16 %v765, %v763
    %v780 = vpack.c.b16 %v766, %v764
    %v781 = vpack.c.b16 %v769, %v767
    %v782 = vpack.c.b16 %v770, %v768
    %v783 = vpack.c.b16 %v773, %v771
    %v784 = vpack.c.b16 %v774, %v772
    %v785 = vpack.c.b16 %v777, %v775
    %v786 = vpack.c.b16 %v778, %v776
    %v792 = vsel %vm663, %v780, 0
    %v795 = vsel %vm663, %v782, 0
    %v798 = vsel %vm663, %v784, 0
    %v801 = vsel %vm663, %v786, 0
    %803 = vmatpush.bf16.msra.mxu0 %v610
    %804 = vmatpush.bf16.msra.mxu0 %v609
    %805 = vmatpush.bf16.msra.mxu0 %v608
    %806 = vmatpush.bf16.msra.mxu0 %v607
    %807 = vmatpush.bf16.msra.mxu0 %v606
    %808 = vmatpush.bf16.msra.mxu0 %v605
    %809 = vmatpush.bf16.msra.mxu0 %v604
    %810 = vmatpush.bf16.msra.mxu0 %v603
    %811 = vmatmul.bf16.gmra.mxu0 %v779
    %v812 = vpop.f32.mrf.mxu0
    %v813 = vadd.f32 0.0, %v812
    %v814 = vpop.f32.mrf.mxu0
    %v815 = vadd.f32 0.0, %v814
    %816 = vmatmul.bf16.gmra.mxu0 %v781
    %v817 = vpop.f32.mrf.mxu0
    %v818 = vadd.f32 0.0, %v817
    %v819 = vpop.f32.mrf.mxu0
    %v820 = vadd.f32 0.0, %v819
    %821 = vmatmul.bf16.gmra.mxu0 %v783
    %v822 = vpop.f32.mrf.mxu0
    %v823 = vadd.f32 0.0, %v822
    %v824 = vpop.f32.mrf.mxu0
    %v825 = vadd.f32 0.0, %v824
    %826 = vmatmul.bf16.gmra.mxu0 %v785
    %v827 = vpop.f32.mrf.mxu0
    %v828 = vadd.f32 0.0, %v827
    %v829 = vpop.f32.mrf.mxu0
    %v830 = vadd.f32 0.0, %v829
    %831 = vdwg.mxu0
    %832 = vmatpush.bf16.msra.mxu0 %v678
    %833 = vmatpush.bf16.msra.mxu0 %v617
    %834 = vmatpush.bf16.msra.mxu0 %v616
    %835 = vmatpush.bf16.msra.mxu0 %v615
    %836 = vmatpush.bf16.msra.mxu0 %v614
    %837 = vmatpush.bf16.msra.mxu0 %v613
    %838 = vmatpush.bf16.msra.mxu0 %v612
    %839 = vmatpush.bf16.msra.mxu0 %v611
    %840 = vmatmul.bf16.gmra.mxu0 %v792
    %v841 = vpop.f32.mrf.mxu0
    %v842 = vadd.f32 %v813, %v841
    %v843 = vpop.f32.mrf.mxu0
    %v844 = vadd.f32 %v815, %v843
    %845 = vmatmul.bf16.gmra.mxu0 %v795
    %v846 = vpop.f32.mrf.mxu0
    %v847 = vadd.f32 %v818, %v846
    %v848 = vpop.f32.mrf.mxu0
    %v849 = vadd.f32 %v820, %v848
    %850 = vmatmul.bf16.gmra.mxu0 %v798
    %v851 = vpop.f32.mrf.mxu0
    %v852 = vadd.f32 %v823, %v851
    %v853 = vpop.f32.mrf.mxu0
    %v854 = vadd.f32 %v825, %v853
    %855 = vmatmul.bf16.gmra.mxu0 %v801
    %v856 = vpop.f32.mrf.mxu0
    %v857 = vadd.f32 %v828, %v856
    %v858 = vpop.f32.mrf.mxu0
    %v859 = vadd.f32 %v830, %v858
    %860 = vdwg.mxu0
    %v861 = vpack.c.bf16 %v844, %v842
    %v862 = vpack.c.bf16 %v849, %v847
    %v863 = vpack.c.bf16 %v854, %v852
    %v864 = vpack.c.bf16 %v859, %v857
    %s865 = scalar_lea.vmem %s3, 16
    %v866 = vld [vmem:[%s865] sm:$0xf]
    %v867 = vld [vmem:[%s865 + $0x4] sm:$0xf]
    %v868 = vld [vmem:[%s865 + $0x8] sm:$0xf]
    %v869 = vld [vmem:[%s865 + $0xc] sm:$0xf]
    %v874 = vunpack.c.l.b16 %v866
    %v875 = vunpack.c.l.b16 %v867
    %v876 = vunpack.c.l.b16 %v868
    %v877 = vunpack.c.l.b16 %v869
    %v878 = vpack.c.b16 %v875, %v874
    %v879 = vpack.c.b16 %v877, %v876
    %v883 = vsel %vm313, %v861, 0
    %v886 = vsel %vm313, %v862, 0
    %v889 = vsel %vm313, %v863, 0
    %v892 = vsel %vm313, %v864, 0
    %894 = vmatpush.bf16.msra.mxu0 0
    %895 = vmatpush.bf16.msra.mxu0 0
    %896 = vmatpush.bf16.msra.mxu0 0
    %897 = vmatpush.bf16.msra.mxu0 0
    %898 = vmatpush.bf16.msra.mxu0 0
    %899 = vmatpush.bf16.msra.mxu0 0
    %900 = vmatpush.bf16.msra.mxu0 %v879
    %901 = vmatpush.bf16.msra.mxu0 %v878
    %902 = vmatmul.bf16.gmra.mxu0 %v883
    %v903 = vpop.f32.mrf.mxu0
    %v904 = vadd.f32 0.0, %v903
    %v905 = vpop.f32.mrf.mxu0
    %v906 = vadd.f32 0.0, %v905
    %907 = vmatmul.bf16.gmra.mxu0 %v886
    %v908 = vpop.f32.mrf.mxu0
    %v909 = vadd.f32 0.0, %v908
    %v910 = vpop.f32.mrf.mxu0
    %v911 = vadd.f32 0.0, %v910
    %912 = vmatmul.bf16.gmra.mxu0 %v889
    %v913 = vpop.f32.mrf.mxu0
    %v914 = vadd.f32 0.0, %v913
    %v915 = vpop.f32.mrf.mxu0
    %v916 = vadd.f32 0.0, %v915
    %917 = vmatmul.bf16.gmra.mxu0 %v892
    %v918 = vpop.f32.mrf.mxu0
    %v919 = vadd.f32 0.0, %v918
    %v920 = vpop.f32.mrf.mxu0
    %v921 = vadd.f32 0.0, %v920
    %922 = vdwg.mxu0
    %v927 = vunpack.c.l.b16 %v742
    %v928 = vunpack.c.l.b16 %v743
    %v929 = vunpack.c.l.b16 %v744
    %v930 = vunpack.c.l.b16 %v745
    %v931 = vpack.c.b16 %v928, %v927
    %v932 = vpack.c.b16 %v930, %v929
    %v936 = vsel %vm313, %v738, 0
    %v939 = vsel %vm313, %v739, 0
    %v942 = vsel %vm313, %v740, 0
    %v945 = vsel %vm313, %v741, 0
    %947 = vmatpush.bf16.msra.mxu0 0
    %948 = vmatpush.bf16.msra.mxu0 0
    %949 = vmatpush.bf16.msra.mxu0 0
    %950 = vmatpush.bf16.msra.mxu0 0
    %951 = vmatpush.bf16.msra.mxu0 0
    %952 = vmatpush.bf16.msra.mxu0 0
    %953 = vmatpush.bf16.msra.mxu0 %v932
    %954 = vmatpush.bf16.msra.mxu0 %v931
    %955 = vmatmul.bf16.gmra.mxu0 %v936
    %v956 = vpop.f32.mrf.mxu0
    %v957 = vadd.f32 %v904, %v956
    %v958 = vpop.f32.mrf.mxu0
    %v959 = vadd.f32 %v906, %v958
    %960 = vmatmul.bf16.gmra.mxu0 %v939
    %v961 = vpop.f32.mrf.mxu0
    %v962 = vadd.f32 %v909, %v961
    %v963 = vpop.f32.mrf.mxu0
    %v964 = vadd.f32 %v911, %v963
    %965 = vmatmul.bf16.gmra.mxu0 %v942
    %v966 = vpop.f32.mrf.mxu0
    %v967 = vadd.f32 %v914, %v966
    %v968 = vpop.f32.mrf.mxu0
    %v969 = vadd.f32 %v916, %v968
    %970 = vmatmul.bf16.gmra.mxu0 %v945
    %v971 = vpop.f32.mrf.mxu0
    %v972 = vadd.f32 %v919, %v971
    %v973 = vpop.f32.mrf.mxu0
    %v974 = vadd.f32 %v921, %v973
    %975 = vdwg.mxu0
    %s976 = scalar_lea.vmem %s2, 128
    %v977 = vld [vmem:[%s976] sm:$0xff]
    %v978 = vld [vmem:[%s976 + $0x8] sm:$0xff]
    %v979 = vld [vmem:[%s976 + $0x10] sm:$0xff]
    %v980 = vld [vmem:[%s976 + $0x18] sm:$0xff]
    %v981 = vld [vmem:[%s976 + $0x20] sm:$0xff]
    %v982 = vld [vmem:[%s976 + $0x28] sm:$0xff]
    %v983 = vld [vmem:[%s976 + $0x30] sm:$0xff]
    %v984 = vld [vmem:[%s976 + $0x38] sm:$0x33]
    %v993 = vunpack.c.l.b16 %v977
    %v994 = vunpack.c.h.b16 %v977
    %v995 = vunpack.c.l.b16 %v978
    %v996 = vunpack.c.h.b16 %v978
    %v997 = vunpack.c.l.b16 %v979
    %v998 = vunpack.c.h.b16 %v979
    %v999 = vunpack.c.l.b16 %v980
    %v1000 = vunpack.c.h.b16 %v980
    %v1001 = vunpack.c.l.b16 %v981
    %v1002 = vunpack.c.h.b16 %v981
    %v1003 = vunpack.c.l.b16 %v982
    %v1004 = vunpack.c.h.b16 %v982
    %v1005 = vunpack.c.l.b16 %v983
    %v1006 = vunpack.c.h.b16 %v983
    %v1007 = vunpack.c.l.b16 %v984
    %v1008 = vunpack.c.h.b16 %v984
    %v1009 = vpack.c.b16 %v995, %v993
    %v1010 = vpack.c.b16 %v996, %v994
    %v1011 = vpack.c.b16 %v999, %v997
    %v1012 = vpack.c.b16 %v1000, %v998
    %v1013 = vpack.c.b16 %v1003, %v1001
    %v1014 = vpack.c.b16 %v1004, %v1002
    %v1015 = vpack.c.b16 %v1007, %v1005
    %v1016 = vpack.c.b16 %v1008, %v1006
    %v1022 = vsel %vm663, %v1010, 0
    %v1025 = vsel %vm663, %v1012, 0
    %v1028 = vsel %vm663, %v1014, 0
    %v1031 = vsel %vm663, %v1016, 0
    %1033 = vmatpush.bf16.msra.mxu0 %v610
    %1034 = vmatpush.bf16.msra.mxu0 %v609
    %1035 = vmatpush.bf16.msra.mxu0 %v608
    %1036 = vmatpush.bf16.msra.mxu0 %v607
    %1037 = vmatpush.bf16.msra.mxu0 %v606
    %1038 = vmatpush.bf16.msra.mxu0 %v605
    %1039 = vmatpush.bf16.msra.mxu0 %v604
    %1040 = vmatpush.bf16.msra.mxu0 %v603
    %1041 = vmatmul.bf16.gmra.mxu0 %v1009
    %v1042 = vpop.f32.mrf.mxu0
    %v1043 = vadd.f32 0.0, %v1042
    %v1044 = vpop.f32.mrf.mxu0
    %v1045 = vadd.f32 0.0, %v1044
    %1046 = vmatmul.bf16.gmra.mxu0 %v1011
    %v1047 = vpop.f32.mrf.mxu0
    %v1048 = vadd.f32 0.0, %v1047
    %v1049 = vpop.f32.mrf.mxu0
    %v1050 = vadd.f32 0.0, %v1049
    %1051 = vmatmul.bf16.gmra.mxu0 %v1013
    %v1052 = vpop.f32.mrf.mxu0
    %v1053 = vadd.f32 0.0, %v1052
    %v1054 = vpop.f32.mrf.mxu0
    %v1055 = vadd.f32 0.0, %v1054
    %1056 = vmatmul.bf16.gmra.mxu0 %v1015
    %v1057 = vpop.f32.mrf.mxu0
    %v1058 = vadd.f32 0.0, %v1057
    %v1059 = vpop.f32.mrf.mxu0
    %v1060 = vadd.f32 0.0, %v1059
    %1061 = vdwg.mxu0
    %1062 = vmatpush.bf16.msra.mxu0 %v678
    %1063 = vmatpush.bf16.msra.mxu0 %v617
    %1064 = vmatpush.bf16.msra.mxu0 %v616
    %1065 = vmatpush.bf16.msra.mxu0 %v615
    %1066 = vmatpush.bf16.msra.mxu0 %v614
    %1067 = vmatpush.bf16.msra.mxu0 %v613
    %1068 = vmatpush.bf16.msra.mxu0 %v612
    %1069 = vmatpush.bf16.msra.mxu0 %v611
    %1070 = vmatmul.bf16.gmra.mxu0 %v1022
    %v1071 = vpop.f32.mrf.mxu0
    %v1072 = vadd.f32 %v1043, %v1071
    %v1073 = vpop.f32.mrf.mxu0
    %v1074 = vadd.f32 %v1045, %v1073
    %1075 = vmatmul.bf16.gmra.mxu0 %v1025
    %v1076 = vpop.f32.mrf.mxu0
    %v1077 = vadd.f32 %v1048, %v1076
    %v1078 = vpop.f32.mrf.mxu0
    %v1079 = vadd.f32 %v1050, %v1078
    %1080 = vmatmul.bf16.gmra.mxu0 %v1028
    %v1081 = vpop.f32.mrf.mxu0
    %v1082 = vadd.f32 %v1053, %v1081
    %v1083 = vpop.f32.mrf.mxu0
    %v1084 = vadd.f32 %v1055, %v1083
    %1085 = vmatmul.bf16.gmra.mxu0 %v1031
    %v1086 = vpop.f32.mrf.mxu0
    %v1087 = vadd.f32 %v1058, %v1086
    %v1088 = vpop.f32.mrf.mxu0
    %v1089 = vadd.f32 %v1060, %v1088
    %1090 = vdwg.mxu0
    %v1091 = vpack.c.bf16 %v1074, %v1072
    %v1092 = vpack.c.bf16 %v1079, %v1077
    %v1093 = vpack.c.bf16 %v1084, %v1082
    %v1094 = vpack.c.bf16 %v1089, %v1087
    %s1095 = scalar_lea.vmem %s3, 32
    %v1096 = vld [vmem:[%s1095] sm:$0xf]
    %v1097 = vld [vmem:[%s1095 + $0x4] sm:$0xf]
    %v1098 = vld [vmem:[%s1095 + $0x8] sm:$0xf]
    %v1099 = vld [vmem:[%s1095 + $0xc] sm:$0xf]
    %v1104 = vunpack.c.l.b16 %v1096
    %v1105 = vunpack.c.l.b16 %v1097
    %v1106 = vunpack.c.l.b16 %v1098
    %v1107 = vunpack.c.l.b16 %v1099
    %v1108 = vpack.c.b16 %v1105, %v1104
    %v1109 = vpack.c.b16 %v1107, %v1106
    %v1113 = vsel %vm313, %v1091, 0
    %v1116 = vsel %vm313, %v1092, 0
    %v1119 = vsel %vm313, %v1093, 0
    %v1122 = vsel %vm313, %v1094, 0
    %1124 = vmatpush.bf16.msra.mxu0 0
    %1125 = vmatpush.bf16.msra.mxu0 0
    %1126 = vmatpush.bf16.msra.mxu0 0
    %1127 = vmatpush.bf16.msra.mxu0 0
    %1128 = vmatpush.bf16.msra.mxu0 0
    %1129 = vmatpush.bf16.msra.mxu0 0
    %1130 = vmatpush.bf16.msra.mxu0 %v1109
    %1131 = vmatpush.bf16.msra.mxu0 %v1108
    %1132 = vmatmul.bf16.gmra.mxu0 %v1113
    %v1133 = vpop.f32.mrf.mxu0
    %v1134 = vadd.f32 0.0, %v1133
    %v1135 = vpop.f32.mrf.mxu0
    %v1136 = vadd.f32 0.0, %v1135
    %1137 = vmatmul.bf16.gmra.mxu0 %v1116
    %v1138 = vpop.f32.mrf.mxu0
    %v1139 = vadd.f32 0.0, %v1138
    %v1140 = vpop.f32.mrf.mxu0
    %v1141 = vadd.f32 0.0, %v1140
    %1142 = vmatmul.bf16.gmra.mxu0 %v1119
    %v1143 = vpop.f32.mrf.mxu0
    %v1144 = vadd.f32 0.0, %v1143
    %v1145 = vpop.f32.mrf.mxu0
    %v1146 = vadd.f32 0.0, %v1145
    %1147 = vmatmul.bf16.gmra.mxu0 %v1122
    %v1148 = vpop.f32.mrf.mxu0
    %v1149 = vadd.f32 0.0, %v1148
    %v1150 = vpop.f32.mrf.mxu0
    %v1151 = vadd.f32 0.0, %v1150
    %1152 = vdwg.mxu0
    %v1153 = vadd.f32 %v957, %v1134
    %v1154 = vadd.f32 %v959, %v1136
    %v1155 = vadd.f32 %v962, %v1139
    %v1156 = vadd.f32 %v964, %v1141
    %v1157 = vadd.f32 %v967, %v1144
    %v1158 = vadd.f32 %v969, %v1146
    %v1159 = vadd.f32 %v972, %v1149
    %v1160 = vadd.f32 %v974, %v1151
    %s1161 = scalar_lea.vmem %s2, 192
    %v1162 = vld [vmem:[%s1161] sm:$0xff]
    %v1163 = vld [vmem:[%s1161 + $0x8] sm:$0xff]
    %v1164 = vld [vmem:[%s1161 + $0x10] sm:$0xff]
    %v1165 = vld [vmem:[%s1161 + $0x18] sm:$0xff]
    %v1166 = vld [vmem:[%s1161 + $0x20] sm:$0xff]
    %v1167 = vld [vmem:[%s1161 + $0x28] sm:$0xff]
    %v1168 = vld [vmem:[%s1161 + $0x30] sm:$0xff]
    %v1169 = vld [vmem:[%s1161 + $0x38] sm:$0x33]
    %v1178 = vunpack.c.l.b16 %v1162
    %v1179 = vunpack.c.h.b16 %v1162
    %v1180 = vunpack.c.l.b16 %v1163
    %v1181 = vunpack.c.h.b16 %v1163
    %v1182 = vunpack.c.l.b16 %v1164
    %v1183 = vunpack.c.h.b16 %v1164
    %v1184 = vunpack.c.l.b16 %v1165
    %v1185 = vunpack.c.h.b16 %v1165
    %v1186 = vunpack.c.l.b16 %v1166
    %v1187 = vunpack.c.h.b16 %v1166
    %v1188 = vunpack.c.l.b16 %v1167
    %v1189 = vunpack.c.h.b16 %v1167
    %v1190 = vunpack.c.l.b16 %v1168
    %v1191 = vunpack.c.h.b16 %v1168
    %v1192 = vunpack.c.l.b16 %v1169
    %v1193 = vunpack.c.h.b16 %v1169
    %v1194 = vpack.c.b16 %v1180, %v1178
    %v1195 = vpack.c.b16 %v1181, %v1179
    %v1196 = vpack.c.b16 %v1184, %v1182
    %v1197 = vpack.c.b16 %v1185, %v1183
    %v1198 = vpack.c.b16 %v1188, %v1186
    %v1199 = vpack.c.b16 %v1189, %v1187
    %v1200 = vpack.c.b16 %v1192, %v1190
    %v1201 = vpack.c.b16 %v1193, %v1191
    %v1207 = vsel %vm663, %v1195, 0
    %v1210 = vsel %vm663, %v1197, 0
    %v1213 = vsel %vm663, %v1199, 0
    %v1216 = vsel %vm663, %v1201, 0
    %1218 = vmatpush.bf16.msra.mxu0 %v610
    %1219 = vmatpush.bf16.msra.mxu0 %v609
    %1220 = vmatpush.bf16.msra.mxu0 %v608
    %1221 = vmatpush.bf16.msra.mxu0 %v607
    %1222 = vmatpush.bf16.msra.mxu0 %v606
    %1223 = vmatpush.bf16.msra.mxu0 %v605
    %1224 = vmatpush.bf16.msra.mxu0 %v604
    %1225 = vmatpush.bf16.msra.mxu0 %v603
    %1226 = vmatmul.bf16.gmra.mxu0 %v1194
    %v1227 = vpop.f32.mrf.mxu0
    %v1228 = vadd.f32 0.0, %v1227
    %v1229 = vpop.f32.mrf.mxu0
    %v1230 = vadd.f32 0.0, %v1229
    %1231 = vmatmul.bf16.gmra.mxu0 %v1196
    %v1232 = vpop.f32.mrf.mxu0
    %v1233 = vadd.f32 0.0, %v1232
    %v1234 = vpop.f32.mrf.mxu0
    %v1235 = vadd.f32 0.0, %v1234
    %1236 = vmatmul.bf16.gmra.mxu0 %v1198
    %v1237 = vpop.f32.mrf.mxu0
    %v1238 = vadd.f32 0.0, %v1237
    %v1239 = vpop.f32.mrf.mxu0
    %v1240 = vadd.f32 0.0, %v1239
    %1241 = vmatmul.bf16.gmra.mxu0 %v1200
    %v1242 = vpop.f32.mrf.mxu0
    %v1243 = vadd.f32 0.0, %v1242
    %v1244 = vpop.f32.mrf.mxu0
    %v1245 = vadd.f32 0.0, %v1244
    %1246 = vdwg.mxu0
    %1247 = vmatpush.bf16.msra.mxu0 %v678
    %1248 = vmatpush.bf16.msra.mxu0 %v617
    %1249 = vmatpush.bf16.msra.mxu0 %v616
    %1250 = vmatpush.bf16.msra.mxu0 %v615
    %1251 = vmatpush.bf16.msra.mxu0 %v614
    %1252 = vmatpush.bf16.msra.mxu0 %v613
    %1253 = vmatpush.bf16.msra.mxu0 %v612
    %1254 = vmatpush.bf16.msra.mxu0 %v611
    %1255 = vmatmul.bf16.gmra.mxu0 %v1207
    %v1256 = vpop.f32.mrf.mxu0
    %v1257 = vadd.f32 %v1228, %v1256
    %v1258 = vpop.f32.mrf.mxu0
    %v1259 = vadd.f32 %v1230, %v1258
    %1260 = vmatmul.bf16.gmra.mxu0 %v1210
    %v1261 = vpop.f32.mrf.mxu0
    %v1262 = vadd.f32 %v1233, %v1261
    %v1263 = vpop.f32.mrf.mxu0
    %v1264 = vadd.f32 %v1235, %v1263
    %1265 = vmatmul.bf16.gmra.mxu0 %v1213
    %v1266 = vpop.f32.mrf.mxu0
    %v1267 = vadd.f32 %v1238, %v1266
    %v1268 = vpop.f32.mrf.mxu0
    %v1269 = vadd.f32 %v1240, %v1268
    %1270 = vmatmul.bf16.gmra.mxu0 %v1216
    %v1271 = vpop.f32.mrf.mxu0
    %v1272 = vadd.f32 %v1243, %v1271
    %v1273 = vpop.f32.mrf.mxu0
    %v1274 = vadd.f32 %v1245, %v1273
    %1275 = vdwg.mxu0
    %v1276 = vpack.c.bf16 %v1259, %v1257
    %v1277 = vpack.c.bf16 %v1264, %v1262
    %v1278 = vpack.c.bf16 %v1269, %v1267
    %v1279 = vpack.c.bf16 %v1274, %v1272
    %s1280 = scalar_lea.vmem %s3, 48
    %v1281 = vld [vmem:[%s1280] sm:$0xf]
    %v1282 = vld [vmem:[%s1280 + $0x4] sm:$0xf]
    %v1283 = vld [vmem:[%s1280 + $0x8] sm:$0xf]
    %v1284 = vld [vmem:[%s1280 + $0xc] sm:$0xf]
    %v1289 = vunpack.c.l.b16 %v1281
    %v1290 = vunpack.c.l.b16 %v1282
    %v1291 = vunpack.c.l.b16 %v1283
    %v1292 = vunpack.c.l.b16 %v1284
    %v1293 = vpack.c.b16 %v1290, %v1289
    %v1294 = vpack.c.b16 %v1292, %v1291
    %v1298 = vsel %vm313, %v1276, 0
    %v1301 = vsel %vm313, %v1277, 0
    %v1304 = vsel %vm313, %v1278, 0
    %v1307 = vsel %vm313, %v1279, 0
    %1309 = vmatpush.bf16.msra.mxu0 0
    %1310 = vmatpush.bf16.msra.mxu0 0
    %1311 = vmatpush.bf16.msra.mxu0 0
    %1312 = vmatpush.bf16.msra.mxu0 0
    %1313 = vmatpush.bf16.msra.mxu0 0
    %1314 = vmatpush.bf16.msra.mxu0 0
    %1315 = vmatpush.bf16.msra.mxu0 %v1294
    %1316 = vmatpush.bf16.msra.mxu0 %v1293
    %1317 = vmatmul.bf16.gmra.mxu0 %v1298
    %v1318 = vpop.f32.mrf.mxu0
    %v1319 = vadd.f32 0.0, %v1318
    %v1320 = vpop.f32.mrf.mxu0
    %v1321 = vadd.f32 0.0, %v1320
    %1322 = vmatmul.bf16.gmra.mxu0 %v1301
    %v1323 = vpop.f32.mrf.mxu0
    %v1324 = vadd.f32 0.0, %v1323
    %v1325 = vpop.f32.mrf.mxu0
    %v1326 = vadd.f32 0.0, %v1325
    %1327 = vmatmul.bf16.gmra.mxu0 %v1304
    %v1328 = vpop.f32.mrf.mxu0
    %v1329 = vadd.f32 0.0, %v1328
    %v1330 = vpop.f32.mrf.mxu0
    %v1331 = vadd.f32 0.0, %v1330
    %1332 = vmatmul.bf16.gmra.mxu0 %v1307
    %v1333 = vpop.f32.mrf.mxu0
    %v1334 = vadd.f32 0.0, %v1333
    %v1335 = vpop.f32.mrf.mxu0
    %v1336 = vadd.f32 0.0, %v1335
    %1337 = vdwg.mxu0
    %v1338 = vadd.f32 %v1153, %v1319
    %v1339 = vadd.f32 %v1154, %v1321
    %v1340 = vadd.f32 %v1155, %v1324
    %v1341 = vadd.f32 %v1156, %v1326
    %v1342 = vadd.f32 %v1157, %v1329
    %v1343 = vadd.f32 %v1158, %v1331
    %v1344 = vadd.f32 %v1159, %v1334
    %v1345 = vadd.f32 %v1160, %v1336
    %s1346 = scalar_lea.vmem %s2, 256
    %v1347 = vld [vmem:[%s1346] sm:$0xff]
    %v1348 = vld [vmem:[%s1346 + $0x8] sm:$0xff]
    %v1349 = vld [vmem:[%s1346 + $0x10] sm:$0xff]
    %v1350 = vld [vmem:[%s1346 + $0x18] sm:$0xff]
    %v1351 = vld [vmem:[%s1346 + $0x20] sm:$0xff]
    %v1352 = vld [vmem:[%s1346 + $0x28] sm:$0xff]
    %v1353 = vld [vmem:[%s1346 + $0x30] sm:$0xff]
    %v1354 = vld [vmem:[%s1346 + $0x38] sm:$0x33]
    %v1363 = vunpack.c.l.b16 %v1347
    %v1364 = vunpack.c.h.b16 %v1347
    %v1365 = vunpack.c.l.b16 %v1348
    %v1366 = vunpack.c.h.b16 %v1348
    %v1367 = vunpack.c.l.b16 %v1349
    %v1368 = vunpack.c.h.b16 %v1349
    %v1369 = vunpack.c.l.b16 %v1350
    %v1370 = vunpack.c.h.b16 %v1350
    %v1371 = vunpack.c.l.b16 %v1351
    %v1372 = vunpack.c.h.b16 %v1351
    %v1373 = vunpack.c.l.b16 %v1352
    %v1374 = vunpack.c.h.b16 %v1352
    %v1375 = vunpack.c.l.b16 %v1353
    %v1376 = vunpack.c.h.b16 %v1353
    %v1377 = vunpack.c.l.b16 %v1354
    %v1378 = vunpack.c.h.b16 %v1354
    %v1379 = vpack.c.b16 %v1365, %v1363
    %v1380 = vpack.c.b16 %v1366, %v1364
    %v1381 = vpack.c.b16 %v1369, %v1367
    %v1382 = vpack.c.b16 %v1370, %v1368
    %v1383 = vpack.c.b16 %v1373, %v1371
    %v1384 = vpack.c.b16 %v1374, %v1372
    %v1385 = vpack.c.b16 %v1377, %v1375
    %v1386 = vpack.c.b16 %v1378, %v1376
    %v1392 = vsel %vm663, %v1380, 0
    %v1395 = vsel %vm663, %v1382, 0
    %v1398 = vsel %vm663, %v1384, 0
    %v1401 = vsel %vm663, %v1386, 0
    %1403 = vmatpush.bf16.msra.mxu0 %v610
    %1404 = vmatpush.bf16.msra.mxu0 %v609
    %1405 = vmatpush.bf16.msra.mxu0 %v608
    %1406 = vmatpush.bf16.msra.mxu0 %v607
    %1407 = vmatpush.bf16.msra.mxu0 %v606
    %1408 = vmatpush.bf16.msra.mxu0 %v605
    %1409 = vmatpush.bf16.msra.mxu0 %v604
    %1410 = vmatpush.bf16.msra.mxu0 %v603
    %1411 = vmatmul.bf16.gmra.mxu0 %v1379
    %v1412 = vpop.f32.mrf.mxu0
    %v1413 = vadd.f32 0.0, %v1412
    %v1414 = vpop.f32.mrf.mxu0
    %v1415 = vadd.f32 0.0, %v1414
    %1416 = vmatmul.bf16.gmra.mxu0 %v1381
    %v1417 = vpop.f32.mrf.mxu0
    %v1418 = vadd.f32 0.0, %v1417
    %v1419 = vpop.f32.mrf.mxu0
    %v1420 = vadd.f32 0.0, %v1419
    %1421 = vmatmul.bf16.gmra.mxu0 %v1383
    %v1422 = vpop.f32.mrf.mxu0
    %v1423 = vadd.f32 0.0, %v1422
    %v1424 = vpop.f32.mrf.mxu0
    %v1425 = vadd.f32 0.0, %v1424
    %1426 = vmatmul.bf16.gmra.mxu0 %v1385
    %v1427 = vpop.f32.mrf.mxu0
    %v1428 = vadd.f32 0.0, %v1427
    %v1429 = vpop.f32.mrf.mxu0
    %v1430 = vadd.f32 0.0, %v1429
    %1431 = vdwg.mxu0
    %1432 = vmatpush.bf16.msra.mxu0 %v678
    %1433 = vmatpush.bf16.msra.mxu0 %v617
    %1434 = vmatpush.bf16.msra.mxu0 %v616
    %1435 = vmatpush.bf16.msra.mxu0 %v615
    %1436 = vmatpush.bf16.msra.mxu0 %v614
    %1437 = vmatpush.bf16.msra.mxu0 %v613
    %1438 = vmatpush.bf16.msra.mxu0 %v612
    %1439 = vmatpush.bf16.msra.mxu0 %v611
    %1440 = vmatmul.bf16.gmra.mxu0 %v1392
    %v1441 = vpop.f32.mrf.mxu0
    %v1442 = vadd.f32 %v1413, %v1441
    %v1443 = vpop.f32.mrf.mxu0
    %v1444 = vadd.f32 %v1415, %v1443
    %1445 = vmatmul.bf16.gmra.mxu0 %v1395
    %v1446 = vpop.f32.mrf.mxu0
    %v1447 = vadd.f32 %v1418, %v1446
    %v1448 = vpop.f32.mrf.mxu0
    %v1449 = vadd.f32 %v1420, %v1448
    %1450 = vmatmul.bf16.gmra.mxu0 %v1398
    %v1451 = vpop.f32.mrf.mxu0
    %v1452 = vadd.f32 %v1423, %v1451
    %v1453 = vpop.f32.mrf.mxu0
    %v1454 = vadd.f32 %v1425, %v1453
    %1455 = vmatmul.bf16.gmra.mxu0 %v1401
    %v1456 = vpop.f32.mrf.mxu0
    %v1457 = vadd.f32 %v1428, %v1456
    %v1458 = vpop.f32.mrf.mxu0
    %v1459 = vadd.f32 %v1430, %v1458
    %1460 = vdwg.mxu0
    %v1461 = vpack.c.bf16 %v1444, %v1442
    %v1462 = vpack.c.bf16 %v1449, %v1447
    %v1463 = vpack.c.bf16 %v1454, %v1452
    %v1464 = vpack.c.bf16 %v1459, %v1457
    %s1465 = scalar_lea.vmem %s3, 64
    %v1466 = vld [vmem:[%s1465] sm:$0xf]
    %v1467 = vld [vmem:[%s1465 + $0x4] sm:$0xf]
    %v1468 = vld [vmem:[%s1465 + $0x8] sm:$0xf]
    %v1469 = vld [vmem:[%s1465 + $0xc] sm:$0xf]
    %v1474 = vunpack.c.l.b16 %v1466
    %v1475 = vunpack.c.l.b16 %v1467
    %v1476 = vunpack.c.l.b16 %v1468
    %v1477 = vunpack.c.l.b16 %v1469
    %v1478 = vpack.c.b16 %v1475, %v1474
    %v1479 = vpack.c.b16 %v1477, %v1476
    %v1483 = vsel %vm313, %v1461, 0
    %v1486 = vsel %vm313, %v1462, 0
    %v1489 = vsel %vm313, %v1463, 0
    %v1492 = vsel %vm313, %v1464, 0
    %1494 = vmatpush.bf16.msra.mxu0 0
    %1495 = vmatpush.bf16.msra.mxu0 0
    %1496 = vmatpush.bf16.msra.mxu0 0
    %1497 = vmatpush.bf16.msra.mxu0 0
    %1498 = vmatpush.bf16.msra.mxu0 0
    %1499 = vmatpush.bf16.msra.mxu0 0
    %1500 = vmatpush.bf16.msra.mxu0 %v1479
    %1501 = vmatpush.bf16.msra.mxu0 %v1478
    %1502 = vmatmul.bf16.gmra.mxu0 %v1483
    %v1503 = vpop.f32.mrf.mxu0
    %v1504 = vadd.f32 0.0, %v1503
    %v1505 = vpop.f32.mrf.mxu0
    %v1506 = vadd.f32 0.0, %v1505
    %1507 = vmatmul.bf16.gmra.mxu0 %v1486
    %v1508 = vpop.f32.mrf.mxu0
    %v1509 = vadd.f32 0.0, %v1508
    %v1510 = vpop.f32.mrf.mxu0
    %v1511 = vadd.f32 0.0, %v1510
    %1512 = vmatmul.bf16.gmra.mxu0 %v1489
    %v1513 = vpop.f32.mrf.mxu0
    %v1514 = vadd.f32 0.0, %v1513
    %v1515 = vpop.f32.mrf.mxu0
    %v1516 = vadd.f32 0.0, %v1515
    %1517 = vmatmul.bf16.gmra.mxu0 %v1492
    %v1518 = vpop.f32.mrf.mxu0
    %v1519 = vadd.f32 0.0, %v1518
    %v1520 = vpop.f32.mrf.mxu0
    %v1521 = vadd.f32 0.0, %v1520
    %1522 = vdwg.mxu0
    %v1523 = vadd.f32 %v1338, %v1504
    %v1524 = vadd.f32 %v1339, %v1506
    %v1525 = vadd.f32 %v1340, %v1509
    %v1526 = vadd.f32 %v1341, %v1511
    %v1527 = vadd.f32 %v1342, %v1514
    %v1528 = vadd.f32 %v1343, %v1516
    %v1529 = vadd.f32 %v1344, %v1519
    %v1530 = vadd.f32 %v1345, %v1521
    %s1531 = scalar_lea.vmem %s2, 320
    %v1532 = vld [vmem:[%s1531] sm:$0xff]
    %v1533 = vld [vmem:[%s1531 + $0x8] sm:$0xff]
    %v1534 = vld [vmem:[%s1531 + $0x10] sm:$0xff]
    %v1535 = vld [vmem:[%s1531 + $0x18] sm:$0xff]
    %v1536 = vld [vmem:[%s1531 + $0x20] sm:$0xff]
    %v1537 = vld [vmem:[%s1531 + $0x28] sm:$0xff]
    %v1538 = vld [vmem:[%s1531 + $0x30] sm:$0xff]
    %v1539 = vld [vmem:[%s1531 + $0x38] sm:$0x33]
    %v1548 = vunpack.c.l.b16 %v1532
    %v1549 = vunpack.c.h.b16 %v1532
    %v1550 = vunpack.c.l.b16 %v1533
    %v1551 = vunpack.c.h.b16 %v1533
    %v1552 = vunpack.c.l.b16 %v1534
    %v1553 = vunpack.c.h.b16 %v1534
    %v1554 = vunpack.c.l.b16 %v1535
    %v1555 = vunpack.c.h.b16 %v1535
    %v1556 = vunpack.c.l.b16 %v1536
    %v1557 = vunpack.c.h.b16 %v1536
    %v1558 = vunpack.c.l.b16 %v1537
    %v1559 = vunpack.c.h.b16 %v1537
    %v1560 = vunpack.c.l.b16 %v1538
    %v1561 = vunpack.c.h.b16 %v1538
    %v1562 = vunpack.c.l.b16 %v1539
    %v1563 = vunpack.c.h.b16 %v1539
    %v1564 = vpack.c.b16 %v1550, %v1548
    %v1565 = vpack.c.b16 %v1551, %v1549
    %v1566 = vpack.c.b16 %v1554, %v1552
    %v1567 = vpack.c.b16 %v1555, %v1553
    %v1568 = vpack.c.b16 %v1558, %v1556
    %v1569 = vpack.c.b16 %v1559, %v1557
    %v1570 = vpack.c.b16 %v1562, %v1560
    %v1571 = vpack.c.b16 %v1563, %v1561
    %v1577 = vsel %vm663, %v1565, 0
    %v1580 = vsel %vm663, %v1567, 0
    %v1583 = vsel %vm663, %v1569, 0
    %v1586 = vsel %vm663, %v1571, 0
    %1588 = vmatpush.bf16.msra.mxu0 %v610
    %1589 = vmatpush.bf16.msra.mxu0 %v609
    %1590 = vmatpush.bf16.msra.mxu0 %v608
    %1591 = vmatpush.bf16.msra.mxu0 %v607
    %1592 = vmatpush.bf16.msra.mxu0 %v606
    %1593 = vmatpush.bf16.msra.mxu0 %v605
    %1594 = vmatpush.bf16.msra.mxu0 %v604
    %1595 = vmatpush.bf16.msra.mxu0 %v603
    %1596 = vmatmul.bf16.gmra.mxu0 %v1564
    %v1597 = vpop.f32.mrf.mxu0
    %v1598 = vadd.f32 0.0, %v1597
    %v1599 = vpop.f32.mrf.mxu0
    %v1600 = vadd.f32 0.0, %v1599
    %1601 = vmatmul.bf16.gmra.mxu0 %v1566
    %v1602 = vpop.f32.mrf.mxu0
    %v1603 = vadd.f32 0.0, %v1602
    %v1604 = vpop.f32.mrf.mxu0
    %v1605 = vadd.f32 0.0, %v1604
    %1606 = vmatmul.bf16.gmra.mxu0 %v1568
    %v1607 = vpop.f32.mrf.mxu0
    %v1608 = vadd.f32 0.0, %v1607
    %v1609 = vpop.f32.mrf.mxu0
    %v1610 = vadd.f32 0.0, %v1609
    %1611 = vmatmul.bf16.gmra.mxu0 %v1570
    %v1612 = vpop.f32.mrf.mxu0
    %v1613 = vadd.f32 0.0, %v1612
    %v1614 = vpop.f32.mrf.mxu0
    %v1615 = vadd.f32 0.0, %v1614
    %1616 = vdwg.mxu0
    %1617 = vmatpush.bf16.msra.mxu0 %v678
    %1618 = vmatpush.bf16.msra.mxu0 %v617
    %1619 = vmatpush.bf16.msra.mxu0 %v616
    %1620 = vmatpush.bf16.msra.mxu0 %v615
    %1621 = vmatpush.bf16.msra.mxu0 %v614
    %1622 = vmatpush.bf16.msra.mxu0 %v613
    %1623 = vmatpush.bf16.msra.mxu0 %v612
    %1624 = vmatpush.bf16.msra.mxu0 %v611
    %1625 = vmatmul.bf16.gmra.mxu0 %v1577
    %v1626 = vpop.f32.mrf.mxu0
    %v1627 = vadd.f32 %v1598, %v1626
    %v1628 = vpop.f32.mrf.mxu0
    %v1629 = vadd.f32 %v1600, %v1628
    %1630 = vmatmul.bf16.gmra.mxu0 %v1580
    %v1631 = vpop.f32.mrf.mxu0
    %v1632 = vadd.f32 %v1603, %v1631
    %v1633 = vpop.f32.mrf.mxu0
    %v1634 = vadd.f32 %v1605, %v1633
    %1635 = vmatmul.bf16.gmra.mxu0 %v1583
    %v1636 = vpop.f32.mrf.mxu0
    %v1637 = vadd.f32 %v1608, %v1636
    %v1638 = vpop.f32.mrf.mxu0
    %v1639 = vadd.f32 %v1610, %v1638
    %1640 = vmatmul.bf16.gmra.mxu0 %v1586
    %v1641 = vpop.f32.mrf.mxu0
    %v1642 = vadd.f32 %v1613, %v1641
    %v1643 = vpop.f32.mrf.mxu0
    %v1644 = vadd.f32 %v1615, %v1643
    %1645 = vdwg.mxu0
    %v1646 = vpack.c.bf16 %v1629, %v1627
    %v1647 = vpack.c.bf16 %v1634, %v1632
    %v1648 = vpack.c.bf16 %v1639, %v1637
    %v1649 = vpack.c.bf16 %v1644, %v1642
    %s1650 = scalar_lea.vmem %s3, 80
    %v1651 = vld [vmem:[%s1650] sm:$0xf]
    %v1652 = vld [vmem:[%s1650 + $0x4] sm:$0xf]
    %v1653 = vld [vmem:[%s1650 + $0x8] sm:$0xf]
    %v1654 = vld [vmem:[%s1650 + $0xc] sm:$0xf]
    %v1659 = vunpack.c.l.b16 %v1651
    %v1660 = vunpack.c.l.b16 %v1652
    %v1661 = vunpack.c.l.b16 %v1653
    %v1662 = vunpack.c.l.b16 %v1654
    %v1663 = vpack.c.b16 %v1660, %v1659
    %v1664 = vpack.c.b16 %v1662, %v1661
    %v1668 = vsel %vm313, %v1646, 0
    %v1671 = vsel %vm313, %v1647, 0
    %v1674 = vsel %vm313, %v1648, 0
    %v1677 = vsel %vm313, %v1649, 0
    %1679 = vmatpush.bf16.msra.mxu0 0
    %1680 = vmatpush.bf16.msra.mxu0 0
    %1681 = vmatpush.bf16.msra.mxu0 0
    %1682 = vmatpush.bf16.msra.mxu0 0
    %1683 = vmatpush.bf16.msra.mxu0 0
    %1684 = vmatpush.bf16.msra.mxu0 0
    %1685 = vmatpush.bf16.msra.mxu0 %v1664
    %1686 = vmatpush.bf16.msra.mxu0 %v1663
    %1687 = vmatmul.bf16.gmra.mxu0 %v1668
    %v1688 = vpop.f32.mrf.mxu0
    %v1689 = vadd.f32 0.0, %v1688
    %v1690 = vpop.f32.mrf.mxu0
    %v1691 = vadd.f32 0.0, %v1690
    %1692 = vmatmul.bf16.gmra.mxu0 %v1671
    %v1693 = vpop.f32.mrf.mxu0
    %v1694 = vadd.f32 0.0, %v1693
    %v1695 = vpop.f32.mrf.mxu0
    %v1696 = vadd.f32 0.0, %v1695
    %1697 = vmatmul.bf16.gmra.mxu0 %v1674
    %v1698 = vpop.f32.mrf.mxu0
    %v1699 = vadd.f32 0.0, %v1698
    %v1700 = vpop.f32.mrf.mxu0
    %v1701 = vadd.f32 0.0, %v1700
    %1702 = vmatmul.bf16.gmra.mxu0 %v1677
    %v1703 = vpop.f32.mrf.mxu0
    %v1704 = vadd.f32 0.0, %v1703
    %v1705 = vpop.f32.mrf.mxu0
    %v1706 = vadd.f32 0.0, %v1705
    %1707 = vdwg.mxu0
    %v1708 = vadd.f32 %v1523, %v1689
    %v1709 = vadd.f32 %v1524, %v1691
    %v1710 = vadd.f32 %v1525, %v1694
    %v1711 = vadd.f32 %v1526, %v1696
    %v1712 = vadd.f32 %v1527, %v1699
    %v1713 = vadd.f32 %v1528, %v1701
    %v1714 = vadd.f32 %v1529, %v1704
    %v1715 = vadd.f32 %v1530, %v1706
    %s1716 = scalar_lea.vmem %s2, 384
    %v1717 = vld [vmem:[%s1716] sm:$0xff]
    %v1718 = vld [vmem:[%s1716 + $0x8] sm:$0xff]
    %v1719 = vld [vmem:[%s1716 + $0x10] sm:$0xff]
    %v1720 = vld [vmem:[%s1716 + $0x18] sm:$0xff]
    %v1721 = vld [vmem:[%s1716 + $0x20] sm:$0xff]
    %v1722 = vld [vmem:[%s1716 + $0x28] sm:$0xff]
    %v1723 = vld [vmem:[%s1716 + $0x30] sm:$0xff]
    %v1724 = vld [vmem:[%s1716 + $0x38] sm:$0x33]
    %v1733 = vunpack.c.l.b16 %v1717
    %v1734 = vunpack.c.h.b16 %v1717
    %v1735 = vunpack.c.l.b16 %v1718
    %v1736 = vunpack.c.h.b16 %v1718
    %v1737 = vunpack.c.l.b16 %v1719
    %v1738 = vunpack.c.h.b16 %v1719
    %v1739 = vunpack.c.l.b16 %v1720
    %v1740 = vunpack.c.h.b16 %v1720
    %v1741 = vunpack.c.l.b16 %v1721
    %v1742 = vunpack.c.h.b16 %v1721
    %v1743 = vunpack.c.l.b16 %v1722
    %v1744 = vunpack.c.h.b16 %v1722
    %v1745 = vunpack.c.l.b16 %v1723
    %v1746 = vunpack.c.h.b16 %v1723
    %v1747 = vunpack.c.l.b16 %v1724
    %v1748 = vunpack.c.h.b16 %v1724
    %v1749 = vpack.c.b16 %v1735, %v1733
    %v1750 = vpack.c.b16 %v1736, %v1734
    %v1751 = vpack.c.b16 %v1739, %v1737
    %v1752 = vpack.c.b16 %v1740, %v1738
    %v1753 = vpack.c.b16 %v1743, %v1741
    %v1754 = vpack.c.b16 %v1744, %v1742
    %v1755 = vpack.c.b16 %v1747, %v1745
    %v1756 = vpack.c.b16 %v1748, %v1746
    %v1762 = vsel %vm663, %v1750, 0
    %v1765 = vsel %vm663, %v1752, 0
    %v1768 = vsel %vm663, %v1754, 0
    %v1771 = vsel %vm663, %v1756, 0
    %1773 = vmatpush.bf16.msra.mxu0 %v610
    %1774 = vmatpush.bf16.msra.mxu0 %v609
    %1775 = vmatpush.bf16.msra.mxu0 %v608
    %1776 = vmatpush.bf16.msra.mxu0 %v607
    %1777 = vmatpush.bf16.msra.mxu0 %v606
    %1778 = vmatpush.bf16.msra.mxu0 %v605
    %1779 = vmatpush.bf16.msra.mxu0 %v604
    %1780 = vmatpush.bf16.msra.mxu0 %v603
    %1781 = vmatmul.bf16.gmra.mxu0 %v1749
    %v1782 = vpop.f32.mrf.mxu0
    %v1783 = vadd.f32 0.0, %v1782
    %v1784 = vpop.f32.mrf.mxu0
    %v1785 = vadd.f32 0.0, %v1784
    %1786 = vmatmul.bf16.gmra.mxu0 %v1751
    %v1787 = vpop.f32.mrf.mxu0
    %v1788 = vadd.f32 0.0, %v1787
    %v1789 = vpop.f32.mrf.mxu0
    %v1790 = vadd.f32 0.0, %v1789
    %1791 = vmatmul.bf16.gmra.mxu0 %v1753
    %v1792 = vpop.f32.mrf.mxu0
    %v1793 = vadd.f32 0.0, %v1792
    %v1794 = vpop.f32.mrf.mxu0
    %v1795 = vadd.f32 0.0, %v1794
    %1796 = vmatmul.bf16.gmra.mxu0 %v1755
    %v1797 = vpop.f32.mrf.mxu0
    %v1798 = vadd.f32 0.0, %v1797
    %v1799 = vpop.f32.mrf.mxu0
    %v1800 = vadd.f32 0.0, %v1799
    %1801 = vdwg.mxu0
    %1802 = vmatpush.bf16.msra.mxu0 %v678
    %1803 = vmatpush.bf16.msra.mxu0 %v617
    %1804 = vmatpush.bf16.msra.mxu0 %v616
    %1805 = vmatpush.bf16.msra.mxu0 %v615
    %1806 = vmatpush.bf16.msra.mxu0 %v614
    %1807 = vmatpush.bf16.msra.mxu0 %v613
    %1808 = vmatpush.bf16.msra.mxu0 %v612
    %1809 = vmatpush.bf16.msra.mxu0 %v611
    %1810 = vmatmul.bf16.gmra.mxu0 %v1762
    %v1811 = vpop.f32.mrf.mxu0
    %v1812 = vadd.f32 %v1783, %v1811
    %v1813 = vpop.f32.mrf.mxu0
    %v1814 = vadd.f32 %v1785, %v1813
    %1815 = vmatmul.bf16.gmra.mxu0 %v1765
    %v1816 = vpop.f32.mrf.mxu0
    %v1817 = vadd.f32 %v1788, %v1816
    %v1818 = vpop.f32.mrf.mxu0
    %v1819 = vadd.f32 %v1790, %v1818
    %1820 = vmatmul.bf16.gmra.mxu0 %v1768
    %v1821 = vpop.f32.mrf.mxu0
    %v1822 = vadd.f32 %v1793, %v1821
    %v1823 = vpop.f32.mrf.mxu0
    %v1824 = vadd.f32 %v1795, %v1823
    %1825 = vmatmul.bf16.gmra.mxu0 %v1771
    %v1826 = vpop.f32.mrf.mxu0
    %v1827 = vadd.f32 %v1798, %v1826
    %v1828 = vpop.f32.mrf.mxu0
    %v1829 = vadd.f32 %v1800, %v1828
    %1830 = vdwg.mxu0
    %v1831 = vpack.c.bf16 %v1814, %v1812
    %v1832 = vpack.c.bf16 %v1819, %v1817
    %v1833 = vpack.c.bf16 %v1824, %v1822
    %v1834 = vpack.c.bf16 %v1829, %v1827
    %s1835 = scalar_lea.vmem %s3, 96
    %v1836 = vld [vmem:[%s1835] sm:$0xf]
    %v1837 = vld [vmem:[%s1835 + $0x4] sm:$0xf]
    %v1838 = vld [vmem:[%s1835 + $0x8] sm:$0xf]
    %v1839 = vld [vmem:[%s1835 + $0xc] sm:$0xf]
    %v1844 = vunpack.c.l.b16 %v1836
    %v1845 = vunpack.c.l.b16 %v1837
    %v1846 = vunpack.c.l.b16 %v1838
    %v1847 = vunpack.c.l.b16 %v1839
    %v1848 = vpack.c.b16 %v1845, %v1844
    %v1849 = vpack.c.b16 %v1847, %v1846
    %v1853 = vsel %vm313, %v1831, 0
    %v1856 = vsel %vm313, %v1832, 0
    %v1859 = vsel %vm313, %v1833, 0
    %v1862 = vsel %vm313, %v1834, 0
    %1864 = vmatpush.bf16.msra.mxu0 0
    %1865 = vmatpush.bf16.msra.mxu0 0
    %1866 = vmatpush.bf16.msra.mxu0 0
    %1867 = vmatpush.bf16.msra.mxu0 0
    %1868 = vmatpush.bf16.msra.mxu0 0
    %1869 = vmatpush.bf16.msra.mxu0 0
    %1870 = vmatpush.bf16.msra.mxu0 %v1849
    %1871 = vmatpush.bf16.msra.mxu0 %v1848
    %1872 = vmatmul.bf16.gmra.mxu0 %v1853
    %v1873 = vpop.f32.mrf.mxu0
    %v1874 = vadd.f32 0.0, %v1873
    %v1875 = vpop.f32.mrf.mxu0
    %v1876 = vadd.f32 0.0, %v1875
    %1877 = vmatmul.bf16.gmra.mxu0 %v1856
    %v1878 = vpop.f32.mrf.mxu0
    %v1879 = vadd.f32 0.0, %v1878
    %v1880 = vpop.f32.mrf.mxu0
    %v1881 = vadd.f32 0.0, %v1880
    %1882 = vmatmul.bf16.gmra.mxu0 %v1859
    %v1883 = vpop.f32.mrf.mxu0
    %v1884 = vadd.f32 0.0, %v1883
    %v1885 = vpop.f32.mrf.mxu0
    %v1886 = vadd.f32 0.0, %v1885
    %1887 = vmatmul.bf16.gmra.mxu0 %v1862
    %v1888 = vpop.f32.mrf.mxu0
    %v1889 = vadd.f32 0.0, %v1888
    %v1890 = vpop.f32.mrf.mxu0
    %v1891 = vadd.f32 0.0, %v1890
    %1892 = vdwg.mxu0
    %v1893 = vadd.f32 %v1708, %v1874
    %v1894 = vadd.f32 %v1709, %v1876
    %v1895 = vadd.f32 %v1710, %v1879
    %v1896 = vadd.f32 %v1711, %v1881
    %v1897 = vadd.f32 %v1712, %v1884
    %v1898 = vadd.f32 %v1713, %v1886
    %v1899 = vadd.f32 %v1714, %v1889
    %v1900 = vadd.f32 %v1715, %v1891
    %s1901 = scalar_lea.vmem %s2, 448
    %v1902 = vld [vmem:[%s1901] sm:$0xff]
    %v1903 = vld [vmem:[%s1901 + $0x8] sm:$0xff]
    %v1904 = vld [vmem:[%s1901 + $0x10] sm:$0xff]
    %v1905 = vld [vmem:[%s1901 + $0x18] sm:$0xff]
    %v1906 = vld [vmem:[%s1901 + $0x20] sm:$0xff]
    %v1907 = vld [vmem:[%s1901 + $0x28] sm:$0xff]
    %v1908 = vld [vmem:[%s1901 + $0x30] sm:$0xff]
    %v1909 = vld [vmem:[%s1901 + $0x38] sm:$0x33]
    %v1918 = vunpack.c.l.b16 %v1902
    %v1919 = vunpack.c.h.b16 %v1902
    %v1920 = vunpack.c.l.b16 %v1903
    %v1921 = vunpack.c.h.b16 %v1903
    %v1922 = vunpack.c.l.b16 %v1904
    %v1923 = vunpack.c.h.b16 %v1904
    %v1924 = vunpack.c.l.b16 %v1905
    %v1925 = vunpack.c.h.b16 %v1905
    %v1926 = vunpack.c.l.b16 %v1906
    %v1927 = vunpack.c.h.b16 %v1906
    %v1928 = vunpack.c.l.b16 %v1907
    %v1929 = vunpack.c.h.b16 %v1907
    %v1930 = vunpack.c.l.b16 %v1908
    %v1931 = vunpack.c.h.b16 %v1908
    %v1932 = vunpack.c.l.b16 %v1909
    %v1933 = vunpack.c.h.b16 %v1909
    %v1934 = vpack.c.b16 %v1920, %v1918
    %v1935 = vpack.c.b16 %v1921, %v1919
    %v1936 = vpack.c.b16 %v1924, %v1922
    %v1937 = vpack.c.b16 %v1925, %v1923
    %v1938 = vpack.c.b16 %v1928, %v1926
    %v1939 = vpack.c.b16 %v1929, %v1927
    %v1940 = vpack.c.b16 %v1932, %v1930
    %v1941 = vpack.c.b16 %v1933, %v1931
    %v1947 = vsel %vm663, %v1935, 0
    %v1950 = vsel %vm663, %v1937, 0
    %v1953 = vsel %vm663, %v1939, 0
    %v1956 = vsel %vm663, %v1941, 0
    %1958 = vmatpush.bf16.msra.mxu0 %v610
    %1959 = vmatpush.bf16.msra.mxu0 %v609
    %1960 = vmatpush.bf16.msra.mxu0 %v608
    %1961 = vmatpush.bf16.msra.mxu0 %v607
    %1962 = vmatpush.bf16.msra.mxu0 %v606
    %1963 = vmatpush.bf16.msra.mxu0 %v605
    %1964 = vmatpush.bf16.msra.mxu0 %v604
    %1965 = vmatpush.bf16.msra.mxu0 %v603
    %1966 = vmatmul.bf16.gmra.mxu0 %v1934
    %v1967 = vpop.f32.mrf.mxu0
    %v1968 = vadd.f32 0.0, %v1967
    %v1969 = vpop.f32.mrf.mxu0
    %v1970 = vadd.f32 0.0, %v1969
    %1971 = vmatmul.bf16.gmra.mxu0 %v1936
    %v1972 = vpop.f32.mrf.mxu0
    %v1973 = vadd.f32 0.0, %v1972
    %v1974 = vpop.f32.mrf.mxu0
    %v1975 = vadd.f32 0.0, %v1974
    %1976 = vmatmul.bf16.gmra.mxu0 %v1938
    %v1977 = vpop.f32.mrf.mxu0
    %v1978 = vadd.f32 0.0, %v1977
    %v1979 = vpop.f32.mrf.mxu0
    %v1980 = vadd.f32 0.0, %v1979
    %1981 = vmatmul.bf16.gmra.mxu0 %v1940
    %v1982 = vpop.f32.mrf.mxu0
    %v1983 = vadd.f32 0.0, %v1982
    %v1984 = vpop.f32.mrf.mxu0
    %v1985 = vadd.f32 0.0, %v1984
    %1986 = vdwg.mxu0
    %1987 = vmatpush.bf16.msra.mxu0 %v678
    %1988 = vmatpush.bf16.msra.mxu0 %v617
    %1989 = vmatpush.bf16.msra.mxu0 %v616
    %1990 = vmatpush.bf16.msra.mxu0 %v615
    %1991 = vmatpush.bf16.msra.mxu0 %v614
    %1992 = vmatpush.bf16.msra.mxu0 %v613
    %1993 = vmatpush.bf16.msra.mxu0 %v612
    %1994 = vmatpush.bf16.msra.mxu0 %v611
    %1995 = vmatmul.bf16.gmra.mxu0 %v1947
    %v1996 = vpop.f32.mrf.mxu0
    %v1997 = vadd.f32 %v1968, %v1996
    %v1998 = vpop.f32.mrf.mxu0
    %v1999 = vadd.f32 %v1970, %v1998
    %2000 = vmatmul.bf16.gmra.mxu0 %v1950
    %v2001 = vpop.f32.mrf.mxu0
    %v2002 = vadd.f32 %v1973, %v2001
    %v2003 = vpop.f32.mrf.mxu0
    %v2004 = vadd.f32 %v1975, %v2003
    %2005 = vmatmul.bf16.gmra.mxu0 %v1953
    %v2006 = vpop.f32.mrf.mxu0
    %v2007 = vadd.f32 %v1978, %v2006
    %v2008 = vpop.f32.mrf.mxu0
    %v2009 = vadd.f32 %v1980, %v2008
    %2010 = vmatmul.bf16.gmra.mxu0 %v1956
    %v2011 = vpop.f32.mrf.mxu0
    %v2012 = vadd.f32 %v1983, %v2011
    %v2013 = vpop.f32.mrf.mxu0
    %v2014 = vadd.f32 %v1985, %v2013
    %2015 = vdwg.mxu0
    %v2016 = vpack.c.bf16 %v1999, %v1997
    %v2017 = vpack.c.bf16 %v2004, %v2002
    %v2018 = vpack.c.bf16 %v2009, %v2007
    %v2019 = vpack.c.bf16 %v2014, %v2012
    %s2020 = scalar_lea.vmem %s3, 112
    %v2021 = vld [vmem:[%s2020] sm:$0xf]
    %v2022 = vld [vmem:[%s2020 + $0x4] sm:$0xf]
    %v2023 = vld [vmem:[%s2020 + $0x8] sm:$0xf]
    %v2024 = vld [vmem:[%s2020 + $0xc] sm:$0xf]
    %v2029 = vunpack.c.l.b16 %v2021
    %v2030 = vunpack.c.l.b16 %v2022
    %v2031 = vunpack.c.l.b16 %v2023
    %v2032 = vunpack.c.l.b16 %v2024
    %v2033 = vpack.c.b16 %v2030, %v2029
    %v2034 = vpack.c.b16 %v2032, %v2031
    %v2038 = vsel %vm313, %v2016, 0
    %v2041 = vsel %vm313, %v2017, 0
    %v2044 = vsel %vm313, %v2018, 0
    %v2047 = vsel %vm313, %v2019, 0
    %2049 = vmatpush.bf16.msra.mxu0 0
    %2050 = vmatpush.bf16.msra.mxu0 0
    %2051 = vmatpush.bf16.msra.mxu0 0
    %2052 = vmatpush.bf16.msra.mxu0 0
    %2053 = vmatpush.bf16.msra.mxu0 0
    %2054 = vmatpush.bf16.msra.mxu0 0
    %2055 = vmatpush.bf16.msra.mxu0 %v2034
    %2056 = vmatpush.bf16.msra.mxu0 %v2033
    %2057 = vmatmul.bf16.gmra.mxu0 %v2038
    %v2058 = vpop.f32.mrf.mxu0
    %v2059 = vadd.f32 0.0, %v2058
    %v2060 = vpop.f32.mrf.mxu0
    %v2061 = vadd.f32 0.0, %v2060
    %2062 = vmatmul.bf16.gmra.mxu0 %v2041
    %v2063 = vpop.f32.mrf.mxu0
    %v2064 = vadd.f32 0.0, %v2063
    %v2065 = vpop.f32.mrf.mxu0
    %v2066 = vadd.f32 0.0, %v2065
    %2067 = vmatmul.bf16.gmra.mxu0 %v2044
    %v2068 = vpop.f32.mrf.mxu0
    %v2069 = vadd.f32 0.0, %v2068
    %v2070 = vpop.f32.mrf.mxu0
    %v2071 = vadd.f32 0.0, %v2070
    %2072 = vmatmul.bf16.gmra.mxu0 %v2047
    %v2073 = vpop.f32.mrf.mxu0
    %v2074 = vadd.f32 0.0, %v2073
    %v2075 = vpop.f32.mrf.mxu0
    %v2076 = vadd.f32 0.0, %v2075
    %2077 = vdwg.mxu0
    %v2078 = vadd.f32 %v1893, %v2059
    %v2079 = vadd.f32 %v1894, %v2061
    %v2080 = vadd.f32 %v1895, %v2064
    %v2081 = vadd.f32 %v1896, %v2066
    %v2082 = vadd.f32 %v1897, %v2069
    %v2083 = vadd.f32 %v1898, %v2071
    %v2084 = vadd.f32 %v1899, %v2074
    %v2085 = vadd.f32 %v1900, %v2076
    %vm2086 = vcmask 523264
    %v2087 = vsel %vm2086, %v2078, 0.0
    %v2088 = vsel %vm2086, %v2079, 0.0
    %v2089 = vadd.f32 %v2087, %v2088
    %v2090 = vsel %vm2086, %v2080, 0.0
    %v2091 = vadd.f32 %v2089, %v2090
    %v2092 = vsel %vm2086, %v2081, 0.0
    %v2093 = vadd.f32 %v2091, %v2092
    %v2094 = vsel %vm2086, %v2082, 0.0
    %v2095 = vadd.f32 %v2093, %v2094
    %v2096 = vsel %vm2086, %v2083, 0.0
    %v2097 = vadd.f32 %v2095, %v2096
    %v2098 = vsel %vm2086, %v2084, 0.0
    %v2099 = vadd.f32 %v2097, %v2098
    %vm2100 = vcmask 519168
    %v2101 = vsel %vm2100, %v2085, 0.0
    %v2102 = vadd.f32 %v2099, %v2101
    %v2103 = vrot.slane %v2102, 4
    %v2104 = vadd.f32 %v2102, %v2103
    %v2105 = vrot.slane %v2104, 2
    %v2106 = vadd.f32 %v2104, %v2105
    %v2107 = vrot.slane %v2106, 1
    %v2108 = vadd.f32 %v2106, %v2107
    %v2109 = vmul.f32 %v2078, %v2078
    %v2110 = vmul.f32 %v2079, %v2079
    %v2111 = vmul.f32 %v2080, %v2080
    %v2112 = vmul.f32 %v2081, %v2081
    %v2113 = vmul.f32 %v2082, %v2082
    %v2114 = vmul.f32 %v2083, %v2083
    %v2115 = vmul.f32 %v2084, %v2084
    %v2116 = vmul.f32 %v2085, %v2085
    %v2117 = vsel %vm2086, %v2109, 0.0
    %v2118 = vsel %vm2086, %v2110, 0.0
    %v2119 = vadd.f32 %v2117, %v2118
    %v2120 = vsel %vm2086, %v2111, 0.0
    %v2121 = vadd.f32 %v2119, %v2120
    %v2122 = vsel %vm2086, %v2112, 0.0
    %v2123 = vadd.f32 %v2121, %v2122
    %v2124 = vsel %vm2086, %v2113, 0.0
    %v2125 = vadd.f32 %v2123, %v2124
    %v2126 = vsel %vm2086, %v2114, 0.0
    %v2127 = vadd.f32 %v2125, %v2126
    %v2128 = vsel %vm2086, %v2115, 0.0
    %v2129 = vadd.f32 %v2127, %v2128
    %v2130 = vsel %vm2100, %v2116, 0.0
    %v2131 = vadd.f32 %v2129, %v2130
    %v2132 = vrot.slane %v2131, 4
    %v2133 = vadd.f32 %v2131, %v2132
    %v2134 = vrot.slane %v2133, 2
    %v2135 = vadd.f32 %v2133, %v2134
    %v2136 = vrot.slane %v2135, 1
    %v2137 = vadd.f32 %v2135, %v2136
    %v2138 = vmul.f32 %v2108, 0.016666668
    %v2139 = vmul.f32 %v2137, 0.016666668
    %v2140 = vmul.f32 %v2138, %v2138
    %v2141 = vsub.f32 %v2139, %v2140
    %v2142 = vld [vmem:[%s12] sm:$0x1]
    %v2143 = vadd.f32 %v2141, 1e-05
    %v2144 = vrsqrt.pop %v2143
    %v2145 = vmul.f32 %v2144, %v2143
    %v2146 = vmul.f32 %v2145, %v2144
    %v2147 = vmul.f32 0.5, %v2146
    %v2148 = vsub.f32 1.5, %v2147
    %v2149 = vmul.f32 %v2144, %v2148
    %vm2150 = vweird.f32 %v2143
    %vm2151 = vweird.f32 %v2144
    %vm2152 = vmor %vm2150, %vm2151
    %v2153 = vsel %vm2152, %v2144, %v2149
    %v2154 = vmul.f32 %v2142, %v2153
    %v2155 = vld [vmem:[%s12 + $0x1] sm:$0x1]
    %v2156 = vmul.f32 %v2138, %v2154
    %v2157 = vsub.f32 %v2155, %v2156
    %v2158 = vperm.slane %v2154, 0
    %v2159 = vmul.f32 %v2078, %v2158
    %v2160 = vmul.f32 %v2079, %v2158
    %v2161 = vmul.f32 %v2080, %v2158
    %v2162 = vmul.f32 %v2081, %v2158
    %v2163 = vmul.f32 %v2082, %v2158
    %v2164 = vmul.f32 %v2083, %v2158
    %v2165 = vmul.f32 %v2084, %v2158
    %v2166 = vmul.f32 %v2085, %v2158
    %v2167 = vperm.slane %v2157, 0
    %v2168 = vadd.f32 %v2159, %v2167
    %v2169 = vadd.f32 %v2160, %v2167
    %v2170 = vadd.f32 %v2161, %v2167
    %v2171 = vadd.f32 %v2162, %v2167
    %v2172 = vadd.f32 %v2163, %v2167
    %v2173 = vadd.f32 %v2164, %v2167
    %v2174 = vadd.f32 %v2165, %v2167
    %v2175 = vadd.f32 %v2166, %v2167
    %v2176 = vmax.f32 %v2168, 0.0
    %v2177 = vmax.f32 %v2169, 0.0
    %v2178 = vmax.f32 %v2170, 0.0
    %v2179 = vmax.f32 %v2171, 0.0
    %v2180 = vmax.f32 %v2172, 0.0
    %v2181 = vmax.f32 %v2173, 0.0
    %v2182 = vmax.f32 %v2174, 0.0
    %v2183 = vmax.f32 %v2175, 0.0
    %v2184 = vpack.c.bf16 %v2177, %v2176
    %v2185 = vpack.c.bf16 %v2179, %v2178
    %v2186 = vpack.c.bf16 %v2181, %v2180
    %v2187 = vpack.c.bf16 %v2183, %v2182
    %v2188 = vld [vmem:[%s4] sm:$0xf]
    %v2189 = vld [vmem:[%s4 + $0x4] sm:$0x3]
    %v2192 = vunpack.c.l.b16 %v2188
    %v2193 = vunpack.c.l.b16 %v2189
    %v2194 = vpack.c.b16 %v2193, %v2192
    %vm2195 = vcmask 490496
    %v2197 = vsel %vm2195, %v2194, 0
    %vm2199 = vcmask 1045504
    %v2201 = vsel %vm2199, %v2187, 0
    %2203 = vmatpush.bf16.msra.mxu0 0
    %2204 = vmatpush.bf16.msra.mxu0 0
    %2205 = vmatpush.bf16.msra.mxu0 0
    %2206 = vmatpush.bf16.msra.mxu0 0
    %2207 = vmatpush.bf16.msra.mxu0 %v2201
    %2208 = vmatpush.bf16.msra.mxu0 %v2186
    %2209 = vmatpush.bf16.msra.mxu0 %v2185
    %2210 = vmatpush.bf16.msra.mxu0 %v2184
    %2211 = vmatmul.bf16.gmra.mxu0 %v2197
    %v2212 = vpop.f32.mrf.mxu0
    %v2213 = vadd.f32 0.0, %v2212
    %v2214 = vpop.f32.mrf.mxu0
    %v2215 = vadd.f32 0.0, %v2214
    %2216 = vdwg.mxu0
    %v2217 = vpack.c.bf16 %v2215, %v2213
    %v2218 = vld [vmem:[%s5] sm:$0xf]
    %v2219 = vld [vmem:[%s5 + $0x4] sm:$0xf]
    %v2220 = vld [vmem:[%s5 + $0x8] sm:$0xf]
    %v2221 = vld [vmem:[%s5 + $0xc] sm:$0xf]
    %v2222 = vld [vmem:[%s5 + $0x10] sm:$0xf]
    %v2223 = vld [vmem:[%s5 + $0x14] sm:$0xf]
    %v2224 = vld [vmem:[%s5 + $0x18] sm:$0xf]
    %v2225 = vld [vmem:[%s5 + $0x1c] sm:$0xf]
    %s2226 = scalar_lea.vmem %s4, 8
    %v2227 = vld [vmem:[%s2226] sm:$0xf]
    %v2228 = vld [vmem:[%s2226 + $0x4] sm:$0x3]
    %v2231 = vunpack.c.l.b16 %v2227
    %v2232 = vunpack.c.l.b16 %v2228
    %v2233 = vpack.c.b16 %v2232, %v2231
    %v2235 = vsel %vm2195, %v2233, 0
    %2237 = vmatpush.bf16.msra.mxu0 0
    %2238 = vmatpush.bf16.msra.mxu0 0
    %2239 = vmatpush.bf16.msra.mxu0 0
    %2240 = vmatpush.bf16.msra.mxu0 0
    %2241 = vmatpush.bf16.msra.mxu0 %v2201
    %2242 = vmatpush.bf16.msra.mxu0 %v2186
    %2243 = vmatpush.bf16.msra.mxu0 %v2185
    %2244 = vmatpush.bf16.msra.mxu0 %v2184
    %2245 = vmatmul.bf16.gmra.mxu0 %v2235
    %v2246 = vpop.f32.mrf.mxu0
    %v2247 = vadd.f32 0.0, %v2246
    %v2248 = vpop.f32.mrf.mxu0
    %v2249 = vadd.f32 0.0, %v2248
    %2250 = vdwg.mxu0
    %v2251 = vpack.c.bf16 %v2249, %v2247
    %s2252 = scalar_lea.vmem %s5, 32
    %v2253 = vld [vmem:[%s2252] sm:$0xf]
    %v2254 = vld [vmem:[%s2252 + $0x4] sm:$0xf]
    %v2255 = vld [vmem:[%s2252 + $0x8] sm:$0xf]
    %v2256 = vld [vmem:[%s2252 + $0xc] sm:$0xf]
    %v2257 = vld [vmem:[%s2252 + $0x10] sm:$0xf]
    %v2258 = vld [vmem:[%s2252 + $0x14] sm:$0xf]
    %v2259 = vld [vmem:[%s2252 + $0x18] sm:$0xf]
    %v2260 = vld [vmem:[%s2252 + $0x1c] sm:$0xf]
    %v2269 = vunpack.c.l.b16 %v2253
    %v2270 = vunpack.c.l.b16 %v2254
    %v2271 = vunpack.c.l.b16 %v2255
    %v2272 = vunpack.c.l.b16 %v2256
    %v2273 = vunpack.c.l.b16 %v2257
    %v2274 = vunpack.c.l.b16 %v2258
    %v2275 = vunpack.c.l.b16 %v2259
    %v2276 = vunpack.c.l.b16 %v2260
    %v2277 = vpack.c.b16 %v2270, %v2269
    %v2278 = vpack.c.b16 %v2272, %v2271
    %v2279 = vpack.c.b16 %v2274, %v2273
    %v2280 = vpack.c.b16 %v2276, %v2275
    %v2286 = vsel %vm2086, %v2251, 0
    %2288 = vmatpush.bf16.msra.mxu0 0
    %2289 = vmatpush.bf16.msra.mxu0 0
    %2290 = vmatpush.bf16.msra.mxu0 0
    %2291 = vmatpush.bf16.msra.mxu0 0
    %2292 = vmatpush.bf16.msra.mxu0 %v2280
    %2293 = vmatpush.bf16.msra.mxu0 %v2279
    %2294 = vmatpush.bf16.msra.mxu0 %v2278
    %2295 = vmatpush.bf16.msra.mxu0 %v2277
    %2296 = vmatmul.bf16.gmra.mxu0 %v2286
    %v2297 = vpop.f32.mrf.mxu0
    %v2298 = vadd.f32 0.0, %v2297
    %v2299 = vpop.f32.mrf.mxu0
    %v2300 = vadd.f32 0.0, %v2299
    %2301 = vdwg.mxu0
    %v2310 = vunpack.c.l.b16 %v2218
    %v2311 = vunpack.c.l.b16 %v2219
    %v2312 = vunpack.c.l.b16 %v2220
    %v2313 = vunpack.c.l.b16 %v2221
    %v2314 = vunpack.c.l.b16 %v2222
    %v2315 = vunpack.c.l.b16 %v2223
    %v2316 = vunpack.c.l.b16 %v2224
    %v2317 = vunpack.c.l.b16 %v2225
    %v2318 = vpack.c.b16 %v2311, %v2310
    %v2319 = vpack.c.b16 %v2313, %v2312
    %v2320 = vpack.c.b16 %v2315, %v2314
    %v2321 = vpack.c.b16 %v2317, %v2316
    %v2327 = vsel %vm2086, %v2217, 0
    %2329 = vmatpush.bf16.msra.mxu0 0
    %2330 = vmatpush.bf16.msra.mxu0 0
    %2331 = vmatpush.bf16.msra.mxu0 0
    %2332 = vmatpush.bf16.msra.mxu0 0
    %2333 = vmatpush.bf16.msra.mxu0 %v2321
    %2334 = vmatpush.bf16.msra.mxu0 %v2320
    %2335 = vmatpush.bf16.msra.mxu0 %v2319
    %2336 = vmatpush.bf16.msra.mxu0 %v2318
    %2337 = vmatmul.bf16.gmra.mxu0 %v2327
    %v2338 = vpop.f32.mrf.mxu0
    %v2339 = vadd.f32 %v2298, %v2338
    %v2340 = vpop.f32.mrf.mxu0
    %v2341 = vadd.f32 %v2300, %v2340
    %2342 = vdwg.mxu0
    %s2343 = scalar_lea.vmem %s4, 16
    %v2344 = vld [vmem:[%s2343] sm:$0xf]
    %v2345 = vld [vmem:[%s2343 + $0x4] sm:$0x3]
    %v2348 = vunpack.c.l.b16 %v2344
    %v2349 = vunpack.c.l.b16 %v2345
    %v2350 = vpack.c.b16 %v2349, %v2348
    %v2352 = vsel %vm2195, %v2350, 0
    %2354 = vmatpush.bf16.msra.mxu0 0
    %2355 = vmatpush.bf16.msra.mxu0 0
    %2356 = vmatpush.bf16.msra.mxu0 0
    %2357 = vmatpush.bf16.msra.mxu0 0
    %2358 = vmatpush.bf16.msra.mxu0 %v2201
    %2359 = vmatpush.bf16.msra.mxu0 %v2186
    %2360 = vmatpush.bf16.msra.mxu0 %v2185
    %2361 = vmatpush.bf16.msra.mxu0 %v2184
    %2362 = vmatmul.bf16.gmra.mxu0 %v2352
    %v2363 = vpop.f32.mrf.mxu0
    %v2364 = vadd.f32 0.0, %v2363
    %v2365 = vpop.f32.mrf.mxu0
    %v2366 = vadd.f32 0.0, %v2365
    %2367 = vdwg.mxu0
    %v2368 = vpack.c.bf16 %v2366, %v2364
    %s2369 = scalar_lea.vmem %s5, 64
    %v2370 = vld [vmem:[%s2369] sm:$0xf]
    %v2371 = vld [vmem:[%s2369 + $0x4] sm:$0xf]
    %v2372 = vld [vmem:[%s2369 + $0x8] sm:$0xf]
    %v2373 = vld [vmem:[%s2369 + $0xc] sm:$0xf]
    %v2374 = vld [vmem:[%s2369 + $0x10] sm:$0xf]
    %v2375 = vld [vmem:[%s2369 + $0x14] sm:$0xf]
    %v2376 = vld [vmem:[%s2369 + $0x18] sm:$0xf]
    %v2377 = vld [vmem:[%s2369 + $0x1c] sm:$0xf]
    %v2386 = vunpack.c.l.b16 %v2370
    %v2387 = vunpack.c.l.b16 %v2371
    %v2388 = vunpack.c.l.b16 %v2372
    %v2389 = vunpack.c.l.b16 %v2373
    %v2390 = vunpack.c.l.b16 %v2374
    %v2391 = vunpack.c.l.b16 %v2375
    %v2392 = vunpack.c.l.b16 %v2376
    %v2393 = vunpack.c.l.b16 %v2377
    %v2394 = vpack.c.b16 %v2387, %v2386
    %v2395 = vpack.c.b16 %v2389, %v2388
    %v2396 = vpack.c.b16 %v2391, %v2390
    %v2397 = vpack.c.b16 %v2393, %v2392
    %v2403 = vsel %vm2086, %v2368, 0
    %2405 = vmatpush.bf16.msra.mxu0 0
    %2406 = vmatpush.bf16.msra.mxu0 0
    %2407 = vmatpush.bf16.msra.mxu0 0
    %2408 = vmatpush.bf16.msra.mxu0 0
    %2409 = vmatpush.bf16.msra.mxu0 %v2397
    %2410 = vmatpush.bf16.msra.mxu0 %v2396
    %2411 = vmatpush.bf16.msra.mxu0 %v2395
    %2412 = vmatpush.bf16.msra.mxu0 %v2394
    %2413 = vmatmul.bf16.gmra.mxu0 %v2403
    %v2414 = vpop.f32.mrf.mxu0
    %v2415 = vadd.f32 0.0, %v2414
    %v2416 = vpop.f32.mrf.mxu0
    %v2417 = vadd.f32 0.0, %v2416
    %2418 = vdwg.mxu0
    %v2419 = vadd.f32 %v2339, %v2415
    %v2420 = vadd.f32 %v2341, %v2417
    %s2421 = scalar_lea.vmem %s4, 24
    %v2422 = vld [vmem:[%s2421] sm:$0xf]
    %v2423 = vld [vmem:[%s2421 + $0x4] sm:$0x3]
    %v2426 = vunpack.c.l.b16 %v2422
    %v2427 = vunpack.c.l.b16 %v2423
    %v2428 = vpack.c.b16 %v2427, %v2426
    %v2430 = vsel %vm2195, %v2428, 0
    %2432 = vmatpush.bf16.msra.mxu0 0
    %2433 = vmatpush.bf16.msra.mxu0 0
    %2434 = vmatpush.bf16.msra.mxu0 0
    %2435 = vmatpush.bf16.msra.mxu0 0
    %2436 = vmatpush.bf16.msra.mxu0 %v2201
    %2437 = vmatpush.bf16.msra.mxu0 %v2186
    %2438 = vmatpush.bf16.msra.mxu0 %v2185
    %2439 = vmatpush.bf16.msra.mxu0 %v2184
    %2440 = vmatmul.bf16.gmra.mxu0 %v2430
    %v2441 = vpop.f32.mrf.mxu0
    %v2442 = vadd.f32 0.0, %v2441
    %v2443 = vpop.f32.mrf.mxu0
    %v2444 = vadd.f32 0.0, %v2443
    %2445 = vdwg.mxu0
    %v2446 = vpack.c.bf16 %v2444, %v2442
    %s2447 = scalar_lea.vmem %s5, 96
    %v2448 = vld [vmem:[%s2447] sm:$0xf]
    %v2449 = vld [vmem:[%s2447 + $0x4] sm:$0xf]
    %v2450 = vld [vmem:[%s2447 + $0x8] sm:$0xf]
    %v2451 = vld [vmem:[%s2447 + $0xc] sm:$0xf]
    %v2452 = vld [vmem:[%s2447 + $0x10] sm:$0xf]
    %v2453 = vld [vmem:[%s2447 + $0x14] sm:$0xf]
    %v2454 = vld [vmem:[%s2447 + $0x18] sm:$0xf]
    %v2455 = vld [vmem:[%s2447 + $0x1c] sm:$0xf]
    %v2464 = vunpack.c.l.b16 %v2448
    %v2465 = vunpack.c.l.b16 %v2449
    %v2466 = vunpack.c.l.b16 %v2450
    %v2467 = vunpack.c.l.b16 %v2451
    %v2468 = vunpack.c.l.b16 %v2452
    %v2469 = vunpack.c.l.b16 %v2453
    %v2470 = vunpack.c.l.b16 %v2454
    %v2471 = vunpack.c.l.b16 %v2455
    %v2472 = vpack.c.b16 %v2465, %v2464
    %v2473 = vpack.c.b16 %v2467, %v2466
    %v2474 = vpack.c.b16 %v2469, %v2468
    %v2475 = vpack.c.b16 %v2471, %v2470
    %v2481 = vsel %vm2086, %v2446, 0
    %2483 = vmatpush.bf16.msra.mxu0 0
    %2484 = vmatpush.bf16.msra.mxu0 0
    %2485 = vmatpush.bf16.msra.mxu0 0
    %2486 = vmatpush.bf16.msra.mxu0 0
    %2487 = vmatpush.bf16.msra.mxu0 %v2475
    %2488 = vmatpush.bf16.msra.mxu0 %v2474
    %2489 = vmatpush.bf16.msra.mxu0 %v2473
    %2490 = vmatpush.bf16.msra.mxu0 %v2472
    %2491 = vmatmul.bf16.gmra.mxu0 %v2481
    %v2492 = vpop.f32.mrf.mxu0
    %v2493 = vadd.f32 0.0, %v2492
    %v2494 = vpop.f32.mrf.mxu0
    %v2495 = vadd.f32 0.0, %v2494
    %2496 = vdwg.mxu0
    %v2497 = vadd.f32 %v2419, %v2493
    %v2498 = vadd.f32 %v2420, %v2495
    %s2499 = scalar_lea.vmem %s4, 32
    %v2500 = vld [vmem:[%s2499] sm:$0xf]
    %v2501 = vld [vmem:[%s2499 + $0x4] sm:$0x3]
    %v2504 = vunpack.c.l.b16 %v2500
    %v2505 = vunpack.c.l.b16 %v2501
    %v2506 = vpack.c.b16 %v2505, %v2504
    %v2508 = vsel %vm2195, %v2506, 0
    %2510 = vmatpush.bf16.msra.mxu0 0
    %2511 = vmatpush.bf16.msra.mxu0 0
    %2512 = vmatpush.bf16.msra.mxu0 0
    %2513 = vmatpush.bf16.msra.mxu0 0
    %2514 = vmatpush.bf16.msra.mxu0 %v2201
    %2515 = vmatpush.bf16.msra.mxu0 %v2186
    %2516 = vmatpush.bf16.msra.mxu0 %v2185
    %2517 = vmatpush.bf16.msra.mxu0 %v2184
    %2518 = vmatmul.bf16.gmra.mxu0 %v2508
    %v2519 = vpop.f32.mrf.mxu0
    %v2520 = vadd.f32 0.0, %v2519
    %v2521 = vpop.f32.mrf.mxu0
    %v2522 = vadd.f32 0.0, %v2521
    %2523 = vdwg.mxu0
    %v2524 = vpack.c.bf16 %v2522, %v2520
    %s2525 = scalar_lea.vmem %s5, 128
    %v2526 = vld [vmem:[%s2525] sm:$0xf]
    %v2527 = vld [vmem:[%s2525 + $0x4] sm:$0xf]
    %v2528 = vld [vmem:[%s2525 + $0x8] sm:$0xf]
    %v2529 = vld [vmem:[%s2525 + $0xc] sm:$0xf]
    %v2530 = vld [vmem:[%s2525 + $0x10] sm:$0xf]
    %v2531 = vld [vmem:[%s2525 + $0x14] sm:$0xf]
    %v2532 = vld [vmem:[%s2525 + $0x18] sm:$0xf]
    %v2533 = vld [vmem:[%s2525 + $0x1c] sm:$0xf]
    %v2542 = vunpack.c.l.b16 %v2526
    %v2543 = vunpack.c.l.b16 %v2527
    %v2544 = vunpack.c.l.b16 %v2528
    %v2545 = vunpack.c.l.b16 %v2529
    %v2546 = vunpack.c.l.b16 %v2530
    %v2547 = vunpack.c.l.b16 %v2531
    %v2548 = vunpack.c.l.b16 %v2532
    %v2549 = vunpack.c.l.b16 %v2533
    %v2550 = vpack.c.b16 %v2543, %v2542
    %v2551 = vpack.c.b16 %v2545, %v2544
    %v2552 = vpack.c.b16 %v2547, %v2546
    %v2553 = vpack.c.b16 %v2549, %v2548
    %v2559 = vsel %vm2086, %v2524, 0
    %2561 = vmatpush.bf16.msra.mxu0 0
    %2562 = vmatpush.bf16.msra.mxu0 0
    %2563 = vmatpush.bf16.msra.mxu0 0
    %2564 = vmatpush.bf16.msra.mxu0 0
    %2565 = vmatpush.bf16.msra.mxu0 %v2553
    %2566 = vmatpush.bf16.msra.mxu0 %v2552
    %2567 = vmatpush.bf16.msra.mxu0 %v2551
    %2568 = vmatpush.bf16.msra.mxu0 %v2550
    %2569 = vmatmul.bf16.gmra.mxu0 %v2559
    %v2570 = vpop.f32.mrf.mxu0
    %v2571 = vadd.f32 0.0, %v2570
    %v2572 = vpop.f32.mrf.mxu0
    %v2573 = vadd.f32 0.0, %v2572
    %2574 = vdwg.mxu0
    %v2575 = vadd.f32 %v2497, %v2571
    %v2576 = vadd.f32 %v2498, %v2573
    %s2577 = scalar_lea.vmem %s4, 40
    %v2578 = vld [vmem:[%s2577] sm:$0xf]
    %v2579 = vld [vmem:[%s2577 + $0x4] sm:$0x3]
    %v2582 = vunpack.c.l.b16 %v2578
    %v2583 = vunpack.c.l.b16 %v2579
    %v2584 = vpack.c.b16 %v2583, %v2582
    %v2586 = vsel %vm2195, %v2584, 0
    %2588 = vmatpush.bf16.msra.mxu0 0
    %2589 = vmatpush.bf16.msra.mxu0 0
    %2590 = vmatpush.bf16.msra.mxu0 0
    %2591 = vmatpush.bf16.msra.mxu0 0
    %2592 = vmatpush.bf16.msra.mxu0 %v2201
    %2593 = vmatpush.bf16.msra.mxu0 %v2186
    %2594 = vmatpush.bf16.msra.mxu0 %v2185
    %2595 = vmatpush.bf16.msra.mxu0 %v2184
    %2596 = vmatmul.bf16.gmra.mxu0 %v2586
    %v2597 = vpop.f32.mrf.mxu0
    %v2598 = vadd.f32 0.0, %v2597
    %v2599 = vpop.f32.mrf.mxu0
    %v2600 = vadd.f32 0.0, %v2599
    %2601 = vdwg.mxu0
    %v2602 = vpack.c.bf16 %v2600, %v2598
    %s2603 = scalar_lea.vmem %s5, 160
    %v2604 = vld [vmem:[%s2603] sm:$0xf]
    %v2605 = vld [vmem:[%s2603 + $0x4] sm:$0xf]
    %v2606 = vld [vmem:[%s2603 + $0x8] sm:$0xf]
    %v2607 = vld [vmem:[%s2603 + $0xc] sm:$0xf]
    %v2608 = vld [vmem:[%s2603 + $0x10] sm:$0xf]
    %v2609 = vld [vmem:[%s2603 + $0x14] sm:$0xf]
    %v2610 = vld [vmem:[%s2603 + $0x18] sm:$0xf]
    %v2611 = vld [vmem:[%s2603 + $0x1c] sm:$0xf]
    %v2620 = vunpack.c.l.b16 %v2604
    %v2621 = vunpack.c.l.b16 %v2605
    %v2622 = vunpack.c.l.b16 %v2606
    %v2623 = vunpack.c.l.b16 %v2607
    %v2624 = vunpack.c.l.b16 %v2608
    %v2625 = vunpack.c.l.b16 %v2609
    %v2626 = vunpack.c.l.b16 %v2610
    %v2627 = vunpack.c.l.b16 %v2611
    %v2628 = vpack.c.b16 %v2621, %v2620
    %v2629 = vpack.c.b16 %v2623, %v2622
    %v2630 = vpack.c.b16 %v2625, %v2624
    %v2631 = vpack.c.b16 %v2627, %v2626
    %v2637 = vsel %vm2086, %v2602, 0
    %2639 = vmatpush.bf16.msra.mxu0 0
    %2640 = vmatpush.bf16.msra.mxu0 0
    %2641 = vmatpush.bf16.msra.mxu0 0
    %2642 = vmatpush.bf16.msra.mxu0 0
    %2643 = vmatpush.bf16.msra.mxu0 %v2631
    %2644 = vmatpush.bf16.msra.mxu0 %v2630
    %2645 = vmatpush.bf16.msra.mxu0 %v2629
    %2646 = vmatpush.bf16.msra.mxu0 %v2628
    %2647 = vmatmul.bf16.gmra.mxu0 %v2637
    %v2648 = vpop.f32.mrf.mxu0
    %v2649 = vadd.f32 0.0, %v2648
    %v2650 = vpop.f32.mrf.mxu0
    %v2651 = vadd.f32 0.0, %v2650
    %2652 = vdwg.mxu0
    %v2653 = vadd.f32 %v2575, %v2649
    %v2654 = vadd.f32 %v2576, %v2651
    %s2655 = scalar_lea.vmem %s4, 48
    %v2656 = vld [vmem:[%s2655] sm:$0xf]
    %v2657 = vld [vmem:[%s2655 + $0x4] sm:$0x3]
    %v2660 = vunpack.c.l.b16 %v2656
    %v2661 = vunpack.c.l.b16 %v2657
    %v2662 = vpack.c.b16 %v2661, %v2660
    %v2664 = vsel %vm2195, %v2662, 0
    %2666 = vmatpush.bf16.msra.mxu0 0
    %2667 = vmatpush.bf16.msra.mxu0 0
    %2668 = vmatpush.bf16.msra.mxu0 0
    %2669 = vmatpush.bf16.msra.mxu0 0
    %2670 = vmatpush.bf16.msra.mxu0 %v2201
    %2671 = vmatpush.bf16.msra.mxu0 %v2186
    %2672 = vmatpush.bf16.msra.mxu0 %v2185
    %2673 = vmatpush.bf16.msra.mxu0 %v2184
    %2674 = vmatmul.bf16.gmra.mxu0 %v2664
    %v2675 = vpop.f32.mrf.mxu0
    %v2676 = vadd.f32 0.0, %v2675
    %v2677 = vpop.f32.mrf.mxu0
    %v2678 = vadd.f32 0.0, %v2677
    %2679 = vdwg.mxu0
    %v2680 = vpack.c.bf16 %v2678, %v2676
    %s2681 = scalar_lea.vmem %s5, 192
    %v2682 = vld [vmem:[%s2681] sm:$0xf]
    %v2683 = vld [vmem:[%s2681 + $0x4] sm:$0xf]
    %v2684 = vld [vmem:[%s2681 + $0x8] sm:$0xf]
    %v2685 = vld [vmem:[%s2681 + $0xc] sm:$0xf]
    %v2686 = vld [vmem:[%s2681 + $0x10] sm:$0xf]
    %v2687 = vld [vmem:[%s2681 + $0x14] sm:$0xf]
    %v2688 = vld [vmem:[%s2681 + $0x18] sm:$0xf]
    %v2689 = vld [vmem:[%s2681 + $0x1c] sm:$0xf]
    %v2698 = vunpack.c.l.b16 %v2682
    %v2699 = vunpack.c.l.b16 %v2683
    %v2700 = vunpack.c.l.b16 %v2684
    %v2701 = vunpack.c.l.b16 %v2685
    %v2702 = vunpack.c.l.b16 %v2686
    %v2703 = vunpack.c.l.b16 %v2687
    %v2704 = vunpack.c.l.b16 %v2688
    %v2705 = vunpack.c.l.b16 %v2689
    %v2706 = vpack.c.b16 %v2699, %v2698
    %v2707 = vpack.c.b16 %v2701, %v2700
    %v2708 = vpack.c.b16 %v2703, %v2702
    %v2709 = vpack.c.b16 %v2705, %v2704
    %v2715 = vsel %vm2086, %v2680, 0
    %2717 = vmatpush.bf16.msra.mxu0 0
    %2718 = vmatpush.bf16.msra.mxu0 0
    %2719 = vmatpush.bf16.msra.mxu0 0
    %2720 = vmatpush.bf16.msra.mxu0 0
    %2721 = vmatpush.bf16.msra.mxu0 %v2709
    %2722 = vmatpush.bf16.msra.mxu0 %v2708
    %2723 = vmatpush.bf16.msra.mxu0 %v2707
    %2724 = vmatpush.bf16.msra.mxu0 %v2706
    %2725 = vmatmul.bf16.gmra.mxu0 %v2715
    %v2726 = vpop.f32.mrf.mxu0
    %v2727 = vadd.f32 0.0, %v2726
    %v2728 = vpop.f32.mrf.mxu0
    %v2729 = vadd.f32 0.0, %v2728
    %2730 = vdwg.mxu0
    %v2731 = vadd.f32 %v2653, %v2727
    %v2732 = vadd.f32 %v2654, %v2729
    %s2733 = scalar_lea.vmem %s4, 56
    %v2734 = vld [vmem:[%s2733] sm:$0xf]
    %v2735 = vld [vmem:[%s2733 + $0x4] sm:$0x3]
    %v2738 = vunpack.c.l.b16 %v2734
    %v2739 = vunpack.c.l.b16 %v2735
    %v2740 = vpack.c.b16 %v2739, %v2738
    %v2742 = vsel %vm2195, %v2740, 0
    %2744 = vmatpush.bf16.msra.mxu0 0
    %2745 = vmatpush.bf16.msra.mxu0 0
    %2746 = vmatpush.bf16.msra.mxu0 0
    %2747 = vmatpush.bf16.msra.mxu0 0
    %2748 = vmatpush.bf16.msra.mxu0 %v2201
    %2749 = vmatpush.bf16.msra.mxu0 %v2186
    %2750 = vmatpush.bf16.msra.mxu0 %v2185
    %2751 = vmatpush.bf16.msra.mxu0 %v2184
    %2752 = vmatmul.bf16.gmra.mxu0 %v2742
    %v2753 = vpop.f32.mrf.mxu0
    %v2754 = vadd.f32 0.0, %v2753
    %v2755 = vpop.f32.mrf.mxu0
    %v2756 = vadd.f32 0.0, %v2755
    %2757 = vdwg.mxu0
    %v2758 = vpack.c.bf16 %v2756, %v2754
    %s2759 = scalar_lea.vmem %s5, 224
    %v2760 = vld [vmem:[%s2759] sm:$0xf]
    %v2761 = vld [vmem:[%s2759 + $0x4] sm:$0xf]
    %v2762 = vld [vmem:[%s2759 + $0x8] sm:$0xf]
    %v2763 = vld [vmem:[%s2759 + $0xc] sm:$0xf]
    %v2764 = vld [vmem:[%s2759 + $0x10] sm:$0xf]
    %v2765 = vld [vmem:[%s2759 + $0x14] sm:$0xf]
    %v2766 = vld [vmem:[%s2759 + $0x18] sm:$0xf]
    %v2767 = vld [vmem:[%s2759 + $0x1c] sm:$0xf]
    %v2776 = vunpack.c.l.b16 %v2760
    %v2777 = vunpack.c.l.b16 %v2761
    %v2778 = vunpack.c.l.b16 %v2762
    %v2779 = vunpack.c.l.b16 %v2763
    %v2780 = vunpack.c.l.b16 %v2764
    %v2781 = vunpack.c.l.b16 %v2765
    %v2782 = vunpack.c.l.b16 %v2766
    %v2783 = vunpack.c.l.b16 %v2767
    %v2784 = vpack.c.b16 %v2777, %v2776
    %v2785 = vpack.c.b16 %v2779, %v2778
    %v2786 = vpack.c.b16 %v2781, %v2780
    %v2787 = vpack.c.b16 %v2783, %v2782
    %v2793 = vsel %vm2086, %v2758, 0
    %2795 = vmatpush.bf16.msra.mxu0 0
    %2796 = vmatpush.bf16.msra.mxu0 0
    %2797 = vmatpush.bf16.msra.mxu0 0
    %2798 = vmatpush.bf16.msra.mxu0 0
    %2799 = vmatpush.bf16.msra.mxu0 %v2787
    %2800 = vmatpush.bf16.msra.mxu0 %v2786
    %2801 = vmatpush.bf16.msra.mxu0 %v2785
    %2802 = vmatpush.bf16.msra.mxu0 %v2784
    %2803 = vmatmul.bf16.gmra.mxu0 %v2793
    %v2804 = vpop.f32.mrf.mxu0
    %v2805 = vadd.f32 0.0, %v2804
    %v2806 = vpop.f32.mrf.mxu0
    %v2807 = vadd.f32 0.0, %v2806
    %2808 = vdwg.mxu0
    %v2809 = vadd.f32 %v2731, %v2805
    %v2810 = vadd.f32 %v2732, %v2807
    %vm2811 = vcmask 1043456
    %v2812 = vsel %vm2811, %v2810, 0.0
    %v2813 = vadd.f32 %v2809, %v2812
    %v2814 = vrot.slane %v2813, 4
    %v2815 = vadd.f32 %v2813, %v2814
    %v2816 = vrot.slane %v2815, 2
    %v2817 = vadd.f32 %v2815, %v2816
    %v2818 = vrot.slane %v2817, 1
    %v2819 = vadd.f32 %v2817, %v2818
    %v2820 = vmul.f32 %v2809, %v2809
    %v2821 = vmul.f32 %v2810, %v2810
    %v2822 = vsel %vm2811, %v2821, 0.0
    %v2823 = vadd.f32 %v2820, %v2822
    %v2824 = vrot.slane %v2823, 4
    %v2825 = vadd.f32 %v2823, %v2824
    %v2826 = vrot.slane %v2825, 2
    %v2827 = vadd.f32 %v2825, %v2826
    %v2828 = vrot.slane %v2827, 1
    %v2829 = vadd.f32 %v2827, %v2828
    %v2830 = vmul.f32 %v2819, 0.083333336
    %v2831 = vmul.f32 %v2829, 0.083333336
    %v2832 = vmul.f32 %v2830, %v2830
    %v2833 = vsub.f32 %v2831, %v2832
    %v2834 = vld [vmem:[%s13] sm:$0x1]
    %v2835 = vadd.f32 %v2833, 1e-05
    %v2836 = vrsqrt.pop %v2835
    %v2837 = vmul.f32 %v2836, %v2835
    %v2838 = vmul.f32 %v2837, %v2836
    %v2839 = vmul.f32 0.5, %v2838
    %v2840 = vsub.f32 1.5, %v2839
    %v2841 = vmul.f32 %v2836, %v2840
    %vm2842 = vweird.f32 %v2835
    %vm2843 = vweird.f32 %v2836
    %vm2844 = vmor %vm2842, %vm2843
    %v2845 = vsel %vm2844, %v2836, %v2841
    %v2846 = vmul.f32 %v2834, %v2845
    %v2847 = vld [vmem:[%s13 + $0x1] sm:$0x1]
    %v2848 = vmul.f32 %v2830, %v2846
    %v2849 = vsub.f32 %v2847, %v2848
    %v2850 = vperm.slane %v2846, 0
    %v2851 = vmul.f32 %v2809, %v2850
    %v2852 = vmul.f32 %v2810, %v2850
    %v2853 = vperm.slane %v2849, 0
    %v2854 = vadd.f32 %v2851, %v2853
    %v2855 = vadd.f32 %v2852, %v2853
    %v2856 = vmax.f32 %v2854, 0.0
    %v2857 = vmax.f32 %v2855, 0.0
    %v2858 = vpack.c.bf16 %v2857, %v2856
    %v2859 = vld [vmem:[%s6] sm:$0x3]
    %vm2860 = vcmask 97280
    %v2862 = vsel %vm2860, %v2859, 0
    %v2865 = vsel %vm2199, %v2858, 0
    %2867 = vmatpush.bf16.msra.mxu0 0
    %2868 = vmatpush.bf16.msra.mxu0 0
    %2869 = vmatpush.bf16.msra.mxu0 0
    %2870 = vmatpush.bf16.msra.mxu0 0
    %2871 = vmatpush.bf16.msra.mxu0 0
    %2872 = vmatpush.bf16.msra.mxu0 0
    %2873 = vmatpush.bf16.msra.mxu0 0
    %2874 = vmatpush.bf16.msra.mxu0 %v2865
    %2875 = vmatmul.bf16.gmra.mxu0 %v2862
    %v2876 = vpop.f32.mrf.mxu0
    %v2877 = vadd.f32 0.0, %v2876
    %v2878 = vpop.f32.mrf.mxu0
    %2879 = vdwg.mxu0
    %v2880 = vpack.c.bf16 %v2877, %v2877
    %v2881 = vld [vmem:[%s7] sm:$0xff]
    %v2882 = vld [vmem:[%s7 + $0x8] sm:$0xff]
    %v2883 = vld [vmem:[%s7 + $0x10] sm:$0xff]
    %v2884 = vld [vmem:[%s7 + $0x18] sm:$0xff]
    %v2885 = vld [vmem:[%s7 + $0x20] sm:$0xff]
    %v2886 = vld [vmem:[%s7 + $0x28] sm:$0xff]
    %v2887 = vld [vmem:[%s7 + $0x30] sm:$0xff]
    %v2888 = vld [vmem:[%s7 + $0x38] sm:$0xff]
    %v2889 = vld [vmem:[%s7 + $0x40] sm:$0xff]
    %v2890 = vld [vmem:[%s7 + $0x48] sm:$0xff]
    %v2891 = vld [vmem:[%s7 + $0x50] sm:$0xff]
    %v2892 = vld [vmem:[%s7 + $0x58] sm:$0xff]
    %v2893 = vld [vmem:[%s7 + $0x60] sm:$0xff]
    %v2894 = vld [vmem:[%s7 + $0x68] sm:$0xff]
    %v2895 = vld [vmem:[%s7 + $0x70] sm:$0xff]
    %v2896 = vld [vmem:[%s7 + $0x78] sm:$0xff]
    %s2897 = scalar_lea.vmem %s6, 2
    %v2898 = vld [vmem:[%s2897] sm:$0x3]
    %v2900 = vsel %vm2860, %v2898, 0
    %2902 = vmatpush.bf16.msra.mxu0 0
    %2903 = vmatpush.bf16.msra.mxu0 0
    %2904 = vmatpush.bf16.msra.mxu0 0
    %2905 = vmatpush.bf16.msra.mxu0 0
    %2906 = vmatpush.bf16.msra.mxu0 0
    %2907 = vmatpush.bf16.msra.mxu0 0
    %2908 = vmatpush.bf16.msra.mxu0 0
    %2909 = vmatpush.bf16.msra.mxu0 %v2865
    %2910 = vmatmul.bf16.gmra.mxu0 %v2900
    %v2911 = vpop.f32.mrf.mxu0
    %v2912 = vadd.f32 0.0, %v2911
    %v2913 = vpop.f32.mrf.mxu0
    %2914 = vdwg.mxu0
    %v2915 = vpack.c.bf16 %v2912, %v2912
    %s2916 = scalar_lea.vmem %s7, 128
    %v2917 = vld [vmem:[%s2916] sm:$0xff]
    %v2918 = vld [vmem:[%s2916 + $0x8] sm:$0xff]
    %v2919 = vld [vmem:[%s2916 + $0x10] sm:$0xff]
    %v2920 = vld [vmem:[%s2916 + $0x18] sm:$0xff]
    %v2921 = vld [vmem:[%s2916 + $0x20] sm:$0xff]
    %v2922 = vld [vmem:[%s2916 + $0x28] sm:$0xff]
    %v2923 = vld [vmem:[%s2916 + $0x30] sm:$0xff]
    %v2924 = vld [vmem:[%s2916 + $0x38] sm:$0xff]
    %v2925 = vld [vmem:[%s2916 + $0x40] sm:$0xff]
    %v2926 = vld [vmem:[%s2916 + $0x48] sm:$0xff]
    %v2927 = vld [vmem:[%s2916 + $0x50] sm:$0xff]
    %v2928 = vld [vmem:[%s2916 + $0x58] sm:$0xff]
    %v2929 = vld [vmem:[%s2916 + $0x60] sm:$0xff]
    %v2930 = vld [vmem:[%s2916 + $0x68] sm:$0xff]
    %v2931 = vld [vmem:[%s2916 + $0x70] sm:$0xff]
    %v2932 = vld [vmem:[%s2916 + $0x78] sm:$0xff]
    %v2949 = vunpack.c.l.b16 %v2917
    %v2950 = vunpack.c.h.b16 %v2917
    %v2951 = vunpack.c.l.b16 %v2918
    %v2952 = vunpack.c.h.b16 %v2918
    %v2953 = vunpack.c.l.b16 %v2919
    %v2954 = vunpack.c.h.b16 %v2919
    %v2955 = vunpack.c.l.b16 %v2920
    %v2956 = vunpack.c.h.b16 %v2920
    %v2957 = vunpack.c.l.b16 %v2921
    %v2958 = vunpack.c.h.b16 %v2921
    %v2959 = vunpack.c.l.b16 %v2922
    %v2960 = vunpack.c.h.b16 %v2922
    %v2961 = vunpack.c.l.b16 %v2923
    %v2962 = vunpack.c.h.b16 %v2923
    %v2963 = vunpack.c.l.b16 %v2924
    %v2964 = vunpack.c.h.b16 %v2924
    %v2965 = vunpack.c.l.b16 %v2925
    %v2966 = vunpack.c.h.b16 %v2925
    %v2967 = vunpack.c.l.b16 %v2926
    %v2968 = vunpack.c.h.b16 %v2926
    %v2969 = vunpack.c.l.b16 %v2927
    %v2970 = vunpack.c.h.b16 %v2927
    %v2971 = vunpack.c.l.b16 %v2928
    %v2972 = vunpack.c.h.b16 %v2928
    %v2973 = vunpack.c.l.b16 %v2929
    %v2974 = vunpack.c.h.b16 %v2929
    %v2975 = vunpack.c.l.b16 %v2930
    %v2976 = vunpack.c.h.b16 %v2930
    %v2977 = vunpack.c.l.b16 %v2931
    %v2978 = vunpack.c.h.b16 %v2931
    %v2979 = vunpack.c.l.b16 %v2932
    %v2980 = vunpack.c.h.b16 %v2932
    %v2981 = vpack.c.b16 %v2951, %v2949
    %v2982 = vpack.c.b16 %v2952, %v2950
    %v2983 = vpack.c.b16 %v2955, %v2953
    %v2984 = vpack.c.b16 %v2956, %v2954
    %v2985 = vpack.c.b16 %v2959, %v2957
    %v2986 = vpack.c.b16 %v2960, %v2958
    %v2987 = vpack.c.b16 %v2963, %v2961
    %v2988 = vpack.c.b16 %v2964, %v2962
    %v2989 = vpack.c.b16 %v2967, %v2965
    %v2990 = vpack.c.b16 %v2968, %v2966
    %v2991 = vpack.c.b16 %v2971, %v2969
    %v2992 = vpack.c.b16 %v2972, %v2970
    %v2993 = vpack.c.b16 %v2975, %v2973
    %v2994 = vpack.c.b16 %v2976, %v2974
    %v2995 = vpack.c.b16 %v2979, %v2977
    %v2996 = vpack.c.b16 %v2980, %v2978
    %3013 = vmatpush.bf16.msra.mxu0 %v2995
    %3014 = vmatpush.bf16.msra.mxu0 %v2993
    %3015 = vmatpush.bf16.msra.mxu0 %v2991
    %3016 = vmatpush.bf16.msra.mxu0 %v2989
    %3017 = vmatpush.bf16.msra.mxu0 %v2987
    %3018 = vmatpush.bf16.msra.mxu0 %v2985
    %3019 = vmatpush.bf16.msra.mxu0 %v2983
    %3020 = vmatpush.bf16.msra.mxu0 %v2981
    %3021 = vmatmul.bf16.gmra.mxu0 %v2915
    %v3022 = vpop.f32.mrf.mxu0
    %v3023 = vadd.f32 0.0, %v3022
    %v3024 = vpop.f32.mrf.mxu0
    %3025 = vdwg.mxu0
    %3026 = vmatpush.bf16.msra.mxu0 %v2996
    %3027 = vmatpush.bf16.msra.mxu0 %v2994
    %3028 = vmatpush.bf16.msra.mxu0 %v2992
    %3029 = vmatpush.bf16.msra.mxu0 %v2990
    %3030 = vmatpush.bf16.msra.mxu0 %v2988
    %3031 = vmatpush.bf16.msra.mxu0 %v2986
    %3032 = vmatpush.bf16.msra.mxu0 %v2984
    %3033 = vmatpush.bf16.msra.mxu0 %v2982
    %3034 = vmatmul.bf16.gmra.mxu0 %v2915
    %v3035 = vpop.f32.mrf.mxu0
    %v3036 = vadd.f32 0.0, %v3035
    %v3037 = vpop.f32.mrf.mxu0
    %3038 = vdwg.mxu0
    %v3055 = vunpack.c.l.b16 %v2881
    %v3056 = vunpack.c.h.b16 %v2881
    %v3057 = vunpack.c.l.b16 %v2882
    %v3058 = vunpack.c.h.b16 %v2882
    %v3059 = vunpack.c.l.b16 %v2883
    %v3060 = vunpack.c.h.b16 %v2883
    %v3061 = vunpack.c.l.b16 %v2884
    %v3062 = vunpack.c.h.b16 %v2884
    %v3063 = vunpack.c.l.b16 %v2885
    %v3064 = vunpack.c.h.b16 %v2885
    %v3065 = vunpack.c.l.b16 %v2886
    %v3066 = vunpack.c.h.b16 %v2886
    %v3067 = vunpack.c.l.b16 %v2887
    %v3068 = vunpack.c.h.b16 %v2887
    %v3069 = vunpack.c.l.b16 %v2888
    %v3070 = vunpack.c.h.b16 %v2888
    %v3071 = vunpack.c.l.b16 %v2889
    %v3072 = vunpack.c.h.b16 %v2889
    %v3073 = vunpack.c.l.b16 %v2890
    %v3074 = vunpack.c.h.b16 %v2890
    %v3075 = vunpack.c.l.b16 %v2891
    %v3076 = vunpack.c.h.b16 %v2891
    %v3077 = vunpack.c.l.b16 %v2892
    %v3078 = vunpack.c.h.b16 %v2892
    %v3079 = vunpack.c.l.b16 %v2893
    %v3080 = vunpack.c.h.b16 %v2893
    %v3081 = vunpack.c.l.b16 %v2894
    %v3082 = vunpack.c.h.b16 %v2894
    %v3083 = vunpack.c.l.b16 %v2895
    %v3084 = vunpack.c.h.b16 %v2895
    %v3085 = vunpack.c.l.b16 %v2896
    %v3086 = vunpack.c.h.b16 %v2896
    %v3087 = vpack.c.b16 %v3057, %v3055
    %v3088 = vpack.c.b16 %v3058, %v3056
    %v3089 = vpack.c.b16 %v3061, %v3059
    %v3090 = vpack.c.b16 %v3062, %v3060
    %v3091 = vpack.c.b16 %v3065, %v3063
    %v3092 = vpack.c.b16 %v3066, %v3064
    %v3093 = vpack.c.b16 %v3069, %v3067
    %v3094 = vpack.c.b16 %v3070, %v3068
    %v3095 = vpack.c.b16 %v3073, %v3071
    %v3096 = vpack.c.b16 %v3074, %v3072
    %v3097 = vpack.c.b16 %v3077, %v3075
    %v3098 = vpack.c.b16 %v3078, %v3076
    %v3099 = vpack.c.b16 %v3081, %v3079
    %v3100 = vpack.c.b16 %v3082, %v3080
    %v3101 = vpack.c.b16 %v3085, %v3083
    %v3102 = vpack.c.b16 %v3086, %v3084
    %3119 = vmatpush.bf16.msra.mxu0 %v3101
    %3120 = vmatpush.bf16.msra.mxu0 %v3099
    %3121 = vmatpush.bf16.msra.mxu0 %v3097
    %3122 = vmatpush.bf16.msra.mxu0 %v3095
    %3123 = vmatpush.bf16.msra.mxu0 %v3093
    %3124 = vmatpush.bf16.msra.mxu0 %v3091
    %3125 = vmatpush.bf16.msra.mxu0 %v3089
    %3126 = vmatpush.bf16.msra.mxu0 %v3087
    %3127 = vmatmul.bf16.gmra.mxu0 %v2880
    %v3128 = vpop.f32.mrf.mxu0
    %v3129 = vadd.f32 %v3023, %v3128
    %v3130 = vpop.f32.mrf.mxu0
    %3131 = vdwg.mxu0
    %3132 = vmatpush.bf16.msra.mxu0 %v3102
    %3133 = vmatpush.bf16.msra.mxu0 %v3100
    %3134 = vmatpush.bf16.msra.mxu0 %v3098
    %3135 = vmatpush.bf16.msra.mxu0 %v3096
    %3136 = vmatpush.bf16.msra.mxu0 %v3094
    %3137 = vmatpush.bf16.msra.mxu0 %v3092
    %3138 = vmatpush.bf16.msra.mxu0 %v3090
    %3139 = vmatpush.bf16.msra.mxu0 %v3088
    %3140 = vmatmul.bf16.gmra.mxu0 %v2880
    %v3141 = vpop.f32.mrf.mxu0
    %v3142 = vadd.f32 %v3036, %v3141
    %v3143 = vpop.f32.mrf.mxu0
    %3144 = vdwg.mxu0
    %s3145 = scalar_lea.vmem %s6, 4
    %v3146 = vld [vmem:[%s3145] sm:$0x3]
    %v3148 = vsel %vm2860, %v3146, 0
    %3150 = vmatpush.bf16.msra.mxu0 0
    %3151 = vmatpush.bf16.msra.mxu0 0
    %3152 = vmatpush.bf16.msra.mxu0 0
    %3153 = vmatpush.bf16.msra.mxu0 0
    %3154 = vmatpush.bf16.msra.mxu0 0
    %3155 = vmatpush.bf16.msra.mxu0 0
    %3156 = vmatpush.bf16.msra.mxu0 0
    %3157 = vmatpush.bf16.msra.mxu0 %v2865
    %3158 = vmatmul.bf16.gmra.mxu0 %v3148
    %v3159 = vpop.f32.mrf.mxu0
    %v3160 = vadd.f32 0.0, %v3159
    %v3161 = vpop.f32.mrf.mxu0
    %3162 = vdwg.mxu0
    %v3163 = vpack.c.bf16 %v3160, %v3160
    %s3164 = scalar_lea.vmem %s7, 256
    %v3165 = vld [vmem:[%s3164] sm:$0xff]
    %v3166 = vld [vmem:[%s3164 + $0x8] sm:$0xff]
    %v3167 = vld [vmem:[%s3164 + $0x10] sm:$0xff]
    %v3168 = vld [vmem:[%s3164 + $0x18] sm:$0xff]
    %v3169 = vld [vmem:[%s3164 + $0x20] sm:$0xff]
    %v3170 = vld [vmem:[%s3164 + $0x28] sm:$0xff]
    %v3171 = vld [vmem:[%s3164 + $0x30] sm:$0xff]
    %v3172 = vld [vmem:[%s3164 + $0x38] sm:$0xff]
    %v3173 = vld [vmem:[%s3164 + $0x40] sm:$0xff]
    %v3174 = vld [vmem:[%s3164 + $0x48] sm:$0xff]
    %v3175 = vld [vmem:[%s3164 + $0x50] sm:$0xff]
    %v3176 = vld [vmem:[%s3164 + $0x58] sm:$0xff]
    %v3177 = vld [vmem:[%s3164 + $0x60] sm:$0xff]
    %v3178 = vld [vmem:[%s3164 + $0x68] sm:$0xff]
    %v3179 = vld [vmem:[%s3164 + $0x70] sm:$0xff]
    %v3180 = vld [vmem:[%s3164 + $0x78] sm:$0xff]
    %v3197 = vunpack.c.l.b16 %v3165
    %v3198 = vunpack.c.h.b16 %v3165
    %v3199 = vunpack.c.l.b16 %v3166
    %v3200 = vunpack.c.h.b16 %v3166
    %v3201 = vunpack.c.l.b16 %v3167
    %v3202 = vunpack.c.h.b16 %v3167
    %v3203 = vunpack.c.l.b16 %v3168
    %v3204 = vunpack.c.h.b16 %v3168
    %v3205 = vunpack.c.l.b16 %v3169
    %v3206 = vunpack.c.h.b16 %v3169
    %v3207 = vunpack.c.l.b16 %v3170
    %v3208 = vunpack.c.h.b16 %v3170
    %v3209 = vunpack.c.l.b16 %v3171
    %v3210 = vunpack.c.h.b16 %v3171
    %v3211 = vunpack.c.l.b16 %v3172
    %v3212 = vunpack.c.h.b16 %v3172
    %v3213 = vunpack.c.l.b16 %v3173
    %v3214 = vunpack.c.h.b16 %v3173
    %v3215 = vunpack.c.l.b16 %v3174
    %v3216 = vunpack.c.h.b16 %v3174
    %v3217 = vunpack.c.l.b16 %v3175
    %v3218 = vunpack.c.h.b16 %v3175
    %v3219 = vunpack.c.l.b16 %v3176
    %v3220 = vunpack.c.h.b16 %v3176
    %v3221 = vunpack.c.l.b16 %v3177
    %v3222 = vunpack.c.h.b16 %v3177
    %v3223 = vunpack.c.l.b16 %v3178
    %v3224 = vunpack.c.h.b16 %v3178
    %v3225 = vunpack.c.l.b16 %v3179
    %v3226 = vunpack.c.h.b16 %v3179
    %v3227 = vunpack.c.l.b16 %v3180
    %v3228 = vunpack.c.h.b16 %v3180
    %v3229 = vpack.c.b16 %v3199, %v3197
    %v3230 = vpack.c.b16 %v3200, %v3198
    %v3231 = vpack.c.b16 %v3203, %v3201
    %v3232 = vpack.c.b16 %v3204, %v3202
    %v3233 = vpack.c.b16 %v3207, %v3205
    %v3234 = vpack.c.b16 %v3208, %v3206
    %v3235 = vpack.c.b16 %v3211, %v3209
    %v3236 = vpack.c.b16 %v3212, %v3210
    %v3237 = vpack.c.b16 %v3215, %v3213
    %v3238 = vpack.c.b16 %v3216, %v3214
    %v3239 = vpack.c.b16 %v3219, %v3217
    %v3240 = vpack.c.b16 %v3220, %v3218
    %v3241 = vpack.c.b16 %v3223, %v3221
    %v3242 = vpack.c.b16 %v3224, %v3222
    %v3243 = vpack.c.b16 %v3227, %v3225
    %v3244 = vpack.c.b16 %v3228, %v3226
    %3261 = vmatpush.bf16.msra.mxu0 %v3243
    %3262 = vmatpush.bf16.msra.mxu0 %v3241
    %3263 = vmatpush.bf16.msra.mxu0 %v3239
    %3264 = vmatpush.bf16.msra.mxu0 %v3237
    %3265 = vmatpush.bf16.msra.mxu0 %v3235
    %3266 = vmatpush.bf16.msra.mxu0 %v3233
    %3267 = vmatpush.bf16.msra.mxu0 %v3231
    %3268 = vmatpush.bf16.msra.mxu0 %v3229
    %3269 = vmatmul.bf16.gmra.mxu0 %v3163
    %v3270 = vpop.f32.mrf.mxu0
    %v3271 = vadd.f32 0.0, %v3270
    %v3272 = vpop.f32.mrf.mxu0
    %3273 = vdwg.mxu0
    %3274 = vmatpush.bf16.msra.mxu0 %v3244
    %3275 = vmatpush.bf16.msra.mxu0 %v3242
    %3276 = vmatpush.bf16.msra.mxu0 %v3240
    %3277 = vmatpush.bf16.msra.mxu0 %v3238
    %3278 = vmatpush.bf16.msra.mxu0 %v3236
    %3279 = vmatpush.bf16.msra.mxu0 %v3234
    %3280 = vmatpush.bf16.msra.mxu0 %v3232
    %3281 = vmatpush.bf16.msra.mxu0 %v3230
    %3282 = vmatmul.bf16.gmra.mxu0 %v3163
    %v3283 = vpop.f32.mrf.mxu0
    %v3284 = vadd.f32 0.0, %v3283
    %v3285 = vpop.f32.mrf.mxu0
    %3286 = vdwg.mxu0
    %v3287 = vadd.f32 %v3129, %v3271
    %v3288 = vadd.f32 %v3142, %v3284
    %s3289 = scalar_lea.vmem %s6, 6
    %v3290 = vld [vmem:[%s3289] sm:$0x3]
    %v3292 = vsel %vm2860, %v3290, 0
    %3294 = vmatpush.bf16.msra.mxu0 0
    %3295 = vmatpush.bf16.msra.mxu0 0
    %3296 = vmatpush.bf16.msra.mxu0 0
    %3297 = vmatpush.bf16.msra.mxu0 0
    %3298 = vmatpush.bf16.msra.mxu0 0
    %3299 = vmatpush.bf16.msra.mxu0 0
    %3300 = vmatpush.bf16.msra.mxu0 0
    %3301 = vmatpush.bf16.msra.mxu0 %v2865
    %3302 = vmatmul.bf16.gmra.mxu0 %v3292
    %v3303 = vpop.f32.mrf.mxu0
    %v3304 = vadd.f32 0.0, %v3303
    %v3305 = vpop.f32.mrf.mxu0
    %3306 = vdwg.mxu0
    %v3307 = vpack.c.bf16 %v3304, %v3304
    %s3308 = scalar_lea.vmem %s7, 384
    %v3309 = vld [vmem:[%s3308] sm:$0xff]
    %v3310 = vld [vmem:[%s3308 + $0x8] sm:$0xff]
    %v3311 = vld [vmem:[%s3308 + $0x10] sm:$0xff]
    %v3312 = vld [vmem:[%s3308 + $0x18] sm:$0xff]
    %v3313 = vld [vmem:[%s3308 + $0x20] sm:$0xff]
    %v3314 = vld [vmem:[%s3308 + $0x28] sm:$0xff]
    %v3315 = vld [vmem:[%s3308 + $0x30] sm:$0xff]
    %v3316 = vld [vmem:[%s3308 + $0x38] sm:$0xff]
    %v3317 = vld [vmem:[%s3308 + $0x40] sm:$0xff]
    %v3318 = vld [vmem:[%s3308 + $0x48] sm:$0xff]
    %v3319 = vld [vmem:[%s3308 + $0x50] sm:$0xff]
    %v3320 = vld [vmem:[%s3308 + $0x58] sm:$0xff]
    %v3321 = vld [vmem:[%s3308 + $0x60] sm:$0xff]
    %v3322 = vld [vmem:[%s3308 + $0x68] sm:$0xff]
    %v3323 = vld [vmem:[%s3308 + $0x70] sm:$0xff]
    %v3324 = vld [vmem:[%s3308 + $0x78] sm:$0xff]
    %v3341 = vunpack.c.l.b16 %v3309
    %v3342 = vunpack.c.h.b16 %v3309
    %v3343 = vunpack.c.l.b16 %v3310
    %v3344 = vunpack.c.h.b16 %v3310
    %v3345 = vunpack.c.l.b16 %v3311
    %v3346 = vunpack.c.h.b16 %v3311
    %v3347 = vunpack.c.l.b16 %v3312
    %v3348 = vunpack.c.h.b16 %v3312
    %v3349 = vunpack.c.l.b16 %v3313
    %v3350 = vunpack.c.h.b16 %v3313
    %v3351 = vunpack.c.l.b16 %v3314
    %v3352 = vunpack.c.h.b16 %v3314
    %v3353 = vunpack.c.l.b16 %v3315
    %v3354 = vunpack.c.h.b16 %v3315
    %v3355 = vunpack.c.l.b16 %v3316
    %v3356 = vunpack.c.h.b16 %v3316
    %v3357 = vunpack.c.l.b16 %v3317
    %v3358 = vunpack.c.h.b16 %v3317
    %v3359 = vunpack.c.l.b16 %v3318
    %v3360 = vunpack.c.h.b16 %v3318
    %v3361 = vunpack.c.l.b16 %v3319
    %v3362 = vunpack.c.h.b16 %v3319
    %v3363 = vunpack.c.l.b16 %v3320
    %v3364 = vunpack.c.h.b16 %v3320
    %v3365 = vunpack.c.l.b16 %v3321
    %v3366 = vunpack.c.h.b16 %v3321
    %v3367 = vunpack.c.l.b16 %v3322
    %v3368 = vunpack.c.h.b16 %v3322
    %v3369 = vunpack.c.l.b16 %v3323
    %v3370 = vunpack.c.h.b16 %v3323
    %v3371 = vunpack.c.l.b16 %v3324
    %v3372 = vunpack.c.h.b16 %v3324
    %v3373 = vpack.c.b16 %v3343, %v3341
    %v3374 = vpack.c.b16 %v3344, %v3342
    %v3375 = vpack.c.b16 %v3347, %v3345
    %v3376 = vpack.c.b16 %v3348, %v3346
    %v3377 = vpack.c.b16 %v3351, %v3349
    %v3378 = vpack.c.b16 %v3352, %v3350
    %v3379 = vpack.c.b16 %v3355, %v3353
    %v3380 = vpack.c.b16 %v3356, %v3354
    %v3381 = vpack.c.b16 %v3359, %v3357
    %v3382 = vpack.c.b16 %v3360, %v3358
    %v3383 = vpack.c.b16 %v3363, %v3361
    %v3384 = vpack.c.b16 %v3364, %v3362
    %v3385 = vpack.c.b16 %v3367, %v3365
    %v3386 = vpack.c.b16 %v3368, %v3366
    %v3387 = vpack.c.b16 %v3371, %v3369
    %v3388 = vpack.c.b16 %v3372, %v3370
    %3405 = vmatpush.bf16.msra.mxu0 %v3387
    %3406 = vmatpush.bf16.msra.mxu0 %v3385
    %3407 = vmatpush.bf16.msra.mxu0 %v3383
    %3408 = vmatpush.bf16.msra.mxu0 %v3381
    %3409 = vmatpush.bf16.msra.mxu0 %v3379
    %3410 = vmatpush.bf16.msra.mxu0 %v3377
    %3411 = vmatpush.bf16.msra.mxu0 %v3375
    %3412 = vmatpush.bf16.msra.mxu0 %v3373
    %3413 = vmatmul.bf16.gmra.mxu0 %v3307
    %v3414 = vpop.f32.mrf.mxu0
    %v3415 = vadd.f32 0.0, %v3414
    %v3416 = vpop.f32.mrf.mxu0
    %3417 = vdwg.mxu0
    %3418 = vmatpush.bf16.msra.mxu0 %v3388
    %3419 = vmatpush.bf16.msra.mxu0 %v3386
    %3420 = vmatpush.bf16.msra.mxu0 %v3384
    %3421 = vmatpush.bf16.msra.mxu0 %v3382
    %3422 = vmatpush.bf16.msra.mxu0 %v3380
    %3423 = vmatpush.bf16.msra.mxu0 %v3378
    %3424 = vmatpush.bf16.msra.mxu0 %v3376
    %3425 = vmatpush.bf16.msra.mxu0 %v3374
    %3426 = vmatmul.bf16.gmra.mxu0 %v3307
    %v3427 = vpop.f32.mrf.mxu0
    %v3428 = vadd.f32 0.0, %v3427
    %v3429 = vpop.f32.mrf.mxu0
    %3430 = vdwg.mxu0
    %v3431 = vadd.f32 %v3287, %v3415
    %v3432 = vadd.f32 %v3288, %v3428
    %v3433 = vsel %vm2811, %v3431, 0.0
    %v3434 = vrot.slane %v3433, 4
    %v3435 = vadd.f32 %v3433, %v3434
    %v3436 = vrot.slane %v3435, 2
    %v3437 = vadd.f32 %v3435, %v3436
    %v3438 = vrot.slane %v3437, 1
    %v3439 = vadd.f32 %v3437, %v3438
    %v3440 = vsel %vm2811, %v3432, 0.0
    %v3441 = vrot.slane %v3440, 4
    %v3442 = vadd.f32 %v3440, %v3441
    %v3443 = vrot.slane %v3442, 2
    %v3444 = vadd.f32 %v3442, %v3443
    %v3445 = vrot.slane %v3444, 1
    %v3446 = vadd.f32 %v3444, %v3445
    %v3447 = vmul.f32 %v3431, %v3431
    %v3448 = vmul.f32 %v3432, %v3432
    %v3449 = vsel %vm2811, %v3447, 0.0
    %v3450 = vrot.slane %v3449, 4
    %v3451 = vadd.f32 %v3449, %v3450
    %v3452 = vrot.slane %v3451, 2
    %v3453 = vadd.f32 %v3451, %v3452
    %v3454 = vrot.slane %v3453, 1
    %v3455 = vadd.f32 %v3453, %v3454
    %v3456 = vsel %vm2811, %v3448, 0.0
    %v3457 = vrot.slane %v3456, 4
    %v3458 = vadd.f32 %v3456, %v3457
    %v3459 = vrot.slane %v3458, 2
    %v3460 = vadd.f32 %v3458, %v3459
    %v3461 = vrot.slane %v3460, 1
    %v3462 = vadd.f32 %v3460, %v3461
    %v3463 = vmul.f32 %v3439, 0.25
    %v3464 = vmul.f32 %v3446, 0.25
    %v3465 = vmul.f32 %v3455, 0.25
    %v3466 = vmul.f32 %v3462, 0.25
    %v3467 = vmul.f32 %v3463, %v3463
    %v3468 = vmul.f32 %v3464, %v3464
    %v3469 = vsub.f32 %v3465, %v3467
    %v3470 = vsub.f32 %v3466, %v3468
    %v3471 = vld [vmem:[%s14] ss:$2 sm:$0x3]
    %v3472 = vadd.f32 %v3469, 1e-05
    %v3473 = vadd.f32 %v3470, 1e-05
    %v3474 = vrsqrt.pop %v3472
    %v3475 = vmul.f32 %v3474, %v3472
    %v3476 = vmul.f32 %v3475, %v3474
    %v3477 = vmul.f32 0.5, %v3476
    %v3478 = vsub.f32 1.5, %v3477
    %v3479 = vmul.f32 %v3474, %v3478
    %vm3480 = vweird.f32 %v3472
    %vm3481 = vweird.f32 %v3474
    %vm3482 = vmor %vm3480, %vm3481
    %v3483 = vsel %vm3482, %v3474, %v3479
    %v3484 = vrsqrt.pop %v3473
    %v3485 = vmul.f32 %v3484, %v3473
    %v3486 = vmul.f32 %v3485, %v3484
    %v3487 = vmul.f32 0.5, %v3486
    %v3488 = vsub.f32 1.5, %v3487
    %v3489 = vmul.f32 %v3484, %v3488
    %vm3490 = vweird.f32 %v3473
    %vm3491 = vweird.f32 %v3484
    %vm3492 = vmor %vm3490, %vm3491
    %v3493 = vsel %vm3492, %v3484, %v3489
    %v3496 = vrot.slane %v3493, 7
    %vm3497 = vcmask 1040384
    %v3498 = vsel %vm3497, %v3483, %v3496
    %v3500 = vmul.f32 %v3471, %v3498
    %s3501 = scalar_lea.vmem %s14, 1
    %v3502 = vld [vmem:[%s3501] ss:$2 sm:$0x3]
    %v3504 = vperm.slane %v3500, 0
    %v3505 = vperm.slane %v3500, 1
    %v3508 = vmul.f32 %v3463, %v3504
    %v3509 = vmul.f32 %v3464, %v3505
    %v3512 = vrot.slane %v3509, 7
    %v3513 = vsel %vm3497, %v3508, %v3512
    %v3515 = vsub.f32 %v3502, %v3513
    %v3516 = vmul.f32 %v3431, %v3504
    %v3517 = vmul.f32 %v3432, %v3505
    %v3519 = vperm.slane %v3515, 0
    %v3520 = vperm.slane %v3515, 1
    %v3523 = vadd.f32 %v3516, %v3519
    %v3524 = vadd.f32 %v3517, %v3520
    %v3525 = vmax.f32 %v3523, 0.0
    %v3526 = vmax.f32 %v3524, 0.0
    %v3527 = vpack.c.bf16 %v3526, %v3525
    %v3528 = vld [vmem:[%s8] sm:$0xf]
    %v3529 = vld [vmem:[%s8 + $0x4] sm:$0xf]
    %v3530 = vld [vmem:[%s8 + $0x8] sm:$0xf]
    %v3531 = vld [vmem:[%s8 + $0xc] sm:$0xf]
    %v3532 = vld [vmem:[%s8 + $0x10] sm:$0xf]
    %v3533 = vld [vmem:[%s8 + $0x14] sm:$0xf]
    %v3534 = vld [vmem:[%s8 + $0x18] sm:$0xf]
    %v3535 = vld [vmem:[%s8 + $0x1c] sm:$0xf]
    %v3536 = vld [vmem:[%s8 + $0x20] sm:$0xf]
    %v3537 = vld [vmem:[%s8 + $0x24] sm:$0xf]
    %v3538 = vld [vmem:[%s8 + $0x28] sm:$0xf]
    %v3539 = vld [vmem:[%s8 + $0x2c] sm:$0xf]
    %v3540 = vld [vmem:[%s8 + $0x30] sm:$0xf]
    %v3541 = vld [vmem:[%s8 + $0x34] sm:$0xf]
    %v3542 = vld [vmem:[%s8 + $0x38] sm:$0xf]
    %v3543 = vld [vmem:[%s8 + $0x3c] sm:$0xf]
    %v3544 = vld [vmem:[%s8 + $0x40] sm:$0xf]
    %v3545 = vld [vmem:[%s8 + $0x44] sm:$0xf]
    %v3546 = vld [vmem:[%s8 + $0x48] sm:$0xf]
    %v3547 = vld [vmem:[%s8 + $0x4c] sm:$0xf]
    %v3548 = vld [vmem:[%s8 + $0x50] sm:$0xf]
    %v3549 = vld [vmem:[%s8 + $0x54] sm:$0xf]
    %v3550 = vld [vmem:[%s8 + $0x58] sm:$0xf]
    %v3551 = vld [vmem:[%s8 + $0x5c] sm:$0xf]
    %v3552 = vld [vmem:[%s8 + $0x60] sm:$0xf]
    %v3553 = vld [vmem:[%s8 + $0x64] sm:$0xf]
    %v3554 = vld [vmem:[%s8 + $0x68] sm:$0xf]
    %v3555 = vld [vmem:[%s8 + $0x6c] sm:$0xf]
    %v3556 = vld [vmem:[%s8 + $0x70] sm:$0xf]
    %v3557 = vld [vmem:[%s8 + $0x74] sm:$0xf]
    %v3558 = vld [vmem:[%s8 + $0x78] sm:$0xf]
    %v3559 = vld [vmem:[%s8 + $0x7c] sm:$0xf]
    %v3561 = vunpack.c.l.b16 %v3527
    %v3562 = vunpack.c.h.b16 %v3527
    %v3563 = vpack.c.b16 %v3561, %v3561
    %v3564 = vpack.c.b16 %v3562, %v3562
    %v3599 = vunpack.c.l.b16 %v3528
    %v3600 = vunpack.c.l.b16 %v3529
    %v3601 = vunpack.c.l.b16 %v3530
    %v3602 = vunpack.c.l.b16 %v3531
    %v3603 = vunpack.c.l.b16 %v3532
    %v3604 = vunpack.c.l.b16 %v3533
    %v3605 = vunpack.c.l.b16 %v3534
    %v3606 = vunpack.c.l.b16 %v3535
    %v3607 = vunpack.c.l.b16 %v3536
    %v3608 = vunpack.c.l.b16 %v3537
    %v3609 = vunpack.c.l.b16 %v3538
    %v3610 = vunpack.c.l.b16 %v3539
    %v3611 = vunpack.c.l.b16 %v3540
    %v3612 = vunpack.c.l.b16 %v3541
    %v3613 = vunpack.c.l.b16 %v3542
    %v3614 = vunpack.c.l.b16 %v3543
    %v3615 = vunpack.c.l.b16 %v3544
    %v3616 = vunpack.c.l.b16 %v3545
    %v3617 = vunpack.c.l.b16 %v3546
    %v3618 = vunpack.c.l.b16 %v3547
    %v3619 = vunpack.c.l.b16 %v3548
    %v3620 = vunpack.c.l.b16 %v3549
    %v3621 = vunpack.c.l.b16 %v3550
    %v3622 = vunpack.c.l.b16 %v3551
    %v3623 = vunpack.c.l.b16 %v3552
    %v3624 = vunpack.c.l.b16 %v3553
    %v3625 = vunpack.c.l.b16 %v3554
    %v3626 = vunpack.c.l.b16 %v3555
    %v3627 = vunpack.c.l.b16 %v3556
    %v3628 = vunpack.c.l.b16 %v3557
    %v3629 = vunpack.c.l.b16 %v3558
    %v3630 = vunpack.c.l.b16 %v3559
    %v3631 = vpack.c.b16 %v3600, %v3599
    %v3632 = vpack.c.b16 %v3602, %v3601
    %v3633 = vpack.c.b16 %v3604, %v3603
    %v3634 = vpack.c.b16 %v3606, %v3605
    %v3635 = vpack.c.b16 %v3608, %v3607
    %v3636 = vpack.c.b16 %v3610, %v3609
    %v3637 = vpack.c.b16 %v3612, %v3611
    %v3638 = vpack.c.b16 %v3614, %v3613
    %v3639 = vpack.c.b16 %v3616, %v3615
    %v3640 = vpack.c.b16 %v3618, %v3617
    %v3641 = vpack.c.b16 %v3620, %v3619
    %v3642 = vpack.c.b16 %v3622, %v3621
    %v3643 = vpack.c.b16 %v3624, %v3623
    %v3644 = vpack.c.b16 %v3626, %v3625
    %v3645 = vpack.c.b16 %v3628, %v3627
    %v3646 = vpack.c.b16 %v3630, %v3629
    %3663 = vmatpush.bf16.msra.mxu0 %v3638
    %3664 = vmatpush.bf16.msra.mxu0 %v3637
    %3665 = vmatpush.bf16.msra.mxu0 %v3636
    %3666 = vmatpush.bf16.msra.mxu0 %v3635
    %3667 = vmatpush.bf16.msra.mxu0 %v3634
    %3668 = vmatpush.bf16.msra.mxu0 %v3633
    %3669 = vmatpush.bf16.msra.mxu0 %v3632
    %3670 = vmatpush.bf16.msra.mxu0 %v3631
    %3671 = vmatmul.bf16.gmra.mxu0 %v3563
    %v3672 = vpop.f32.mrf.mxu0
    %v3673 = vadd.f32 0.0, %v3672
    %v3674 = vpop.f32.mrf.mxu0
    %3675 = vdwg.mxu0
    %3676 = vmatpush.bf16.msra.mxu0 %v3646
    %3677 = vmatpush.bf16.msra.mxu0 %v3645
    %3678 = vmatpush.bf16.msra.mxu0 %v3644
    %3679 = vmatpush.bf16.msra.mxu0 %v3643
    %3680 = vmatpush.bf16.msra.mxu0 %v3642
    %3681 = vmatpush.bf16.msra.mxu0 %v3641
    %3682 = vmatpush.bf16.msra.mxu0 %v3640
    %3683 = vmatpush.bf16.msra.mxu0 %v3639
    %3684 = vmatmul.bf16.gmra.mxu0 %v3564
    %v3685 = vpop.f32.mrf.mxu0
    %v3686 = vadd.f32 %v3673, %v3685
    %v3687 = vpop.f32.mrf.mxu0
    %3688 = vdwg.mxu0
    %s3689 = scalar_lea.vmem %s8, 128
    %v3690 = vld [vmem:[%s3689] sm:$0xf]
    %v3691 = vld [vmem:[%s3689 + $0x4] sm:$0xf]
    %v3692 = vld [vmem:[%s3689 + $0x8] sm:$0xf]
    %v3693 = vld [vmem:[%s3689 + $0xc] sm:$0xf]
    %v3694 = vld [vmem:[%s3689 + $0x10] sm:$0xf]
    %v3695 = vld [vmem:[%s3689 + $0x14] sm:$0xf]
    %v3696 = vld [vmem:[%s3689 + $0x18] sm:$0xf]
    %v3697 = vld [vmem:[%s3689 + $0x1c] sm:$0xf]
    %v3698 = vld [vmem:[%s3689 + $0x20] sm:$0xf]
    %v3699 = vld [vmem:[%s3689 + $0x24] sm:$0xf]
    %v3700 = vld [vmem:[%s3689 + $0x28] sm:$0xf]
    %v3701 = vld [vmem:[%s3689 + $0x2c] sm:$0xf]
    %v3702 = vld [vmem:[%s3689 + $0x30] sm:$0xf]
    %v3703 = vld [vmem:[%s3689 + $0x34] sm:$0xf]
    %v3704 = vld [vmem:[%s3689 + $0x38] sm:$0xf]
    %v3705 = vld [vmem:[%s3689 + $0x3c] sm:$0xf]
    %v3706 = vld [vmem:[%s3689 + $0x40] sm:$0xf]
    %v3707 = vld [vmem:[%s3689 + $0x44] sm:$0xf]
    %v3708 = vld [vmem:[%s3689 + $0x48] sm:$0xf]
    %v3709 = vld [vmem:[%s3689 + $0x4c] sm:$0xf]
    %v3710 = vld [vmem:[%s3689 + $0x50] sm:$0xf]
    %v3711 = vld [vmem:[%s3689 + $0x54] sm:$0xf]
    %v3712 = vld [vmem:[%s3689 + $0x58] sm:$0xf]
    %v3713 = vld [vmem:[%s3689 + $0x5c] sm:$0xf]
    %v3714 = vld [vmem:[%s3689 + $0x60] sm:$0xf]
    %v3715 = vld [vmem:[%s3689 + $0x64] sm:$0xf]
    %v3716 = vld [vmem:[%s3689 + $0x68] sm:$0xf]
    %v3717 = vld [vmem:[%s3689 + $0x6c] sm:$0xf]
    %v3718 = vld [vmem:[%s3689 + $0x70] sm:$0xf]
    %v3719 = vld [vmem:[%s3689 + $0x74] sm:$0xf]
    %v3720 = vld [vmem:[%s3689 + $0x78] sm:$0xf]
    %v3721 = vld [vmem:[%s3689 + $0x7c] sm:$0xf]
    %s3722 = scalar_lea.vmem %s8, 256
    %v3723 = vld [vmem:[%s3722] sm:$0xf]
    %v3724 = vld [vmem:[%s3722 + $0x4] sm:$0xf]
    %v3725 = vld [vmem:[%s3722 + $0x8] sm:$0xf]
    %v3726 = vld [vmem:[%s3722 + $0xc] sm:$0xf]
    %v3727 = vld [vmem:[%s3722 + $0x10] sm:$0xf]
    %v3728 = vld [vmem:[%s3722 + $0x14] sm:$0xf]
    %v3729 = vld [vmem:[%s3722 + $0x18] sm:$0xf]
    %v3730 = vld [vmem:[%s3722 + $0x1c] sm:$0xf]
    %v3731 = vld [vmem:[%s3722 + $0x20] sm:$0xf]
    %v3732 = vld [vmem:[%s3722 + $0x24] sm:$0xf]
    %v3733 = vld [vmem:[%s3722 + $0x28] sm:$0xf]
    %v3734 = vld [vmem:[%s3722 + $0x2c] sm:$0xf]
    %v3735 = vld [vmem:[%s3722 + $0x30] sm:$0xf]
    %v3736 = vld [vmem:[%s3722 + $0x34] sm:$0xf]
    %v3737 = vld [vmem:[%s3722 + $0x38] sm:$0xf]
    %v3738 = vld [vmem:[%s3722 + $0x3c] sm:$0xf]
    %v3739 = vld [vmem:[%s3722 + $0x40] sm:$0xf]
    %v3740 = vld [vmem:[%s3722 + $0x44] sm:$0xf]
    %v3741 = vld [vmem:[%s3722 + $0x48] sm:$0xf]
    %v3742 = vld [vmem:[%s3722 + $0x4c] sm:$0xf]
    %v3743 = vld [vmem:[%s3722 + $0x50] sm:$0xf]
    %v3744 = vld [vmem:[%s3722 + $0x54] sm:$0xf]
    %v3745 = vld [vmem:[%s3722 + $0x58] sm:$0xf]
    %v3746 = vld [vmem:[%s3722 + $0x5c] sm:$0xf]
    %v3747 = vld [vmem:[%s3722 + $0x60] sm:$0xf]
    %v3748 = vld [vmem:[%s3722 + $0x64] sm:$0xf]
    %v3749 = vld [vmem:[%s3722 + $0x68] sm:$0xf]
    %v3750 = vld [vmem:[%s3722 + $0x6c] sm:$0xf]
    %v3751 = vld [vmem:[%s3722 + $0x70] sm:$0xf]
    %v3752 = vld [vmem:[%s3722 + $0x74] sm:$0xf]
    %v3753 = vld [vmem:[%s3722 + $0x78] sm:$0xf]
    %v3754 = vld [vmem:[%s3722 + $0x7c] sm:$0xf]
    %v3755 = vrot.slane %v3563, 1
    %v3756 = vrot.slane %v3564, 1
    %v3791 = vunpack.c.l.b16 %v3723
    %v3792 = vunpack.c.l.b16 %v3724
    %v3793 = vunpack.c.l.b16 %v3725
    %v3794 = vunpack.c.l.b16 %v3726
    %v3795 = vunpack.c.l.b16 %v3727
    %v3796 = vunpack.c.l.b16 %v3728
    %v3797 = vunpack.c.l.b16 %v3729
    %v3798 = vunpack.c.l.b16 %v3730
    %v3799 = vunpack.c.l.b16 %v3731
    %v3800 = vunpack.c.l.b16 %v3732
    %v3801 = vunpack.c.l.b16 %v3733
    %v3802 = vunpack.c.l.b16 %v3734
    %v3803 = vunpack.c.l.b16 %v3735
    %v3804 = vunpack.c.l.b16 %v3736
    %v3805 = vunpack.c.l.b16 %v3737
    %v3806 = vunpack.c.l.b16 %v3738
    %v3807 = vunpack.c.l.b16 %v3739
    %v3808 = vunpack.c.l.b16 %v3740
    %v3809 = vunpack.c.l.b16 %v3741
    %v3810 = vunpack.c.l.b16 %v3742
    %v3811 = vunpack.c.l.b16 %v3743
    %v3812 = vunpack.c.l.b16 %v3744
    %v3813 = vunpack.c.l.b16 %v3745
    %v3814 = vunpack.c.l.b16 %v3746
    %v3815 = vunpack.c.l.b16 %v3747
    %v3816 = vunpack.c.l.b16 %v3748
    %v3817 = vunpack.c.l.b16 %v3749
    %v3818 = vunpack.c.l.b16 %v3750
    %v3819 = vunpack.c.l.b16 %v3751
    %v3820 = vunpack.c.l.b16 %v3752
    %v3821 = vunpack.c.l.b16 %v3753
    %v3822 = vunpack.c.l.b16 %v3754
    %v3823 = vpack.c.b16 %v3792, %v3791
    %v3824 = vpack.c.b16 %v3794, %v3793
    %v3825 = vpack.c.b16 %v3796, %v3795
    %v3826 = vpack.c.b16 %v3798, %v3797
    %v3827 = vpack.c.b16 %v3800, %v3799
    %v3828 = vpack.c.b16 %v3802, %v3801
    %v3829 = vpack.c.b16 %v3804, %v3803
    %v3830 = vpack.c.b16 %v3806, %v3805
    %v3831 = vpack.c.b16 %v3808, %v3807
    %v3832 = vpack.c.b16 %v3810, %v3809
    %v3833 = vpack.c.b16 %v3812, %v3811
    %v3834 = vpack.c.b16 %v3814, %v3813
    %v3835 = vpack.c.b16 %v3816, %v3815
    %v3836 = vpack.c.b16 %v3818, %v3817
    %v3837 = vpack.c.b16 %v3820, %v3819
    %v3838 = vpack.c.b16 %v3822, %v3821
    %3855 = vmatpush.bf16.msra.mxu0 %v3830
    %3856 = vmatpush.bf16.msra.mxu0 %v3829
    %3857 = vmatpush.bf16.msra.mxu0 %v3828
    %3858 = vmatpush.bf16.msra.mxu0 %v3827
    %3859 = vmatpush.bf16.msra.mxu0 %v3826
    %3860 = vmatpush.bf16.msra.mxu0 %v3825
    %3861 = vmatpush.bf16.msra.mxu0 %v3824
    %3862 = vmatpush.bf16.msra.mxu0 %v3823
    %3863 = vmatmul.bf16.gmra.mxu0 %v3755
    %v3864 = vpop.f32.mrf.mxu0
    %v3865 = vadd.f32 0.0, %v3864
    %v3866 = vpop.f32.mrf.mxu0
    %3867 = vdwg.mxu0
    %3868 = vmatpush.bf16.msra.mxu0 %v3838
    %3869 = vmatpush.bf16.msra.mxu0 %v3837
    %3870 = vmatpush.bf16.msra.mxu0 %v3836
    %3871 = vmatpush.bf16.msra.mxu0 %v3835
    %3872 = vmatpush.bf16.msra.mxu0 %v3834
    %3873 = vmatpush.bf16.msra.mxu0 %v3833
    %3874 = vmatpush.bf16.msra.mxu0 %v3832
    %3875 = vmatpush.bf16.msra.mxu0 %v3831
    %3876 = vmatmul.bf16.gmra.mxu0 %v3756
    %v3877 = vpop.f32.mrf.mxu0
    %v3878 = vadd.f32 %v3865, %v3877
    %v3879 = vpop.f32.mrf.mxu0
    %3880 = vdwg.mxu0
    %v3913 = vunpack.c.l.b16 %v3690
    %v3914 = vunpack.c.l.b16 %v3691
    %v3915 = vunpack.c.l.b16 %v3692
    %v3916 = vunpack.c.l.b16 %v3693
    %v3917 = vunpack.c.l.b16 %v3694
    %v3918 = vunpack.c.l.b16 %v3695
    %v3919 = vunpack.c.l.b16 %v3696
    %v3920 = vunpack.c.l.b16 %v3697
    %v3921 = vunpack.c.l.b16 %v3698
    %v3922 = vunpack.c.l.b16 %v3699
    %v3923 = vunpack.c.l.b16 %v3700
    %v3924 = vunpack.c.l.b16 %v3701
    %v3925 = vunpack.c.l.b16 %v3702
    %v3926 = vunpack.c.l.b16 %v3703
    %v3927 = vunpack.c.l.b16 %v3704
    %v3928 = vunpack.c.l.b16 %v3705
    %v3929 = vunpack.c.l.b16 %v3706
    %v3930 = vunpack.c.l.b16 %v3707
    %v3931 = vunpack.c.l.b16 %v3708
    %v3932 = vunpack.c.l.b16 %v3709
    %v3933 = vunpack.c.l.b16 %v3710
    %v3934 = vunpack.c.l.b16 %v3711
    %v3935 = vunpack.c.l.b16 %v3712
    %v3936 = vunpack.c.l.b16 %v3713
    %v3937 = vunpack.c.l.b16 %v3714
    %v3938 = vunpack.c.l.b16 %v3715
    %v3939 = vunpack.c.l.b16 %v3716
    %v3940 = vunpack.c.l.b16 %v3717
    %v3941 = vunpack.c.l.b16 %v3718
    %v3942 = vunpack.c.l.b16 %v3719
    %v3943 = vunpack.c.l.b16 %v3720
    %v3944 = vunpack.c.l.b16 %v3721
    %v3945 = vpack.c.b16 %v3914, %v3913
    %v3946 = vpack.c.b16 %v3916, %v3915
    %v3947 = vpack.c.b16 %v3918, %v3917
    %v3948 = vpack.c.b16 %v3920, %v3919
    %v3949 = vpack.c.b16 %v3922, %v3921
    %v3950 = vpack.c.b16 %v3924, %v3923
    %v3951 = vpack.c.b16 %v3926, %v3925
    %v3952 = vpack.c.b16 %v3928, %v3927
    %v3953 = vpack.c.b16 %v3930, %v3929
    %v3954 = vpack.c.b16 %v3932, %v3931
    %v3955 = vpack.c.b16 %v3934, %v3933
    %v3956 = vpack.c.b16 %v3936, %v3935
    %v3957 = vpack.c.b16 %v3938, %v3937
    %v3958 = vpack.c.b16 %v3940, %v3939
    %v3959 = vpack.c.b16 %v3942, %v3941
    %v3960 = vpack.c.b16 %v3944, %v3943
    %3977 = vmatpush.bf16.msra.mxu0 %v3952
    %3978 = vmatpush.bf16.msra.mxu0 %v3951
    %3979 = vmatpush.bf16.msra.mxu0 %v3950
    %3980 = vmatpush.bf16.msra.mxu0 %v3949
    %3981 = vmatpush.bf16.msra.mxu0 %v3948
    %3982 = vmatpush.bf16.msra.mxu0 %v3947
    %3983 = vmatpush.bf16.msra.mxu0 %v3946
    %3984 = vmatpush.bf16.msra.mxu0 %v3945
    %3985 = vmatmul.bf16.gmra.mxu0 %v3563
    %v3986 = vpop.f32.mrf.mxu0
    %v3987 = vadd.f32 %v3878, %v3986
    %v3988 = vpop.f32.mrf.mxu0
    %3989 = vdwg.mxu0
    %3990 = vmatpush.bf16.msra.mxu0 %v3960
    %3991 = vmatpush.bf16.msra.mxu0 %v3959
    %3992 = vmatpush.bf16.msra.mxu0 %v3958
    %3993 = vmatpush.bf16.msra.mxu0 %v3957
    %3994 = vmatpush.bf16.msra.mxu0 %v3956
    %3995 = vmatpush.bf16.msra.mxu0 %v3955
    %3996 = vmatpush.bf16.msra.mxu0 %v3954
    %3997 = vmatpush.bf16.msra.mxu0 %v3953
    %3998 = vmatmul.bf16.gmra.mxu0 %v3564
    %v3999 = vpop.f32.mrf.mxu0
    %v4000 = vadd.f32 %v3987, %v3999
    %v4001 = vpop.f32.mrf.mxu0
    %4002 = vdwg.mxu0
    %s4003 = scalar_lea.vmem %s8, 384
    %v4004 = vld [vmem:[%s4003] sm:$0xf]
    %v4005 = vld [vmem:[%s4003 + $0x4] sm:$0xf]
    %v4006 = vld [vmem:[%s4003 + $0x8] sm:$0xf]
    %v4007 = vld [vmem:[%s4003 + $0xc] sm:$0xf]
    %v4008 = vld [vmem:[%s4003 + $0x10] sm:$0xf]
    %v4009 = vld [vmem:[%s4003 + $0x14] sm:$0xf]
    %v4010 = vld [vmem:[%s4003 + $0x18] sm:$0xf]
    %v4011 = vld [vmem:[%s4003 + $0x1c] sm:$0xf]
    %v4012 = vld [vmem:[%s4003 + $0x20] sm:$0xf]
    %v4013 = vld [vmem:[%s4003 + $0x24] sm:$0xf]
    %v4014 = vld [vmem:[%s4003 + $0x28] sm:$0xf]
    %v4015 = vld [vmem:[%s4003 + $0x2c] sm:$0xf]
    %v4016 = vld [vmem:[%s4003 + $0x30] sm:$0xf]
    %v4017 = vld [vmem:[%s4003 + $0x34] sm:$0xf]
    %v4018 = vld [vmem:[%s4003 + $0x38] sm:$0xf]
    %v4019 = vld [vmem:[%s4003 + $0x3c] sm:$0xf]
    %v4020 = vld [vmem:[%s4003 + $0x40] sm:$0xf]
    %v4021 = vld [vmem:[%s4003 + $0x44] sm:$0xf]
    %v4022 = vld [vmem:[%s4003 + $0x48] sm:$0xf]
    %v4023 = vld [vmem:[%s4003 + $0x4c] sm:$0xf]
    %v4024 = vld [vmem:[%s4003 + $0x50] sm:$0xf]
    %v4025 = vld [vmem:[%s4003 + $0x54] sm:$0xf]
    %v4026 = vld [vmem:[%s4003 + $0x58] sm:$0xf]
    %v4027 = vld [vmem:[%s4003 + $0x5c] sm:$0xf]
    %v4028 = vld [vmem:[%s4003 + $0x60] sm:$0xf]
    %v4029 = vld [vmem:[%s4003 + $0x64] sm:$0xf]
    %v4030 = vld [vmem:[%s4003 + $0x68] sm:$0xf]
    %v4031 = vld [vmem:[%s4003 + $0x6c] sm:$0xf]
    %v4032 = vld [vmem:[%s4003 + $0x70] sm:$0xf]
    %v4033 = vld [vmem:[%s4003 + $0x74] sm:$0xf]
    %v4034 = vld [vmem:[%s4003 + $0x78] sm:$0xf]
    %v4035 = vld [vmem:[%s4003 + $0x7c] sm:$0xf]
    %s4036 = scalar_lea.vmem %s8, 512
    %v4037 = vld [vmem:[%s4036] sm:$0xf]
    %v4038 = vld [vmem:[%s4036 + $0x4] sm:$0xf]
    %v4039 = vld [vmem:[%s4036 + $0x8] sm:$0xf]
    %v4040 = vld [vmem:[%s4036 + $0xc] sm:$0xf]
    %v4041 = vld [vmem:[%s4036 + $0x10] sm:$0xf]
    %v4042 = vld [vmem:[%s4036 + $0x14] sm:$0xf]
    %v4043 = vld [vmem:[%s4036 + $0x18] sm:$0xf]
    %v4044 = vld [vmem:[%s4036 + $0x1c] sm:$0xf]
    %v4045 = vld [vmem:[%s4036 + $0x20] sm:$0xf]
    %v4046 = vld [vmem:[%s4036 + $0x24] sm:$0xf]
    %v4047 = vld [vmem:[%s4036 + $0x28] sm:$0xf]
    %v4048 = vld [vmem:[%s4036 + $0x2c] sm:$0xf]
    %v4049 = vld [vmem:[%s4036 + $0x30] sm:$0xf]
    %v4050 = vld [vmem:[%s4036 + $0x34] sm:$0xf]
    %v4051 = vld [vmem:[%s4036 + $0x38] sm:$0xf]
    %v4052 = vld [vmem:[%s4036 + $0x3c] sm:$0xf]
    %v4053 = vld [vmem:[%s4036 + $0x40] sm:$0xf]
    %v4054 = vld [vmem:[%s4036 + $0x44] sm:$0xf]
    %v4055 = vld [vmem:[%s4036 + $0x48] sm:$0xf]
    %v4056 = vld [vmem:[%s4036 + $0x4c] sm:$0xf]
    %v4057 = vld [vmem:[%s4036 + $0x50] sm:$0xf]
    %v4058 = vld [vmem:[%s4036 + $0x54] sm:$0xf]
    %v4059 = vld [vmem:[%s4036 + $0x58] sm:$0xf]
    %v4060 = vld [vmem:[%s4036 + $0x5c] sm:$0xf]
    %v4061 = vld [vmem:[%s4036 + $0x60] sm:$0xf]
    %v4062 = vld [vmem:[%s4036 + $0x64] sm:$0xf]
    %v4063 = vld [vmem:[%s4036 + $0x68] sm:$0xf]
    %v4064 = vld [vmem:[%s4036 + $0x6c] sm:$0xf]
    %v4065 = vld [vmem:[%s4036 + $0x70] sm:$0xf]
    %v4066 = vld [vmem:[%s4036 + $0x74] sm:$0xf]
    %v4067 = vld [vmem:[%s4036 + $0x78] sm:$0xf]
    %v4068 = vld [vmem:[%s4036 + $0x7c] sm:$0xf]
    %v4101 = vunpack.c.l.b16 %v4037
    %v4102 = vunpack.c.l.b16 %v4038
    %v4103 = vunpack.c.l.b16 %v4039
    %v4104 = vunpack.c.l.b16 %v4040
    %v4105 = vunpack.c.l.b16 %v4041
    %v4106 = vunpack.c.l.b16 %v4042
    %v4107 = vunpack.c.l.b16 %v4043
    %v4108 = vunpack.c.l.b16 %v4044
    %v4109 = vunpack.c.l.b16 %v4045
    %v4110 = vunpack.c.l.b16 %v4046
    %v4111 = vunpack.c.l.b16 %v4047
    %v4112 = vunpack.c.l.b16 %v4048
    %v4113 = vunpack.c.l.b16 %v4049
    %v4114 = vunpack.c.l.b16 %v4050
    %v4115 = vunpack.c.l.b16 %v4051
    %v4116 = vunpack.c.l.b16 %v4052
    %v4117 = vunpack.c.l.b16 %v4053
    %v4118 = vunpack.c.l.b16 %v4054
    %v4119 = vunpack.c.l.b16 %v4055
    %v4120 = vunpack.c.l.b16 %v4056
    %v4121 = vunpack.c.l.b16 %v4057
    %v4122 = vunpack.c.l.b16 %v4058
    %v4123 = vunpack.c.l.b16 %v4059
    %v4124 = vunpack.c.l.b16 %v4060
    %v4125 = vunpack.c.l.b16 %v4061
    %v4126 = vunpack.c.l.b16 %v4062
    %v4127 = vunpack.c.l.b16 %v4063
    %v4128 = vunpack.c.l.b16 %v4064
    %v4129 = vunpack.c.l.b16 %v4065
    %v4130 = vunpack.c.l.b16 %v4066
    %v4131 = vunpack.c.l.b16 %v4067
    %v4132 = vunpack.c.l.b16 %v4068
    %v4133 = vpack.c.b16 %v4102, %v4101
    %v4134 = vpack.c.b16 %v4104, %v4103
    %v4135 = vpack.c.b16 %v4106, %v4105
    %v4136 = vpack.c.b16 %v4108, %v4107
    %v4137 = vpack.c.b16 %v4110, %v4109
    %v4138 = vpack.c.b16 %v4112, %v4111
    %v4139 = vpack.c.b16 %v4114, %v4113
    %v4140 = vpack.c.b16 %v4116, %v4115
    %v4141 = vpack.c.b16 %v4118, %v4117
    %v4142 = vpack.c.b16 %v4120, %v4119
    %v4143 = vpack.c.b16 %v4122, %v4121
    %v4144 = vpack.c.b16 %v4124, %v4123
    %v4145 = vpack.c.b16 %v4126, %v4125
    %v4146 = vpack.c.b16 %v4128, %v4127
    %v4147 = vpack.c.b16 %v4130, %v4129
    %v4148 = vpack.c.b16 %v4132, %v4131
    %4165 = vmatpush.bf16.msra.mxu0 %v4140
    %4166 = vmatpush.bf16.msra.mxu0 %v4139
    %4167 = vmatpush.bf16.msra.mxu0 %v4138
    %4168 = vmatpush.bf16.msra.mxu0 %v4137
    %4169 = vmatpush.bf16.msra.mxu0 %v4136
    %4170 = vmatpush.bf16.msra.mxu0 %v4135
    %4171 = vmatpush.bf16.msra.mxu0 %v4134
    %4172 = vmatpush.bf16.msra.mxu0 %v4133
    %4173 = vmatmul.bf16.gmra.mxu0 %v3755
    %v4174 = vpop.f32.mrf.mxu0
    %v4175 = vadd.f32 0.0, %v4174
    %v4176 = vpop.f32.mrf.mxu0
    %4177 = vdwg.mxu0
    %4178 = vmatpush.bf16.msra.mxu0 %v4148
    %4179 = vmatpush.bf16.msra.mxu0 %v4147
    %4180 = vmatpush.bf16.msra.mxu0 %v4146
    %4181 = vmatpush.bf16.msra.mxu0 %v4145
    %4182 = vmatpush.bf16.msra.mxu0 %v4144
    %4183 = vmatpush.bf16.msra.mxu0 %v4143
    %4184 = vmatpush.bf16.msra.mxu0 %v4142
    %4185 = vmatpush.bf16.msra.mxu0 %v4141
    %4186 = vmatmul.bf16.gmra.mxu0 %v3756
    %v4187 = vpop.f32.mrf.mxu0
    %v4188 = vadd.f32 %v4175, %v4187
    %v4189 = vpop.f32.mrf.mxu0
    %4190 = vdwg.mxu0
    %v4223 = vunpack.c.l.b16 %v4004
    %v4224 = vunpack.c.l.b16 %v4005
    %v4225 = vunpack.c.l.b16 %v4006
    %v4226 = vunpack.c.l.b16 %v4007
    %v4227 = vunpack.c.l.b16 %v4008
    %v4228 = vunpack.c.l.b16 %v4009
    %v4229 = vunpack.c.l.b16 %v4010
    %v4230 = vunpack.c.l.b16 %v4011
    %v4231 = vunpack.c.l.b16 %v4012
    %v4232 = vunpack.c.l.b16 %v4013
    %v4233 = vunpack.c.l.b16 %v4014
    %v4234 = vunpack.c.l.b16 %v4015
    %v4235 = vunpack.c.l.b16 %v4016
    %v4236 = vunpack.c.l.b16 %v4017
    %v4237 = vunpack.c.l.b16 %v4018
    %v4238 = vunpack.c.l.b16 %v4019
    %v4239 = vunpack.c.l.b16 %v4020
    %v4240 = vunpack.c.l.b16 %v4021
    %v4241 = vunpack.c.l.b16 %v4022
    %v4242 = vunpack.c.l.b16 %v4023
    %v4243 = vunpack.c.l.b16 %v4024
    %v4244 = vunpack.c.l.b16 %v4025
    %v4245 = vunpack.c.l.b16 %v4026
    %v4246 = vunpack.c.l.b16 %v4027
    %v4247 = vunpack.c.l.b16 %v4028
    %v4248 = vunpack.c.l.b16 %v4029
    %v4249 = vunpack.c.l.b16 %v4030
    %v4250 = vunpack.c.l.b16 %v4031
    %v4251 = vunpack.c.l.b16 %v4032
    %v4252 = vunpack.c.l.b16 %v4033
    %v4253 = vunpack.c.l.b16 %v4034
    %v4254 = vunpack.c.l.b16 %v4035
    %v4255 = vpack.c.b16 %v4224, %v4223
    %v4256 = vpack.c.b16 %v4226, %v4225
    %v4257 = vpack.c.b16 %v4228, %v4227
    %v4258 = vpack.c.b16 %v4230, %v4229
    %v4259 = vpack.c.b16 %v4232, %v4231
    %v4260 = vpack.c.b16 %v4234, %v4233
    %v4261 = vpack.c.b16 %v4236, %v4235
    %v4262 = vpack.c.b16 %v4238, %v4237
    %v4263 = vpack.c.b16 %v4240, %v4239
    %v4264 = vpack.c.b16 %v4242, %v4241
    %v4265 = vpack.c.b16 %v4244, %v4243
    %v4266 = vpack.c.b16 %v4246, %v4245
    %v4267 = vpack.c.b16 %v4248, %v4247
    %v4268 = vpack.c.b16 %v4250, %v4249
    %v4269 = vpack.c.b16 %v4252, %v4251
    %v4270 = vpack.c.b16 %v4254, %v4253
    %4287 = vmatpush.bf16.msra.mxu0 %v4262
    %4288 = vmatpush.bf16.msra.mxu0 %v4261
    %4289 = vmatpush.bf16.msra.mxu0 %v4260
    %4290 = vmatpush.bf16.msra.mxu0 %v4259
    %4291 = vmatpush.bf16.msra.mxu0 %v4258
    %4292 = vmatpush.bf16.msra.mxu0 %v4257
    %4293 = vmatpush.bf16.msra.mxu0 %v4256
    %4294 = vmatpush.bf16.msra.mxu0 %v4255
    %4295 = vmatmul.bf16.gmra.mxu0 %v3563
    %v4296 = vpop.f32.mrf.mxu0
    %v4297 = vadd.f32 %v4188, %v4296
    %v4298 = vpop.f32.mrf.mxu0
    %4299 = vdwg.mxu0
    %4300 = vmatpush.bf16.msra.mxu0 %v4270
    %4301 = vmatpush.bf16.msra.mxu0 %v4269
    %4302 = vmatpush.bf16.msra.mxu0 %v4268
    %4303 = vmatpush.bf16.msra.mxu0 %v4267
    %4304 = vmatpush.bf16.msra.mxu0 %v4266
    %4305 = vmatpush.bf16.msra.mxu0 %v4265
    %4306 = vmatpush.bf16.msra.mxu0 %v4264
    %4307 = vmatpush.bf16.msra.mxu0 %v4263
    %4308 = vmatmul.bf16.gmra.mxu0 %v3564
    %v4309 = vpop.f32.mrf.mxu0
    %v4310 = vadd.f32 %v4297, %v4309
    %v4311 = vpop.f32.mrf.mxu0
    %4312 = vdwg.mxu0
    %s4313 = scalar_lea.vmem %s8, 640
    %v4314 = vld [vmem:[%s4313] sm:$0xf]
    %v4315 = vld [vmem:[%s4313 + $0x4] sm:$0xf]
    %v4316 = vld [vmem:[%s4313 + $0x8] sm:$0xf]
    %v4317 = vld [vmem:[%s4313 + $0xc] sm:$0xf]
    %v4318 = vld [vmem:[%s4313 + $0x10] sm:$0xf]
    %v4319 = vld [vmem:[%s4313 + $0x14] sm:$0xf]
    %v4320 = vld [vmem:[%s4313 + $0x18] sm:$0xf]
    %v4321 = vld [vmem:[%s4313 + $0x1c] sm:$0xf]
    %v4322 = vld [vmem:[%s4313 + $0x20] sm:$0xf]
    %v4323 = vld [vmem:[%s4313 + $0x24] sm:$0xf]
    %v4324 = vld [vmem:[%s4313 + $0x28] sm:$0xf]
    %v4325 = vld [vmem:[%s4313 + $0x2c] sm:$0xf]
    %v4326 = vld [vmem:[%s4313 + $0x30] sm:$0xf]
    %v4327 = vld [vmem:[%s4313 + $0x34] sm:$0xf]
    %v4328 = vld [vmem:[%s4313 + $0x38] sm:$0xf]
    %v4329 = vld [vmem:[%s4313 + $0x3c] sm:$0xf]
    %v4330 = vld [vmem:[%s4313 + $0x40] sm:$0xf]
    %v4331 = vld [vmem:[%s4313 + $0x44] sm:$0xf]
    %v4332 = vld [vmem:[%s4313 + $0x48] sm:$0xf]
    %v4333 = vld [vmem:[%s4313 + $0x4c] sm:$0xf]
    %v4334 = vld [vmem:[%s4313 + $0x50] sm:$0xf]
    %v4335 = vld [vmem:[%s4313 + $0x54] sm:$0xf]
    %v4336 = vld [vmem:[%s4313 + $0x58] sm:$0xf]
    %v4337 = vld [vmem:[%s4313 + $0x5c] sm:$0xf]
    %v4338 = vld [vmem:[%s4313 + $0x60] sm:$0xf]
    %v4339 = vld [vmem:[%s4313 + $0x64] sm:$0xf]
    %v4340 = vld [vmem:[%s4313 + $0x68] sm:$0xf]
    %v4341 = vld [vmem:[%s4313 + $0x6c] sm:$0xf]
    %v4342 = vld [vmem:[%s4313 + $0x70] sm:$0xf]
    %v4343 = vld [vmem:[%s4313 + $0x74] sm:$0xf]
    %v4344 = vld [vmem:[%s4313 + $0x78] sm:$0xf]
    %v4345 = vld [vmem:[%s4313 + $0x7c] sm:$0xf]
    %s4346 = scalar_lea.vmem %s8, 768
    %v4347 = vld [vmem:[%s4346] sm:$0xf]
    %v4348 = vld [vmem:[%s4346 + $0x4] sm:$0xf]
    %v4349 = vld [vmem:[%s4346 + $0x8] sm:$0xf]
    %v4350 = vld [vmem:[%s4346 + $0xc] sm:$0xf]
    %v4351 = vld [vmem:[%s4346 + $0x10] sm:$0xf]
    %v4352 = vld [vmem:[%s4346 + $0x14] sm:$0xf]
    %v4353 = vld [vmem:[%s4346 + $0x18] sm:$0xf]
    %v4354 = vld [vmem:[%s4346 + $0x1c] sm:$0xf]
    %v4355 = vld [vmem:[%s4346 + $0x20] sm:$0xf]
    %v4356 = vld [vmem:[%s4346 + $0x24] sm:$0xf]
    %v4357 = vld [vmem:[%s4346 + $0x28] sm:$0xf]
    %v4358 = vld [vmem:[%s4346 + $0x2c] sm:$0xf]
    %v4359 = vld [vmem:[%s4346 + $0x30] sm:$0xf]
    %v4360 = vld [vmem:[%s4346 + $0x34] sm:$0xf]
    %v4361 = vld [vmem:[%s4346 + $0x38] sm:$0xf]
    %v4362 = vld [vmem:[%s4346 + $0x3c] sm:$0xf]
    %v4363 = vld [vmem:[%s4346 + $0x40] sm:$0xf]
    %v4364 = vld [vmem:[%s4346 + $0x44] sm:$0xf]
    %v4365 = vld [vmem:[%s4346 + $0x48] sm:$0xf]
    %v4366 = vld [vmem:[%s4346 + $0x4c] sm:$0xf]
    %v4367 = vld [vmem:[%s4346 + $0x50] sm:$0xf]
    %v4368 = vld [vmem:[%s4346 + $0x54] sm:$0xf]
    %v4369 = vld [vmem:[%s4346 + $0x58] sm:$0xf]
    %v4370 = vld [vmem:[%s4346 + $0x5c] sm:$0xf]
    %v4371 = vld [vmem:[%s4346 + $0x60] sm:$0xf]
    %v4372 = vld [vmem:[%s4346 + $0x64] sm:$0xf]
    %v4373 = vld [vmem:[%s4346 + $0x68] sm:$0xf]
    %v4374 = vld [vmem:[%s4346 + $0x6c] sm:$0xf]
    %v4375 = vld [vmem:[%s4346 + $0x70] sm:$0xf]
    %v4376 = vld [vmem:[%s4346 + $0x74] sm:$0xf]
    %v4377 = vld [vmem:[%s4346 + $0x78] sm:$0xf]
    %v4378 = vld [vmem:[%s4346 + $0x7c] sm:$0xf]
    %v4411 = vunpack.c.l.b16 %v4347
    %v4412 = vunpack.c.l.b16 %v4348
    %v4413 = vunpack.c.l.b16 %v4349
    %v4414 = vunpack.c.l.b16 %v4350
    %v4415 = vunpack.c.l.b16 %v4351
    %v4416 = vunpack.c.l.b16 %v4352
    %v4417 = vunpack.c.l.b16 %v4353
    %v4418 = vunpack.c.l.b16 %v4354
    %v4419 = vunpack.c.l.b16 %v4355
    %v4420 = vunpack.c.l.b16 %v4356
    %v4421 = vunpack.c.l.b16 %v4357
    %v4422 = vunpack.c.l.b16 %v4358
    %v4423 = vunpack.c.l.b16 %v4359
    %v4424 = vunpack.c.l.b16 %v4360
    %v4425 = vunpack.c.l.b16 %v4361
    %v4426 = vunpack.c.l.b16 %v4362
    %v4427 = vunpack.c.l.b16 %v4363
    %v4428 = vunpack.c.l.b16 %v4364
    %v4429 = vunpack.c.l.b16 %v4365
    %v4430 = vunpack.c.l.b16 %v4366
    %v4431 = vunpack.c.l.b16 %v4367
    %v4432 = vunpack.c.l.b16 %v4368
    %v4433 = vunpack.c.l.b16 %v4369
    %v4434 = vunpack.c.l.b16 %v4370
    %v4435 = vunpack.c.l.b16 %v4371
    %v4436 = vunpack.c.l.b16 %v4372
    %v4437 = vunpack.c.l.b16 %v4373
    %v4438 = vunpack.c.l.b16 %v4374
    %v4439 = vunpack.c.l.b16 %v4375
    %v4440 = vunpack.c.l.b16 %v4376
    %v4441 = vunpack.c.l.b16 %v4377
    %v4442 = vunpack.c.l.b16 %v4378
    %v4443 = vpack.c.b16 %v4412, %v4411
    %v4444 = vpack.c.b16 %v4414, %v4413
    %v4445 = vpack.c.b16 %v4416, %v4415
    %v4446 = vpack.c.b16 %v4418, %v4417
    %v4447 = vpack.c.b16 %v4420, %v4419
    %v4448 = vpack.c.b16 %v4422, %v4421
    %v4449 = vpack.c.b16 %v4424, %v4423
    %v4450 = vpack.c.b16 %v4426, %v4425
    %v4451 = vpack.c.b16 %v4428, %v4427
    %v4452 = vpack.c.b16 %v4430, %v4429
    %v4453 = vpack.c.b16 %v4432, %v4431
    %v4454 = vpack.c.b16 %v4434, %v4433
    %v4455 = vpack.c.b16 %v4436, %v4435
    %v4456 = vpack.c.b16 %v4438, %v4437
    %v4457 = vpack.c.b16 %v4440, %v4439
    %v4458 = vpack.c.b16 %v4442, %v4441
    %4475 = vmatpush.bf16.msra.mxu0 %v4450
    %4476 = vmatpush.bf16.msra.mxu0 %v4449
    %4477 = vmatpush.bf16.msra.mxu0 %v4448
    %4478 = vmatpush.bf16.msra.mxu0 %v4447
    %4479 = vmatpush.bf16.msra.mxu0 %v4446
    %4480 = vmatpush.bf16.msra.mxu0 %v4445
    %4481 = vmatpush.bf16.msra.mxu0 %v4444
    %4482 = vmatpush.bf16.msra.mxu0 %v4443
    %4483 = vmatmul.bf16.gmra.mxu0 %v3755
    %v4484 = vpop.f32.mrf.mxu0
    %v4485 = vadd.f32 0.0, %v4484
    %v4486 = vpop.f32.mrf.mxu0
    %4487 = vdwg.mxu0
    %4488 = vmatpush.bf16.msra.mxu0 %v4458
    %4489 = vmatpush.bf16.msra.mxu0 %v4457
    %4490 = vmatpush.bf16.msra.mxu0 %v4456
    %4491 = vmatpush.bf16.msra.mxu0 %v4455
    %4492 = vmatpush.bf16.msra.mxu0 %v4454
    %4493 = vmatpush.bf16.msra.mxu0 %v4453
    %4494 = vmatpush.bf16.msra.mxu0 %v4452
    %4495 = vmatpush.bf16.msra.mxu0 %v4451
    %4496 = vmatmul.bf16.gmra.mxu0 %v3756
    %v4497 = vpop.f32.mrf.mxu0
    %v4498 = vadd.f32 %v4485, %v4497
    %v4499 = vpop.f32.mrf.mxu0
    %4500 = vdwg.mxu0
    %v4533 = vunpack.c.l.b16 %v4314
    %v4534 = vunpack.c.l.b16 %v4315
    %v4535 = vunpack.c.l.b16 %v4316
    %v4536 = vunpack.c.l.b16 %v4317
    %v4537 = vunpack.c.l.b16 %v4318
    %v4538 = vunpack.c.l.b16 %v4319
    %v4539 = vunpack.c.l.b16 %v4320
    %v4540 = vunpack.c.l.b16 %v4321
    %v4541 = vunpack.c.l.b16 %v4322
    %v4542 = vunpack.c.l.b16 %v4323
    %v4543 = vunpack.c.l.b16 %v4324
    %v4544 = vunpack.c.l.b16 %v4325
    %v4545 = vunpack.c.l.b16 %v4326
    %v4546 = vunpack.c.l.b16 %v4327
    %v4547 = vunpack.c.l.b16 %v4328
    %v4548 = vunpack.c.l.b16 %v4329
    %v4549 = vunpack.c.l.b16 %v4330
    %v4550 = vunpack.c.l.b16 %v4331
    %v4551 = vunpack.c.l.b16 %v4332
    %v4552 = vunpack.c.l.b16 %v4333
    %v4553 = vunpack.c.l.b16 %v4334
    %v4554 = vunpack.c.l.b16 %v4335
    %v4555 = vunpack.c.l.b16 %v4336
    %v4556 = vunpack.c.l.b16 %v4337
    %v4557 = vunpack.c.l.b16 %v4338
    %v4558 = vunpack.c.l.b16 %v4339
    %v4559 = vunpack.c.l.b16 %v4340
    %v4560 = vunpack.c.l.b16 %v4341
    %v4561 = vunpack.c.l.b16 %v4342
    %v4562 = vunpack.c.l.b16 %v4343
    %v4563 = vunpack.c.l.b16 %v4344
    %v4564 = vunpack.c.l.b16 %v4345
    %v4565 = vpack.c.b16 %v4534, %v4533
    %v4566 = vpack.c.b16 %v4536, %v4535
    %v4567 = vpack.c.b16 %v4538, %v4537
    %v4568 = vpack.c.b16 %v4540, %v4539
    %v4569 = vpack.c.b16 %v4542, %v4541
    %v4570 = vpack.c.b16 %v4544, %v4543
    %v4571 = vpack.c.b16 %v4546, %v4545
    %v4572 = vpack.c.b16 %v4548, %v4547
    %v4573 = vpack.c.b16 %v4550, %v4549
    %v4574 = vpack.c.b16 %v4552, %v4551
    %v4575 = vpack.c.b16 %v4554, %v4553
    %v4576 = vpack.c.b16 %v4556, %v4555
    %v4577 = vpack.c.b16 %v4558, %v4557
    %v4578 = vpack.c.b16 %v4560, %v4559
    %v4579 = vpack.c.b16 %v4562, %v4561
    %v4580 = vpack.c.b16 %v4564, %v4563
    %4597 = vmatpush.bf16.msra.mxu0 %v4572
    %4598 = vmatpush.bf16.msra.mxu0 %v4571
    %4599 = vmatpush.bf16.msra.mxu0 %v4570
    %4600 = vmatpush.bf16.msra.mxu0 %v4569
    %4601 = vmatpush.bf16.msra.mxu0 %v4568
    %4602 = vmatpush.bf16.msra.mxu0 %v4567
    %4603 = vmatpush.bf16.msra.mxu0 %v4566
    %4604 = vmatpush.bf16.msra.mxu0 %v4565
    %4605 = vmatmul.bf16.gmra.mxu0 %v3563
    %v4606 = vpop.f32.mrf.mxu0
    %v4607 = vadd.f32 %v4498, %v4606
    %v4608 = vpop.f32.mrf.mxu0
    %4609 = vdwg.mxu0
    %4610 = vmatpush.bf16.msra.mxu0 %v4580
    %4611 = vmatpush.bf16.msra.mxu0 %v4579
    %4612 = vmatpush.bf16.msra.mxu0 %v4578
    %4613 = vmatpush.bf16.msra.mxu0 %v4577
    %4614 = vmatpush.bf16.msra.mxu0 %v4576
    %4615 = vmatpush.bf16.msra.mxu0 %v4575
    %4616 = vmatpush.bf16.msra.mxu0 %v4574
    %4617 = vmatpush.bf16.msra.mxu0 %v4573
    %4618 = vmatmul.bf16.gmra.mxu0 %v3564
    %v4619 = vpop.f32.mrf.mxu0
    %v4620 = vadd.f32 %v4607, %v4619
    %v4621 = vpop.f32.mrf.mxu0
    %4622 = vdwg.mxu0
    %s4623 = scalar_lea.vmem %s8, 896
    %v4624 = vld [vmem:[%s4623] sm:$0xf]
    %v4625 = vld [vmem:[%s4623 + $0x4] sm:$0xf]
    %v4626 = vld [vmem:[%s4623 + $0x8] sm:$0xf]
    %v4627 = vld [vmem:[%s4623 + $0xc] sm:$0xf]
    %v4628 = vld [vmem:[%s4623 + $0x10] sm:$0xf]
    %v4629 = vld [vmem:[%s4623 + $0x14] sm:$0xf]
    %v4630 = vld [vmem:[%s4623 + $0x18] sm:$0xf]
    %v4631 = vld [vmem:[%s4623 + $0x1c] sm:$0xf]
    %v4632 = vld [vmem:[%s4623 + $0x20] sm:$0xf]
    %v4633 = vld [vmem:[%s4623 + $0x24] sm:$0xf]
    %v4634 = vld [vmem:[%s4623 + $0x28] sm:$0xf]
    %v4635 = vld [vmem:[%s4623 + $0x2c] sm:$0xf]
    %v4636 = vld [vmem:[%s4623 + $0x30] sm:$0xf]
    %v4637 = vld [vmem:[%s4623 + $0x34] sm:$0xf]
    %v4638 = vld [vmem:[%s4623 + $0x38] sm:$0xf]
    %v4639 = vld [vmem:[%s4623 + $0x3c] sm:$0xf]
    %v4640 = vld [vmem:[%s4623 + $0x40] sm:$0xf]
    %v4641 = vld [vmem:[%s4623 + $0x44] sm:$0xf]
    %v4642 = vld [vmem:[%s4623 + $0x48] sm:$0xf]
    %v4643 = vld [vmem:[%s4623 + $0x4c] sm:$0xf]
    %v4644 = vld [vmem:[%s4623 + $0x50] sm:$0xf]
    %v4645 = vld [vmem:[%s4623 + $0x54] sm:$0xf]
    %v4646 = vld [vmem:[%s4623 + $0x58] sm:$0xf]
    %v4647 = vld [vmem:[%s4623 + $0x5c] sm:$0xf]
    %v4648 = vld [vmem:[%s4623 + $0x60] sm:$0xf]
    %v4649 = vld [vmem:[%s4623 + $0x64] sm:$0xf]
    %v4650 = vld [vmem:[%s4623 + $0x68] sm:$0xf]
    %v4651 = vld [vmem:[%s4623 + $0x6c] sm:$0xf]
    %v4652 = vld [vmem:[%s4623 + $0x70] sm:$0xf]
    %v4653 = vld [vmem:[%s4623 + $0x74] sm:$0xf]
    %v4654 = vld [vmem:[%s4623 + $0x78] sm:$0xf]
    %v4655 = vld [vmem:[%s4623 + $0x7c] sm:$0xf]
    %v4688 = vunpack.c.l.b16 %v4624
    %v4689 = vunpack.c.l.b16 %v4625
    %v4690 = vunpack.c.l.b16 %v4626
    %v4691 = vunpack.c.l.b16 %v4627
    %v4692 = vunpack.c.l.b16 %v4628
    %v4693 = vunpack.c.l.b16 %v4629
    %v4694 = vunpack.c.l.b16 %v4630
    %v4695 = vunpack.c.l.b16 %v4631
    %v4696 = vunpack.c.l.b16 %v4632
    %v4697 = vunpack.c.l.b16 %v4633
    %v4698 = vunpack.c.l.b16 %v4634
    %v4699 = vunpack.c.l.b16 %v4635
    %v4700 = vunpack.c.l.b16 %v4636
    %v4701 = vunpack.c.l.b16 %v4637
    %v4702 = vunpack.c.l.b16 %v4638
    %v4703 = vunpack.c.l.b16 %v4639
    %v4704 = vunpack.c.l.b16 %v4640
    %v4705 = vunpack.c.l.b16 %v4641
    %v4706 = vunpack.c.l.b16 %v4642
    %v4707 = vunpack.c.l.b16 %v4643
    %v4708 = vunpack.c.l.b16 %v4644
    %v4709 = vunpack.c.l.b16 %v4645
    %v4710 = vunpack.c.l.b16 %v4646
    %v4711 = vunpack.c.l.b16 %v4647
    %v4712 = vunpack.c.l.b16 %v4648
    %v4713 = vunpack.c.l.b16 %v4649
    %v4714 = vunpack.c.l.b16 %v4650
    %v4715 = vunpack.c.l.b16 %v4651
    %v4716 = vunpack.c.l.b16 %v4652
    %v4717 = vunpack.c.l.b16 %v4653
    %v4718 = vunpack.c.l.b16 %v4654
    %v4719 = vunpack.c.l.b16 %v4655
    %v4720 = vpack.c.b16 %v4689, %v4688
    %v4721 = vpack.c.b16 %v4691, %v4690
    %v4722 = vpack.c.b16 %v4693, %v4692
    %v4723 = vpack.c.b16 %v4695, %v4694
    %v4724 = vpack.c.b16 %v4697, %v4696
    %v4725 = vpack.c.b16 %v4699, %v4698
    %v4726 = vpack.c.b16 %v4701, %v4700
    %v4727 = vpack.c.b16 %v4703, %v4702
    %v4728 = vpack.c.b16 %v4705, %v4704
    %v4729 = vpack.c.b16 %v4707, %v4706
    %v4730 = vpack.c.b16 %v4709, %v4708
    %v4731 = vpack.c.b16 %v4711, %v4710
    %v4732 = vpack.c.b16 %v4713, %v4712
    %v4733 = vpack.c.b16 %v4715, %v4714
    %v4734 = vpack.c.b16 %v4717, %v4716
    %v4735 = vpack.c.b16 %v4719, %v4718
    %4752 = vmatpush.bf16.msra.mxu0 %v4727
    %4753 = vmatpush.bf16.msra.mxu0 %v4726
    %4754 = vmatpush.bf16.msra.mxu0 %v4725
    %4755 = vmatpush.bf16.msra.mxu0 %v4724
    %4756 = vmatpush.bf16.msra.mxu0 %v4723
    %4757 = vmatpush.bf16.msra.mxu0 %v4722
    %4758 = vmatpush.bf16.msra.mxu0 %v4721
    %4759 = vmatpush.bf16.msra.mxu0 %v4720
    %4760 = vmatmul.bf16.gmra.mxu0 %v3755
    %v4761 = vpop.f32.mrf.mxu0
    %v4762 = vadd.f32 0.0, %v4761
    %v4763 = vpop.f32.mrf.mxu0
    %4764 = vdwg.mxu0
    %4765 = vmatpush.bf16.msra.mxu0 %v4735
    %4766 = vmatpush.bf16.msra.mxu0 %v4734
    %4767 = vmatpush.bf16.msra.mxu0 %v4733
    %4768 = vmatpush.bf16.msra.mxu0 %v4732
    %4769 = vmatpush.bf16.msra.mxu0 %v4731
    %4770 = vmatpush.bf16.msra.mxu0 %v4730
    %4771 = vmatpush.bf16.msra.mxu0 %v4729
    %4772 = vmatpush.bf16.msra.mxu0 %v4728
    %4773 = vmatmul.bf16.gmra.mxu0 %v3756
    %v4774 = vpop.f32.mrf.mxu0
    %v4775 = vadd.f32 %v4762, %v4774
    %v4776 = vpop.f32.mrf.mxu0
    %4777 = vdwg.mxu0
    %vm4778 = vcmask 517120
    %v4779 = vsel %vm4778, %v3686, 0.0
    %v4780 = vrot.slane %v4779, 4
    %v4781 = vadd.f32 %v4779, %v4780
    %v4782 = vrot.slane %v4781, 2
    %v4783 = vadd.f32 %v4781, %v4782
    %v4784 = vrot.slane %v4783, 1
    %v4785 = vadd.f32 %v4783, %v4784
    %v4786 = vmul.f32 %v4785, 29.0
    %v4787 = vadd.f32 %v4786, 0.0
    %v4788 = vmul.f32 %v3686, %v3686
    %v4789 = vsel %vm4778, %v4788, 0.0
    %v4790 = vrot.slane %v4789, 4
    %v4791 = vadd.f32 %v4789, %v4790
    %v4792 = vrot.slane %v4791, 2
    %v4793 = vadd.f32 %v4791, %v4792
    %v4794 = vrot.slane %v4793, 1
    %v4795 = vadd.f32 %v4793, %v4794
    %v4796 = vmul.f32 %v4795, 29.0
    %v4797 = vadd.f32 %v4796, 0.0
    %v4798 = vsel %vm4778, %v4000, 0.0
    %v4799 = vrot.slane %v4798, 4
    %v4800 = vadd.f32 %v4798, %v4799
    %v4801 = vrot.slane %v4800, 2
    %v4802 = vadd.f32 %v4800, %v4801
    %v4803 = vrot.slane %v4802, 1
    %v4804 = vadd.f32 %v4802, %v4803
    %v4805 = vadd.f32 %v4787, %v4804
    %v4806 = vmul.f32 %v4000, %v4000
    %v4807 = vsel %vm4778, %v4806, 0.0
    %v4808 = vrot.slane %v4807, 4
    %v4809 = vadd.f32 %v4807, %v4808
    %v4810 = vrot.slane %v4809, 2
    %v4811 = vadd.f32 %v4809, %v4810
    %v4812 = vrot.slane %v4811, 1
    %v4813 = vadd.f32 %v4811, %v4812
    %v4814 = vadd.f32 %v4797, %v4813
    %v4815 = vsel %vm4778, %v4310, 0.0
    %v4816 = vrot.slane %v4815, 4
    %v4817 = vadd.f32 %v4815, %v4816
    %v4818 = vrot.slane %v4817, 2
    %v4819 = vadd.f32 %v4817, %v4818
    %v4820 = vrot.slane %v4819, 1
    %v4821 = vadd.f32 %v4819, %v4820
    %v4822 = vadd.f32 %v4805, %v4821
    %v4823 = vmul.f32 %v4310, %v4310
    %v4824 = vsel %vm4778, %v4823, 0.0
    %v4825 = vrot.slane %v4824, 4
    %v4826 = vadd.f32 %v4824, %v4825
    %v4827 = vrot.slane %v4826, 2
    %v4828 = vadd.f32 %v4826, %v4827
    %v4829 = vrot.slane %v4828, 1
    %v4830 = vadd.f32 %v4828, %v4829
    %v4831 = vadd.f32 %v4814, %v4830
    %v4832 = vsel %vm4778, %v4620, 0.0
    %v4833 = vrot.slane %v4832, 4
    %v4834 = vadd.f32 %v4832, %v4833
    %v4835 = vrot.slane %v4834, 2
    %v4836 = vadd.f32 %v4834, %v4835
    %v4837 = vrot.slane %v4836, 1
    %v4838 = vadd.f32 %v4836, %v4837
    %v4839 = vadd.f32 %v4822, %v4838
    %v4840 = vmul.f32 %v4620, %v4620
    %v4841 = vsel %vm4778, %v4840, 0.0
    %v4842 = vrot.slane %v4841, 4
    %v4843 = vadd.f32 %v4841, %v4842
    %v4844 = vrot.slane %v4843, 2
    %v4845 = vadd.f32 %v4843, %v4844
    %v4846 = vrot.slane %v4845, 1
    %v4847 = vadd.f32 %v4845, %v4846
    %v4848 = vadd.f32 %v4831, %v4847
    %v4849 = vsel %vm4778, %v4775, 0.0
    %v4850 = vrot.slane %v4849, 4
    %v4851 = vadd.f32 %v4849, %v4850
    %v4852 = vrot.slane %v4851, 2
    %v4853 = vadd.f32 %v4851, %v4852
    %v4854 = vrot.slane %v4853, 1
    %v4855 = vadd.f32 %v4853, %v4854
    %v4856 = vmul.f32 %v4855, 29.0
    %v4857 = vadd.f32 %v4839, %v4856
    %v4858 = vmul.f32 %v4775, %v4775
    %v4859 = vsel %vm4778, %v4858, 0.0
    %v4860 = vrot.slane %v4859, 4
    %v4861 = vadd.f32 %v4859, %v4860
    %v4862 = vrot.slane %v4861, 2
    %v4863 = vadd.f32 %v4861, %v4862
    %v4864 = vrot.slane %v4863, 1
    %v4865 = vadd.f32 %v4863, %v4864
    %v4866 = vmul.f32 %v4865, 29.0
    %v4867 = vadd.f32 %v4848, %v4866
    %v4868 = vmul.f32 %v4857, 0.008196721
    %v4869 = vmul.f32 %v4867, 0.008196721
    %v4870 = vmul.f32 %v4868, %v4868
    %v4871 = vsub.f32 %v4869, %v4870
    %v4872 = vld [vmem:[%s15] sm:$0x1]
    %v4873 = vadd.f32 %v4871, 1e-05
    %v4874 = vrsqrt.pop %v4873
    %v4875 = vmul.f32 %v4874, %v4873
    %v4876 = vmul.f32 %v4875, %v4874
    %v4877 = vmul.f32 0.5, %v4876
    %v4878 = vsub.f32 1.5, %v4877
    %v4879 = vmul.f32 %v4874, %v4878
    %vm4880 = vweird.f32 %v4873
    %vm4881 = vweird.f32 %v4874
    %vm4882 = vmor %vm4880, %vm4881
    %v4883 = vsel %vm4882, %v4874, %v4879
    %v4884 = vmul.f32 %v4872, %v4883
    %v4885 = vld [vmem:[%s15 + $0x1] sm:$0x1]
    %v4886 = vmul.f32 %v4868, %v4884
    %v4887 = vsub.f32 %v4885, %v4886
    %v4888 = vperm.slane %v4884, 0
    %v4889 = vmul.f32 %v3686, %v4888
    %v4890 = vperm.slane %v4887, 0
    %v4891 = vadd.f32 %v4889, %v4890
    %v4892 = vpack.c.bf16 %v4891, %v4891
    %v4893 = vld [vmem:[%s9] sm:$0xf]
    %v4894 = vld [vmem:[%s9 + $0x4] sm:$0xf]
    %v4895 = vld [vmem:[%s9 + $0x8] sm:$0xf]
    %v4896 = vld [vmem:[%s9 + $0xc] sm:$0xf]
    %v4897 = vld [vmem:[%s9 + $0x10] sm:$0xf]
    %v4898 = vld [vmem:[%s9 + $0x14] sm:$0xf]
    %v4899 = vld [vmem:[%s9 + $0x18] sm:$0xf]
    %v4900 = vld [vmem:[%s9 + $0x1c] sm:$0xf]
    %v4901 = vmul.f32 %v4000, %v4888
    %v4902 = vadd.f32 %v4901, %v4890
    %v4903 = vpack.c.bf16 %v4902, %v4902
    %s4904 = scalar_lea.vmem %s9, 32
    %v4905 = vld [vmem:[%s4904] sm:$0xf]
    %v4906 = vld [vmem:[%s4904 + $0x4] sm:$0xf]
    %v4907 = vld [vmem:[%s4904 + $0x8] sm:$0xf]
    %v4908 = vld [vmem:[%s4904 + $0xc] sm:$0xf]
    %v4909 = vld [vmem:[%s4904 + $0x10] sm:$0xf]
    %v4910 = vld [vmem:[%s4904 + $0x14] sm:$0xf]
    %v4911 = vld [vmem:[%s4904 + $0x18] sm:$0xf]
    %v4912 = vld [vmem:[%s4904 + $0x1c] sm:$0xf]
    %v4921 = vunpack.c.l.b16 %v4905
    %v4922 = vunpack.c.l.b16 %v4906
    %v4923 = vunpack.c.l.b16 %v4907
    %v4924 = vunpack.c.l.b16 %v4908
    %v4925 = vunpack.c.l.b16 %v4909
    %v4926 = vunpack.c.l.b16 %v4910
    %v4927 = vunpack.c.l.b16 %v4911
    %v4928 = vunpack.c.l.b16 %v4912
    %v4929 = vpack.c.b16 %v4922, %v4921
    %v4930 = vpack.c.b16 %v4924, %v4923
    %v4931 = vpack.c.b16 %v4926, %v4925
    %v4932 = vpack.c.b16 %v4928, %v4927
    %v4938 = vsel %vm2086, %v4903, 0
    %4940 = vmatpush.bf16.msra.mxu0 0
    %4941 = vmatpush.bf16.msra.mxu0 0
    %4942 = vmatpush.bf16.msra.mxu0 0
    %4943 = vmatpush.bf16.msra.mxu0 0
    %4944 = vmatpush.bf16.msra.mxu0 %v4932
    %4945 = vmatpush.bf16.msra.mxu0 %v4931
    %4946 = vmatpush.bf16.msra.mxu0 %v4930
    %4947 = vmatpush.bf16.msra.mxu0 %v4929
    %4948 = vmatmul.bf16.gmra.mxu0 %v4938
    %v4949 = vpop.f32.mrf.mxu0
    %v4950 = vadd.f32 0.0, %v4949
    %v4951 = vpop.f32.mrf.mxu0
    %4952 = vdwg.mxu0
    %v4961 = vunpack.c.l.b16 %v4893
    %v4962 = vunpack.c.l.b16 %v4894
    %v4963 = vunpack.c.l.b16 %v4895
    %v4964 = vunpack.c.l.b16 %v4896
    %v4965 = vunpack.c.l.b16 %v4897
    %v4966 = vunpack.c.l.b16 %v4898
    %v4967 = vunpack.c.l.b16 %v4899
    %v4968 = vunpack.c.l.b16 %v4900
    %v4969 = vpack.c.b16 %v4962, %v4961
    %v4970 = vpack.c.b16 %v4964, %v4963
    %v4971 = vpack.c.b16 %v4966, %v4965
    %v4972 = vpack.c.b16 %v4968, %v4967
    %v4978 = vsel %vm2086, %v4892, 0
    %4980 = vmatpush.bf16.msra.mxu0 0
    %4981 = vmatpush.bf16.msra.mxu0 0
    %4982 = vmatpush.bf16.msra.mxu0 0
    %4983 = vmatpush.bf16.msra.mxu0 0
    %4984 = vmatpush.bf16.msra.mxu0 %v4972
    %4985 = vmatpush.bf16.msra.mxu0 %v4971
    %4986 = vmatpush.bf16.msra.mxu0 %v4970
    %4987 = vmatpush.bf16.msra.mxu0 %v4969
    %4988 = vmatmul.bf16.gmra.mxu0 %v4978
    %v4989 = vpop.f32.mrf.mxu0
    %v4990 = vadd.f32 %v4950, %v4989
    %v4991 = vpop.f32.mrf.mxu0
    %4992 = vdwg.mxu0
    %v4993 = vmul.f32 %v4310, %v4888
    %v4994 = vadd.f32 %v4993, %v4890
    %v4995 = vpack.c.bf16 %v4994, %v4994
    %s4996 = scalar_lea.vmem %s9, 64
    %v4997 = vld [vmem:[%s4996] sm:$0xf]
    %v4998 = vld [vmem:[%s4996 + $0x4] sm:$0xf]
    %v4999 = vld [vmem:[%s4996 + $0x8] sm:$0xf]
    %v5000 = vld [vmem:[%s4996 + $0xc] sm:$0xf]
    %v5001 = vld [vmem:[%s4996 + $0x10] sm:$0xf]
    %v5002 = vld [vmem:[%s4996 + $0x14] sm:$0xf]
    %v5003 = vld [vmem:[%s4996 + $0x18] sm:$0xf]
    %v5004 = vld [vmem:[%s4996 + $0x1c] sm:$0xf]
    %v5013 = vunpack.c.l.b16 %v4997
    %v5014 = vunpack.c.l.b16 %v4998
    %v5015 = vunpack.c.l.b16 %v4999
    %v5016 = vunpack.c.l.b16 %v5000
    %v5017 = vunpack.c.l.b16 %v5001
    %v5018 = vunpack.c.l.b16 %v5002
    %v5019 = vunpack.c.l.b16 %v5003
    %v5020 = vunpack.c.l.b16 %v5004
    %v5021 = vpack.c.b16 %v5014, %v5013
    %v5022 = vpack.c.b16 %v5016, %v5015
    %v5023 = vpack.c.b16 %v5018, %v5017
    %v5024 = vpack.c.b16 %v5020, %v5019
    %v5030 = vsel %vm2086, %v4995, 0
    %5032 = vmatpush.bf16.msra.mxu0 0
    %5033 = vmatpush.bf16.msra.mxu0 0
    %5034 = vmatpush.bf16.msra.mxu0 0
    %5035 = vmatpush.bf16.msra.mxu0 0
    %5036 = vmatpush.bf16.msra.mxu0 %v5024
    %5037 = vmatpush.bf16.msra.mxu0 %v5023
    %5038 = vmatpush.bf16.msra.mxu0 %v5022
    %5039 = vmatpush.bf16.msra.mxu0 %v5021
    %5040 = vmatmul.bf16.gmra.mxu0 %v5030
    %v5041 = vpop.f32.mrf.mxu0
    %v5042 = vadd.f32 0.0, %v5041
    %v5043 = vpop.f32.mrf.mxu0
    %5044 = vdwg.mxu0
    %v5045 = vadd.f32 %v4990, %v5042
    %v5046 = vmul.f32 %v4620, %v4888
    %v5047 = vadd.f32 %v5046, %v4890
    %v5048 = vpack.c.bf16 %v5047, %v5047
    %s5049 = scalar_lea.vmem %s9, 96
    %v5050 = vld [vmem:[%s5049] sm:$0xf]
    %v5051 = vld [vmem:[%s5049 + $0x4] sm:$0xf]
    %v5052 = vld [vmem:[%s5049 + $0x8] sm:$0xf]
    %v5053 = vld [vmem:[%s5049 + $0xc] sm:$0xf]
    %v5054 = vld [vmem:[%s5049 + $0x10] sm:$0xf]
    %v5055 = vld [vmem:[%s5049 + $0x14] sm:$0xf]
    %v5056 = vld [vmem:[%s5049 + $0x18] sm:$0xf]
    %v5057 = vld [vmem:[%s5049 + $0x1c] sm:$0xf]
    %v5066 = vunpack.c.l.b16 %v5050
    %v5067 = vunpack.c.l.b16 %v5051
    %v5068 = vunpack.c.l.b16 %v5052
    %v5069 = vunpack.c.l.b16 %v5053
    %v5070 = vunpack.c.l.b16 %v5054
    %v5071 = vunpack.c.l.b16 %v5055
    %v5072 = vunpack.c.l.b16 %v5056
    %v5073 = vunpack.c.l.b16 %v5057
    %v5074 = vpack.c.b16 %v5067, %v5066
    %v5075 = vpack.c.b16 %v5069, %v5068
    %v5076 = vpack.c.b16 %v5071, %v5070
    %v5077 = vpack.c.b16 %v5073, %v5072
    %v5083 = vsel %vm2086, %v5048, 0
    %5085 = vmatpush.bf16.msra.mxu0 0
    %5086 = vmatpush.bf16.msra.mxu0 0
    %5087 = vmatpush.bf16.msra.mxu0 0
    %5088 = vmatpush.bf16.msra.mxu0 0
    %5089 = vmatpush.bf16.msra.mxu0 %v5077
    %5090 = vmatpush.bf16.msra.mxu0 %v5076
    %5091 = vmatpush.bf16.msra.mxu0 %v5075
    %5092 = vmatpush.bf16.msra.mxu0 %v5074
    %5093 = vmatmul.bf16.gmra.mxu0 %v5083
    %v5094 = vpop.f32.mrf.mxu0
    %v5095 = vadd.f32 0.0, %v5094
    %v5096 = vpop.f32.mrf.mxu0
    %5097 = vdwg.mxu0
    %v5098 = vadd.f32 %v5045, %v5095
    %v5099 = vmul.f32 %v4775, %v4888
    %v5100 = vadd.f32 %v5099, %v4890
    %v5101 = vpack.c.bf16 %v5100, %v5100
    %s5102 = scalar_lea.vmem %s9, 128
    %v5103 = vld [vmem:[%s5102] sm:$0xf]
    %v5104 = vld [vmem:[%s5102 + $0x4] sm:$0xf]
    %v5105 = vld [vmem:[%s5102 + $0x8] sm:$0xf]
    %v5106 = vld [vmem:[%s5102 + $0xc] sm:$0xf]
    %v5107 = vld [vmem:[%s5102 + $0x10] sm:$0xf]
    %v5108 = vld [vmem:[%s5102 + $0x14] sm:$0xf]
    %v5109 = vld [vmem:[%s5102 + $0x18] sm:$0xf]
    %v5110 = vld [vmem:[%s5102 + $0x1c] sm:$0xf]
    %v5119 = vunpack.c.l.b16 %v5103
    %v5120 = vunpack.c.l.b16 %v5104
    %v5121 = vunpack.c.l.b16 %v5105
    %v5122 = vunpack.c.l.b16 %v5106
    %v5123 = vunpack.c.l.b16 %v5107
    %v5124 = vunpack.c.l.b16 %v5108
    %v5125 = vunpack.c.l.b16 %v5109
    %v5126 = vunpack.c.l.b16 %v5110
    %v5127 = vpack.c.b16 %v5120, %v5119
    %v5128 = vpack.c.b16 %v5122, %v5121
    %v5129 = vpack.c.b16 %v5124, %v5123
    %v5130 = vpack.c.b16 %v5126, %v5125
    %v5136 = vsel %vm2086, %v5101, 0
    %5138 = vmatpush.bf16.msra.mxu0 0
    %5139 = vmatpush.bf16.msra.mxu0 0
    %5140 = vmatpush.bf16.msra.mxu0 0
    %5141 = vmatpush.bf16.msra.mxu0 0
    %5142 = vmatpush.bf16.msra.mxu0 %v5130
    %5143 = vmatpush.bf16.msra.mxu0 %v5129
    %5144 = vmatpush.bf16.msra.mxu0 %v5128
    %5145 = vmatpush.bf16.msra.mxu0 %v5127
    %5146 = vmatmul.bf16.gmra.mxu0 %v5136
    %v5147 = vpop.f32.mrf.mxu0
    %v5148 = vadd.f32 0.0, %v5147
    %v5149 = vpop.f32.mrf.mxu0
    %5150 = vdwg.mxu0
    %v5151 = vadd.f32 %v5098, %v5148
    %v5152 = vld [vmem:[%s10] sm:$0x1]
    %v5154 = vperm.slane %v5152, 0
    %v5156 = vadd.f32 %v5151, %v5154
    %5157 = vst [vmem:[#allocation2] sm:$0x3] %v5156
    // Predicated region
    $region66: #{segtempnet_forward.1} parent=1 // pred_check
      _
    $region67: #{segtempnet_forward.1} parent=1 // pred_check_branch
      %5159 = sbr.rel (0) target = $region69
    $region68: #{segtempnet_forward.1} parent=1 // pred_region
      %5161 = vsyncadd [#allocation3], 0
      %s5163 = sshll.u32 [#allocation2], 4
      %s5164 = int_to_ptr.vmem [resolvable:$true] %s5163
      %s5165 = sshll.u32 %s16, 4
      %s5166 = int_to_ptr.hbm [resolvable:$true] %s5165
      %5168 = dma.vmem_to_hbm [thread:$0]  %s5164, 32, %s5166, [#allocation3]
    $region69: #{segtempnet_forward.1} parent=1 // pred_fallthru
      _
    // Predicated region
    $region70: #{segtempnet_forward.1} parent=1 // pred_check
      _
    $region71: #{segtempnet_forward.1} parent=1 // pred_check_branch
      %5170 = sbr.rel (0) target = $region73
    $region72: #{segtempnet_forward.1} parent=1 // pred_region
      %5172 = dma.done [#allocation3], 32
    $region73: #{segtempnet_forward.1} parent=1 // pred_fallthru
      _
    %5173 = vsyncpa [#allocation3], 1

</llo_original>
